<compile_context>
chip_gen: v7x
topology: tpu7x:2x2x1
jax: 0.10.0
libtpu: 0.0.40
codegen_flags: <defaults>
</compile_context>

<pallas_src>
from functools import partial

import jax
import jax.numpy as jnp
from jax import lax
from jax.experimental import pallas as pl
from jax.experimental.pallas import tpu as pltpu


def _mosaic(sem):
    # 32 MiB scoped VMEM: >= the v5e/v6e defaults without exceeding v7x's 64 MiB physical.
    # TODO(synk): re-derive per generation together with time_chunk.
    return pltpu.CompilerParams(dimension_semantics=sem,
                                vmem_limit_bytes=32 * 1024 * 1024)


# ----------------------------------------------------------------------------
# Kernel 1: hoisted input projection (+ folded biases), one dot per direction.
#   x2d: (T*B, E);  w_f/w_b: (E, 4H) (gate cols i,f,o,g);  b_f/b_b: (1, 4H)
# ----------------------------------------------------------------------------
def in_proj_kernel(x_ref, wf_ref, wb_ref, bf_ref, bb_ref, gxf_ref, gxb_ref):
    x = x_ref[...]
    gxf_ref[...] = jnp.dot(x, wf_ref[...], preferred_element_type=jnp.float32) + bf_ref[...]
    gxb_ref[...] = jnp.dot(x, wb_ref[...], preferred_element_type=jnp.float32) + bb_ref[...]


def input_projection(x2d, w_f, w_b, b_f, b_b, *, rb):
    TB, E = x2d.shape
    G = w_f.shape[1]
    return pl.pallas_call(
        in_proj_kernel,
        out_shape=(jax.ShapeDtypeStruct((TB, G), jnp.float32),
                   jax.ShapeDtypeStruct((TB, G), jnp.float32)),
        grid_spec=pltpu.PrefetchScalarGridSpec(
            num_scalar_prefetch=0,
            grid=(TB // rb,),
            in_specs=[pl.BlockSpec((rb, E), lambda r: (r, 0)),
                      pl.BlockSpec((E, G), lambda r: (0, 0)),
                      pl.BlockSpec((E, G), lambda r: (0, 0)),
                      pl.BlockSpec((1, G), lambda r: (0, 0)),
                      pl.BlockSpec((1, G), lambda r: (0, 0))],
            out_specs=[pl.BlockSpec((rb, G), lambda r: (r, 0)),
                       pl.BlockSpec((rb, G), lambda r: (r, 0))],
        ),
        compiler_params=_mosaic(("parallel",)),
    )(x2d, w_f, w_b, b_f, b_b)


# ----------------------------------------------------------------------------
# Kernel 2: fused bidirectional LSTM recurrence.
#   gxf3/gxb3: (T, B, 4H) pre-gates (gate cols i,f,o,g);  whh_f/whh_b: (H, 4H)
#   outputs hf3/hb3: (T, B, H) hidden states in time order.
# ----------------------------------------------------------------------------
def bilstm_recurrence_kernel(gxf_ref, gxb_ref, whf_ref, whb_ref, hf_ref, hb_ref,
                             hf_s, hb_s, cf_s, cb_s, *, H, TC, unroll):
    ci = pl.program_id(0)

    @pl.when(ci == 0)
    def _init():
        hf_s[...] = jnp.zeros_like(hf_s)
        hb_s[...] = jnp.zeros_like(hb_s)
        cf_s[...] = jnp.zeros_like(cf_s)
        cb_s[...] = jnp.zeros_like(cb_s)

    whf = whf_ref[...]                    # (H, 4H), per-direction weights (no block-diag zeros)
    whb = whb_ref[...]
    H3 = 3 * H

    def step(j, carry):
        jr = TC - 1 - j                                                      # backward local time
        rec_f = jnp.dot(hf_s[...], whf, preferred_element_type=jnp.float32)  # (B, 4H)
        rec_b = jnp.dot(hb_s[...], whb, preferred_element_type=jnp.float32)
        gf = gxf_ref[j] + rec_f            # fwd time  = ci*TC + j
        gb = gxb_ref[jr] + rec_b           # bwd time  = T-1-(ci*TC+j)

        sf = jax.nn.sigmoid(gf[:, :H3])    # one sigmoid over contiguous (i|f|o)
        sb = jax.nn.sigmoid(gb[:, :H3])
        gfc = jnp.tanh(gf[:, H3:])
        gbc = jnp.tanh(gb[:, H3:])

        cf_n = sf[:, H:2 * H] * cf_s[...] + sf[:, :H] * gfc
        cb_n = sb[:, H:2 * H] * cb_s[...] + sb[:, :H] * gbc
        hf_n = sf[:, 2 * H:H3] * jnp.tanh(cf_n)
        hb_n = sb[:, 2 * H:H3] * jnp.tanh(cb_n)

        cf_s[...] = cf_n
        cb_s[...] = cb_n
        hf_s[...] = hf_n
        hb_s[...] = hb_n
        hf_ref[j] = hf_n                   # stored in time order
        hb_ref[jr] = hb_n
        return carry

    lax.fori_loop(0, TC, step, 0, unroll=unroll)   # bounded unroll: keeps live ranges small


def bilstm_recurrence(gxf3, gxb3, whh_f, whh_b, *, B, T, H, TC, unroll):
    NC = T // TC
    kern = partial(bilstm_recurrence_kernel, H=H, TC=TC, unroll=unroll)
    return pl.pallas_call(
        kern,
        out_shape=(jax.ShapeDtypeStruct((T, B, H), jnp.float32),
                   jax.ShapeDtypeStruct((T, B, H), jnp.float32)),
        grid_spec=pltpu.PrefetchScalarGridSpec(
            num_scalar_prefetch=0,
            grid=(NC,),
            in_specs=[pl.BlockSpec((TC, B, 4 * H), lambda c: (c, 0, 0)),            # fwd pre-gates
                      pl.BlockSpec((TC, B, 4 * H), lambda c: (NC - 1 - c, 0, 0)),   # bwd (reversed)
                      pl.BlockSpec((H, 4 * H), lambda c: (0, 0)),
                      pl.BlockSpec((H, 4 * H), lambda c: (0, 0))],
            out_specs=[pl.BlockSpec((TC, B, H), lambda c: (c, 0, 0)),
                       pl.BlockSpec((TC, B, H), lambda c: (NC - 1 - c, 0, 0))],
            scratch_shapes=[pltpu.VMEM((B, H), jnp.float32)] * 4,   # h_f, h_b, c_f, c_b
        ),
        compiler_params=_mosaic(("arbitrary",)),
    )(gxf3, gxb3, whh_f, whh_b)


# ----------------------------------------------------------------------------
# Kernel 3a: attention scores.  Row-tiled; score via VPU reduce (no N=1 matmul).
# ----------------------------------------------------------------------------
def attn_score_kernel(hf_ref, hb_ref, wof_ref, wob_ref, u_ref, s_ref):
    z = jnp.tanh(jnp.dot(hf_ref[...], wof_ref[...], preferred_element_type=jnp.float32)
                 + jnp.dot(hb_ref[...], wob_ref[...], preferred_element_type=jnp.float32))
    s_ref[...] = jnp.sum(z * u_ref[...], axis=-1, keepdims=True)


def attention_scores(hf2d, hb2d, wof, wob, u_row, *, rb):
    TB, H = hf2d.shape
    A = wof.shape[1]
    return pl.pallas_call(
        attn_score_kernel,
        out_shape=jax.ShapeDtypeStruct((TB, 1), jnp.float32),
        grid_spec=pltpu.PrefetchScalarGridSpec(
            num_scalar_prefetch=0,
            grid=(TB // rb,),
            in_specs=[pl.BlockSpec((rb, H), lambda r: (r, 0)),
                      pl.BlockSpec((rb, H), lambda r: (r, 0)),
                      pl.BlockSpec((H, A), lambda r: (0, 0)),
                      pl.BlockSpec((H, A), lambda r: (0, 0)),
                      pl.BlockSpec((1, A), lambda r: (0, 0))],
            out_specs=pl.BlockSpec((rb, 1), lambda r: (r, 0)),
        ),
        compiler_params=_mosaic(("parallel",)),
    )(hf2d, hb2d, wof, wob, u_row)


# ----------------------------------------------------------------------------
# Kernel 3b: softmax + weighted pooling + label linear, tiled over time chunks.
#   s_grp  : (B, T)    scores in the module's reshape([-1, T]) group layout (softmax rows)
#   s_perm3: (T, B, 1) same scores re-laid so s_perm3[t, b] is the coefficient of h[t, b]
#   hf3/hb3: (T, B, H) hidden states;  accumulators live in VMEM scratch across the grid.
# ----------------------------------------------------------------------------
def attn_pool_label_kernel(sgrp_ref, sperm_ref, hf_ref, hb_ref, wlf_ref, wlb_ref,
                           bl_ref, out_ref, gmax_s, invd_s, accf_s, accb_s):
    c = pl.program_id(0)

    @pl.when(c == 0)
    def _init():
        s_bt = sgrp_ref[...]                                   # (B, T), lane-dense along T
        m = jnp.max(s_bt, axis=1, keepdims=True)
        m = jnp.max(m, axis=0, keepdims=True)                  # global max (softmax-invariant)
        gmax_s[...] = m
        e = jnp.exp(s_bt - m)
        invd_s[...] = pl.reciprocal(jnp.sum(e, axis=1, keepdims=True), approx=True)
        accf_s[...] = jnp.zeros_like(accf_s)
        accb_s[...] = jnp.zeros_like(accb_s)

    coef = jnp.exp(sperm_ref[...] - gmax_s[...])               # (RT, B, 1)
    accf_s[...] += jnp.sum(coef * hf_ref[...], axis=0)         # (B, H) — VPU adds over the T tile
    accb_s[...] += jnp.sum(coef * hb_ref[...], axis=0)

    @pl.when(c == pl.num_programs(0) - 1)
    def _finalize():
        pf = accf_s[...] * invd_s[...]
        pb = accb_s[...] * invd_s[...]
        out_ref[...] = (jnp.dot(pf, wlf_ref[...], preferred_element_type=jnp.float32)
                        + jnp.dot(pb, wlb_ref[...], preferred_element_type=jnp.float32)
                        + bl_ref[...])


def attention_pool_label(s_grp, s_perm3, hf3, hb3, wlf, wlb, bl, *, rt):
    T, B, H = hf3.shape
    O = wlf.shape[1]
    return pl.pallas_call(
        attn_pool_label_kernel,
        out_shape=jax.ShapeDtypeStruct((B, O), jnp.float32),
        grid_spec=pltpu.PrefetchScalarGridSpec(
            num_scalar_prefetch=0,
            grid=(T // rt,),
            in_specs=[pl.BlockSpec((B, T), lambda c: (0, 0)),
                      pl.BlockSpec((rt, B, 1), lambda c: (c, 0, 0)),
                      pl.BlockSpec((rt, B, H), lambda c: (c, 0, 0)),
                      pl.BlockSpec((rt, B, H), lambda c: (c, 0, 0)),
                      pl.BlockSpec((H, O), lambda c: (0, 0)),
                      pl.BlockSpec((H, O), lambda c: (0, 0)),
                      pl.BlockSpec((1, O), lambda c: (0, 0))],
            out_specs=pl.BlockSpec((B, O), lambda c: (0, 0)),
            scratch_shapes=[pltpu.VMEM((1, 1), jnp.float32),    # global max
                            pltpu.VMEM((B, 1), jnp.float32),    # 1 / softmax denominators
                            pltpu.VMEM((B, H), jnp.float32),    # fwd pooled accumulator
                            pltpu.VMEM((B, H), jnp.float32)],   # bwd pooled accumulator
        ),
        compiler_params=_mosaic(("arbitrary",)),
    )(s_grp, s_perm3, hf3, hb3, wlf, wlb, bl)


# ----------------------------------------------------------------------------
# Full forward pass (takes the PyTorch-layout parameters).
# ----------------------------------------------------------------------------
def bilstm_forward(tokens, emb,
                   w_ih_f, w_hh_f, b_ih_f, b_hh_f,
                   w_ih_b, w_hh_b, b_ih_b, b_hh_b,
                   w_omega, u_omega, w_label, b_label,
                   *, time_chunk=None, unroll=4):
    B, T = tokens.shape
    H = w_hh_f.shape[1]
    A = w_omega.shape[1]
    O = w_label.shape[0]
    TB = T * B
    TC = T if time_chunk is None else time_chunk
    assert T % TC == 0
    NC = T // TC
    assert NC == 1 or (TC * B) % 8 == 0, "time-chunk rows must be sublane aligned"
    # Row block for the row-parallel kernels; derived from the time chunk here.
    # At production sizes pick ~512 rows (multiple of 256 on v6e/v7x, 128 on v5e).
    RB = TC * B
    f32 = jnp.float32

    # ---- one-time weight re-layouts (plain JAX; constant-folded under jit) ----
    def reorder_gates(w):       # torch (i, f, g, o) -> kernel (i, f, o, g) along dim 0
        return jnp.concatenate([w[:H], w[H:2 * H], w[3 * H:], w[2 * H:3 * H]], axis=0)

    w_in_f = reorder_gates(w_ih_f).T.astype(f32)                                 # (E, 4H)
    w_in_b = reorder_gates(w_ih_b).T.astype(f32)
    b_f = (reorder_gates(b_ih_f) + reorder_gates(b_hh_f))[None, :].astype(f32)   # (1, 4H)
    b_b = (reorder_gates(b_ih_b) + reorder_gates(b_hh_b))[None, :].astype(f32)
    whh_f = reorder_gates(w_hh_f).T.astype(f32)                                  # (H, 4H)
    whh_b = reorder_gates(w_hh_b).T.astype(f32)
    wof = w_omega[:H].astype(f32)                                                # (H, A)
    wob = w_omega[H:].astype(f32)
    u_row = u_omega[None, :].astype(f32)                                         # (1, A)
    wl_t = w_label.T.astype(f32)
    wlf, wlb = wl_t[:H], wl_t[H:]                                                # (H, O)
    bl = b_label[None, :].astype(f32)

    # ---- embedding lookup (data-dependent gather; plain JAX glue), t-major layout ----
    ids = tokens.T.reshape(-1)                                   # row r = t*B + b
    x2d = jnp.take(emb, ids, axis=0).astype(f32)                 # (T*B, E)

    # ---- kernel 1: hoisted input projection (both directions) ----
    gxf, gxb = input_projection(x2d, w_in_f, w_in_b, b_f, b_b, rb=RB)            # (T*B, 4H) each

    # ---- kernel 2: fused bidirectional recurrence ----
    hf3, hb3 = bilstm_recurrence(gxf.reshape(T, B, 4 * H), gxb.reshape(T, B, 4 * H),
                                 whh_f, whh_b, B=B, T=T, H=H, TC=TC,
                                 unroll=min(TC, unroll))                         # (T, B, H) each

    # ---- kernel 3a: attention scores ----
    s_col = attention_scores(hf3.reshape(TB, H), hb3.reshape(TB, H),
                             wof, wob, u_row, rb=RB)                             # (T*B, 1)

    # ---- tiny O(T*B) score re-layouts (replace the old dense (T*B,T*B)/(B,T*B) selector
    #      matmuls).  The two reshapes are free; the transpose is a tiny XLA op.
    #      TODO(synk): do this transpose in-kernel with pltpu.einshape. ----
    s_grp = s_col.reshape(B, T)            # softmax groups = module's reshape([-1, T]) mixing
    s_perm3 = s_grp.T.reshape(T, B, 1)     # coefficient aligned with hidden state h[t, b]

    # ---- kernel 3b: softmax + weighted pooling + label linear ----
    return attention_pool_label(s_grp, s_perm3, hf3, hb3, wlf, wlb, bl, rt=TC)   # (B, O)


# ----------------------------------------------------------------------------
# Pure-JAX reference (mirrors the PyTorch module exactly, incl. its reshape semantics)
# ----------------------------------------------------------------------------
def _lstm_scan_ref(x_tbe, w_ih, w_hh, b_ih, b_hh):
    H = w_hh.shape[1]
    Bsz = x_tbe.shape[1]
    wi, wh, b = w_ih.T, w_hh.T, (b_ih + b_hh)[None, :]

    def step(carry, x_t):
        h, c = carry
        gates = x_t @ wi + h @ wh + b
        i = jax.nn.sigmoid(gates[:, 0:H])
        f = jax.nn.sigmoid(gates[:, H:2 * H])
        g = jnp.tanh(gates[:, 2 * H:3 * H])
        o = jax.nn.sigmoid(gates[:, 3 * H:4 * H])
        c = f * c + i * g
        h = o * jnp.tanh(c)
        return (h, c), h

    init = (jnp.zeros((Bsz, H), jnp.float32), jnp.zeros((Bsz, H), jnp.float32))
    _, hs = jax.lax.scan(step, init, x_tbe)
    return hs


def bilstm_forward_ref(tokens, emb,
                       w_ih_f, w_hh_f, b_ih_f, b_hh_f,
                       w_ih_b, w_hh_b, b_ih_b, b_hh_b,
                       w_omega, u_omega, w_label, b_label):
    Bsz, T = tokens.shape
    H = w_hh_f.shape[1]
    x = jnp.take(emb, tokens, axis=0)
    x = jnp.transpose(x, (1, 0, 2))                              # (T, B, E)
    h_f = _lstm_scan_ref(x, w_ih_f, w_hh_f, b_ih_f, b_hh_f)
    h_b = _lstm_scan_ref(x[::-1], w_ih_b, w_hh_b, b_ih_b, b_hh_b)[::-1]
    lstm_out = jnp.concatenate([h_f, h_b], axis=-1)              # (T, B, 2H)
    out2d = lstm_out.reshape(T * Bsz, 2 * H)
    attn_tanh = jnp.tanh(out2d @ w_omega)
    scores = attn_tanh @ u_omega.reshape(-1, 1)
    exps = jnp.exp(scores).reshape(-1, T)
    alphas = exps / jnp.sum(exps, axis=1, keepdims=True)
    state = jnp.transpose(lstm_out, (1, 0, 2))                   # (B, T, 2H)
    attn_out = jnp.sum(state * alphas[:, :, None], axis=1)
    return attn_out @ w_label.T + b_label[None, :]


if __name__ == "__main__":
    # Small config consistent with the module's __init__ (bidirectional=True, 1 LSTM layer;
    # dropout is a no-op for a 1-layer LSTM in eval mode).
    B = 2       # batch_size
    O = 4       # output_size
    H = 32      # hidden_size
    V = 50      # vocab_size
    E = 32      # embed_dim
    A = 16      # attention_size
    T = 8       # sequence_length
    PAD = 0     # const.PAD

    key = jax.random.PRNGKey(0)
    keys = jax.random.split(key, 16)

    # Embedding table, uniform(-1, 1), padding row zeroed.
    emb = jax.random.uniform(keys[0], (V, E), jnp.float32, -1.0, 1.0)
    emb = emb.at[PAD].set(0.0)

    ks = 1.0 / jnp.sqrt(jnp.float32(H))

    def uni(kk, shape):
        return jax.random.uniform(kk, shape, jnp.float32, -ks, ks)

    # LSTM weights (PyTorch shapes), forward and backward directions.
    w_ih_f = uni(keys[1], (4 * H, E)); w_hh_f = uni(keys[2], (4 * H, H))
    b_ih_f = uni(keys[3], (4 * H,));   b_hh_f = uni(keys[4], (4 * H,))
    w_ih_b = uni(keys[5], (4 * H, E)); w_hh_b = uni(keys[6], (4 * H, H))
    b_ih_b = uni(keys[7], (4 * H,));   b_hh_b = uni(keys[8], (4 * H,))

    # Attention params (module inits them to zeros; use small random values so the
    # attention path is exercised non-trivially).
    w_omega = 0.1 * jax.random.normal(keys[9], (2 * H, A), jnp.float32)
    u_omega = 0.1 * jax.random.normal(keys[10], (A,), jnp.float32)

    # Label linear (O, 2H) + bias.
    kl = 1.0 / jnp.sqrt(jnp.float32(2 * H))
    w_label = jax.random.uniform(keys[11], (O, 2 * H), jnp.float32, -kl, kl)
    b_label = jax.random.uniform(keys[12], (O,), jnp.float32, -kl, kl)

    # Input token ids: (batch, seq)
    tokens = jax.random.randint(keys[13], (B, T), 0, V, dtype=jnp.int32)

    args = (tokens, emb,
            w_ih_f, w_hh_f, b_ih_f, b_hh_f,
            w_ih_b, w_hh_b, b_ih_b, b_hh_b,
            w_omega, u_omega, w_label, b_label)

    # 2 time chunks of 4 timesteps -> every gridded kernel runs a multi-step grid.
    fwd = jax.jit(partial(bilstm_forward, time_chunk=4, unroll=4))
    logits = jax.block_until_ready(fwd(*args))

    ref = jax.block_until_ready(bilstm_forward_ref(*args))

    assert logits.shape == (B, O)
    assert bool(jnp.allclose(logits, ref, rtol=5e-3, atol=5e-3)), (
        f"mismatch:\n{logits}\nvs\n{ref}")

    print("KERNEL_OK")
</pallas_src>

<mosaic_0001>
module attributes {stable_mosaic.version = 11 : i64} {
  func.func @in_proj_kernel(%arg0: i32, %arg1: memref<8x32xf32, #tpu.memory_space<vmem>>, %arg2: memref<32x128xf32, #tpu.memory_space<vmem>>, %arg3: memref<32x128xf32, #tpu.memory_space<vmem>>, %arg4: memref<1x128xf32, #tpu.memory_space<vmem>>, %arg5: memref<1x128xf32, #tpu.memory_space<vmem>>, %arg6: memref<8x128xf32, #tpu.memory_space<vmem>>, %arg7: memref<8x128xf32, #tpu.memory_space<vmem>>) attributes {dimension_semantics = [#tpu.dimension_semantics<parallel>], iteration_bounds = array<i64: 2>, scalar_prefetch = 0 : i64, scratch_operands = 0 : i64, tpu.core_type = #tpu.core_type<tc>, window_params = [{transform_indices = @transform_0, window_bounds = array<i64: 8, 32>}, {pipeline_mode = #tpu.pipeline_mode<synchronous>, transform_indices = @transform_1, window_bounds = array<i64: 32, 128>}, {pipeline_mode = #tpu.pipeline_mode<synchronous>, transform_indices = @transform_2, window_bounds = array<i64: 32, 128>}, {pipeline_mode = #tpu.pipeline_mode<synchronous>, transform_indices = @transform_3, window_bounds = array<i64: 1, 128>}, {pipeline_mode = #tpu.pipeline_mode<synchronous>, transform_indices = @transform_4, window_bounds = array<i64: 1, 128>}, {transform_indices = @transform_5, window_bounds = array<i64: 8, 128>}, {transform_indices = @transform_6, window_bounds = array<i64: 8, 128>}]} {
    %c0 = arith.constant 0 : index
    %c0_0 = arith.constant 0 : index
    %0 = vector.load %arg1[%c0, %c0_0] : memref<8x32xf32, #tpu.memory_space<vmem>>, vector<8x32xf32>
    %c0_1 = arith.constant 0 : index
    %c0_2 = arith.constant 0 : index
    %1 = vector.load %arg2[%c0_1, %c0_2] : memref<32x128xf32, #tpu.memory_space<vmem>>, vector<32x128xf32>
    %cst = arith.constant dense<0.000000e+00> : vector<8x128xf32>
    %2 = tpu.matmul %0, %1, %cst {dimension_numbers = #tpu.dot_dimension_numbers<[1], [0], [0], [1], [0, 0, 1, 1], [], []>} : vector<8x32xf32>, vector<32x128xf32>, vector<8x128xf32> -> vector<8x128xf32>
    %c0_3 = arith.constant 0 : index
    %c0_4 = arith.constant 0 : index
    %3 = vector.load %arg4[%c0_3, %c0_4] : memref<1x128xf32, #tpu.memory_space<vmem>>, vector<1x128xf32>
    %4 = vector.broadcast %3 : vector<1x128xf32> to vector<8x128xf32>
    %5 = arith.addf %2, %4 : vector<8x128xf32>
    %c0_5 = arith.constant 0 : index
    %c0_6 = arith.constant 0 : index
    %6 = vector.load %arg6[%c0_5, %c0_6] : memref<8x128xf32, #tpu.memory_space<vmem>>, vector<8x128xf32>
    tpu.vector_store %arg6[%c0_5, %c0_6], %5 {strides = array<i32>} : memref<8x128xf32, #tpu.memory_space<vmem>>, vector<8x128xf32>,
    %c0_7 = arith.constant 0 : index
    %c0_8 = arith.constant 0 : index
    %7 = vector.load %arg3[%c0_7, %c0_8] : memref<32x128xf32, #tpu.memory_space<vmem>>, vector<32x128xf32>
    %cst_9 = arith.constant dense<0.000000e+00> : vector<8x128xf32>
    %8 = tpu.matmul %0, %7, %cst_9 {dimension_numbers = #tpu.dot_dimension_numbers<[1], [0], [0], [1], [0, 0, 1, 1], [], []>} : vector<8x32xf32>, vector<32x128xf32>, vector<8x128xf32> -> vector<8x128xf32>
    %c0_10 = arith.constant 0 : index
    %c0_11 = arith.constant 0 : index
    %9 = vector.load %arg5[%c0_10, %c0_11] : memref<1x128xf32, #tpu.memory_space<vmem>>, vector<1x128xf32>
    %10 = vector.broadcast %9 : vector<1x128xf32> to vector<8x128xf32>
    %11 = arith.addf %8, %10 : vector<8x128xf32>
    %c0_12 = arith.constant 0 : index
    %c0_13 = arith.constant 0 : index
    %12 = vector.load %arg7[%c0_12, %c0_13] : memref<8x128xf32, #tpu.memory_space<vmem>>, vector<8x128xf32>
    tpu.vector_store %arg7[%c0_12, %c0_13], %11 {strides = array<i32>} : memref<8x128xf32, #tpu.memory_space<vmem>>, vector<8x128xf32>,
    return
  }
  func.func @transform_0(%arg0: i32) -> (i32, i32) {
    %c0_i32 = arith.constant 0 : i32
    %c0_i32_0 = arith.constant 0 : i32
    return %arg0, %c0_i32 : i32, i32
  }
  func.func @transform_1(%arg0: i32) -> (i32, i32) {
    %c0_i32 = arith.constant 0 : i32
    %c0_i32_0 = arith.constant 0 : i32
    %c0_i32_1 = arith.constant 0 : i32
    return %c0_i32, %c0_i32_0 : i32, i32
  }
  func.func @transform_2(%arg0: i32) -> (i32, i32) {
    %c0_i32 = arith.constant 0 : i32
    %c0_i32_0 = arith.constant 0 : i32
    %c0_i32_1 = arith.constant 0 : i32
    return %c0_i32, %c0_i32_0 : i32, i32
  }
  func.func @transform_3(%arg0: i32) -> (i32, i32) {
    %c0_i32 = arith.constant 0 : i32
    %c0_i32_0 = arith.constant 0 : i32
    %c0_i32_1 = arith.constant 0 : i32
    return %c0_i32, %c0_i32_0 : i32, i32
  }
  func.func @transform_4(%arg0: i32) -> (i32, i32) {
    %c0_i32 = arith.constant 0 : i32
    %c0_i32_0 = arith.constant 0 : i32
    %c0_i32_1 = arith.constant 0 : i32
    return %c0_i32, %c0_i32_0 : i32, i32
  }
  func.func @transform_5(%arg0: i32) -> (i32, i32) {
    %c0_i32 = arith.constant 0 : i32
    %c0_i32_0 = arith.constant 0 : i32
    return %arg0, %c0_i32 : i32, i32
  }
  func.func @transform_6(%arg0: i32) -> (i32, i32) {
    %c0_i32 = arith.constant 0 : i32
    %c0_i32_0 = arith.constant 0 : i32
    return %arg0, %c0_i32 : i32, i32
  }
}

module attributes {stable_mosaic.version = 11 : i64} {
  func.func @attn_score_kernel(%arg0: i32, %arg1: memref<8x32xf32, #tpu.memory_space<vmem>>, %arg2: memref<8x32xf32, #tpu.memory_space<vmem>>, %arg3: memref<32x16xf32, #tpu.memory_space<vmem>>, %arg4: memref<32x16xf32, #tpu.memory_space<vmem>>, %arg5: memref<1x16xf32, #tpu.memory_space<vmem>>, %arg6: memref<8x1xf32, #tpu.memory_space<vmem>>) attributes {dimension_semantics = [#tpu.dimension_semantics<parallel>], iteration_bounds = array<i64: 2>, scalar_prefetch = 0 : i64, scratch_operands = 0 : i64, tpu.core_type = #tpu.core_type<tc>, window_params = [{transform_indices = @transform_0, window_bounds = array<i64: 8, 32>}, {transform_indices = @transform_1, window_bounds = array<i64: 8, 32>}, {pipeline_mode = #tpu.pipeline_mode<synchronous>, transform_indices = @transform_2, window_bounds = array<i64: 32, 16>}, {pipeline_mode = #tpu.pipeline_mode<synchronous>, transform_indices = @transform_3, window_bounds = array<i64: 32, 16>}, {pipeline_mode = #tpu.pipeline_mode<synchronous>, transform_indices = @transform_4, window_bounds = array<i64: 1, 16>}, {transform_indices = @transform_5, window_bounds = array<i64: 8, 1>}]} {
    %c0 = arith.constant 0 : index
    %c0_0 = arith.constant 0 : index
    %0 = vector.load %arg1[%c0, %c0_0] : memref<8x32xf32, #tpu.memory_space<vmem>>, vector<8x32xf32>
    %c0_1 = arith.constant 0 : index
    %c0_2 = arith.constant 0 : index
    %1 = vector.load %arg3[%c0_1, %c0_2] : memref<32x16xf32, #tpu.memory_space<vmem>>, vector<32x16xf32>
    %cst = arith.constant dense<0.000000e+00> : vector<8x16xf32>
    %2 = tpu.matmul %0, %1, %cst {dimension_numbers = #tpu.dot_dimension_numbers<[1], [0], [0], [1], [0, 0, 1, 1], [], []>} : vector<8x32xf32>, vector<32x16xf32>, vector<8x16xf32> -> vector<8x16xf32>
    %c0_3 = arith.constant 0 : index
    %c0_4 = arith.constant 0 : index
    %3 = vector.load %arg2[%c0_3, %c0_4] : memref<8x32xf32, #tpu.memory_space<vmem>>, vector<8x32xf32>
    %c0_5 = arith.constant 0 : index
    %c0_6 = arith.constant 0 : index
    %4 = vector.load %arg4[%c0_5, %c0_6] : memref<32x16xf32, #tpu.memory_space<vmem>>, vector<32x16xf32>
    %cst_7 = arith.constant dense<0.000000e+00> : vector<8x16xf32>
    %5 = tpu.matmul %3, %4, %cst_7 {dimension_numbers = #tpu.dot_dimension_numbers<[1], [0], [0], [1], [0, 0, 1, 1], [], []>} : vector<8x32xf32>, vector<32x16xf32>, vector<8x16xf32> -> vector<8x16xf32>
    %6 = arith.addf %2, %5 : vector<8x16xf32>
    %7 = math.tanh %6 : vector<8x16xf32>
    %c0_8 = arith.constant 0 : index
    %c0_9 = arith.constant 0 : index
    %8 = vector.load %arg5[%c0_8, %c0_9] : memref<1x16xf32, #tpu.memory_space<vmem>>, vector<1x16xf32>
    %9 = vector.broadcast %8 : vector<1x16xf32> to vector<8x16xf32>
    %10 = arith.mulf %7, %9 : vector<8x16xf32>
    %cst_10 = arith.constant dense<0.000000e+00> : vector<8xf32>
    %11 = vector.multi_reduction <add>, %10, %cst_10 [1] : vector<8x16xf32> to vector<8xf32>
    %12 = vector.shape_cast %11 : vector<8xf32> to vector<8x1xf32>
    %c0_11 = arith.constant 0 : index
    %c0_12 = arith.constant 0 : index
    %13 = vector.load %arg6[%c0_11, %c0_12] : memref<8x1xf32, #tpu.memory_space<vmem>>, vector<8x1xf32>
    tpu.vector_store %arg6[%c0_11, %c0_12], %12 {strides = array<i32>} : memref<8x1xf32, #tpu.memory_space<vmem>>, vector<8x1xf32>,
    return
  }
  func.func @transform_0(%arg0: i32) -> (i32, i32) {
    %c0_i32 = arith.constant 0 : i32
    %c0_i32_0 = arith.constant 0 : i32
    return %arg0, %c0_i32 : i32, i32
  }
  func.func @transform_1(%arg0: i32) -> (i32, i32) {
    %c0_i32 = arith.constant 0 : i32
    %c0_i32_0 = arith.constant 0 : i32
    return %arg0, %c0_i32 : i32, i32
  }
  func.func @transform_2(%arg0: i32) -> (i32, i32) {
    %c0_i32 = arith.constant 0 : i32
    %c0_i32_0 = arith.constant 0 : i32
    %c0_i32_1 = arith.constant 0 : i32
    return %c0_i32, %c0_i32_0 : i32, i32
  }
  func.func @transform_3(%arg0: i32) -> (i32, i32) {
    %c0_i32 = arith.constant 0 : i32
    %c0_i32_0 = arith.constant 0 : i32
    %c0_i32_1 = arith.constant 0 : i32
    return %c0_i32, %c0_i32_0 : i32, i32
  }
  func.func @transform_4(%arg0: i32) -> (i32, i32) {
    %c0_i32 = arith.constant 0 : i32
    %c0_i32_0 = arith.constant 0 : i32
    %c0_i32_1 = arith.constant 0 : i32
    return %c0_i32, %c0_i32_0 : i32, i32
  }
  func.func @transform_5(%arg0: i32) -> (i32, i32) {
    %c0_i32 = arith.constant 0 : i32
    %c0_i32_0 = arith.constant 0 : i32
    return %arg0, %c0_i32 : i32, i32
  }
}

module attributes {stable_mosaic.version = 11 : i64} {
  func.func @bilstm_recurrence_kernel(%arg0: i32, %arg1: memref<4x2x128xf32, #tpu.memory_space<vmem>>, %arg2: memref<4x2x128xf32, #tpu.memory_space<vmem>>, %arg3: memref<32x128xf32, #tpu.memory_space<vmem>>, %arg4: memref<32x128xf32, #tpu.memory_space<vmem>>, %arg5: memref<4x2x32xf32, #tpu.memory_space<vmem>>, %arg6: memref<4x2x32xf32, #tpu.memory_space<vmem>>, %arg7: memref<2x32xf32, #tpu.memory_space<vmem>>, %arg8: memref<2x32xf32, #tpu.memory_space<vmem>>, %arg9: memref<2x32xf32, #tpu.memory_space<vmem>>, %arg10: memref<2x32xf32, #tpu.memory_space<vmem>>) attributes {dimension_semantics = [#tpu.dimension_semantics<arbitrary>], iteration_bounds = array<i64: 2>, scalar_prefetch = 0 : i64, scratch_operands = 4 : i64, tpu.core_type = #tpu.core_type<tc>, window_params = [{transform_indices = @transform_0, window_bounds = array<i64: 4, 2, 128>}, {transform_indices = @transform_1, window_bounds = array<i64: 4, 2, 128>}, {pipeline_mode = #tpu.pipeline_mode<synchronous>, transform_indices = @transform_2, window_bounds = array<i64: 32, 128>}, {pipeline_mode = #tpu.pipeline_mode<synchronous>, transform_indices = @transform_3, window_bounds = array<i64: 32, 128>}, {transform_indices = @transform_4, window_bounds = array<i64: 4, 2, 32>}, {transform_indices = @transform_5, window_bounds = array<i64: 4, 2, 32>}]} {
    %c0_i32 = arith.constant 0 : i32
    %0 = arith.cmpi eq, %arg0, %c0_i32 : i32
    %1 = arith.extui %0 : i1 to i32
    %c0_i32_0 = arith.constant 0 : i32
    %2 = arith.cmpi ne, %1, %c0_i32_0 : i32
    scf.if %2 {
      %cst_120 = arith.constant 0.000000e+00 : f32
      %241 = vector.broadcast %cst_120 : f32 to vector<2x32xf32>
      %c0_121 = arith.constant 0 : index
      %c0_122 = arith.constant 0 : index
      %242 = vector.load %arg7[%c0_121, %c0_122] : memref<2x32xf32, #tpu.memory_space<vmem>>, vector<2x32xf32>
      tpu.vector_store %arg7[%c0_121, %c0_122], %241 {strides = array<i32>} : memref<2x32xf32, #tpu.memory_space<vmem>>, vector<2x32xf32>,
      %cst_123 = arith.constant 0.000000e+00 : f32
      %243 = vector.broadcast %cst_123 : f32 to vector<2x32xf32>
      %c0_124 = arith.constant 0 : index
      %c0_125 = arith.constant 0 : index
      %244 = vector.load %arg8[%c0_124, %c0_125] : memref<2x32xf32, #tpu.memory_space<vmem>>, vector<2x32xf32>
      tpu.vector_store %arg8[%c0_124, %c0_125], %243 {strides = array<i32>} : memref<2x32xf32, #tpu.memory_space<vmem>>, vector<2x32xf32>,
      %cst_126 = arith.constant 0.000000e+00 : f32
      %245 = vector.broadcast %cst_126 : f32 to vector<2x32xf32>
      %c0_127 = arith.constant 0 : index
      %c0_128 = arith.constant 0 : index
      %246 = vector.load %arg9[%c0_127, %c0_128] : memref<2x32xf32, #tpu.memory_space<vmem>>, vector<2x32xf32>
      tpu.vector_store %arg9[%c0_127, %c0_128], %245 {strides = array<i32>} : memref<2x32xf32, #tpu.memory_space<vmem>>, vector<2x32xf32>,
      %cst_129 = arith.constant 0.000000e+00 : f32
      %247 = vector.broadcast %cst_129 : f32 to vector<2x32xf32>
      %c0_130 = arith.constant 0 : index
      %c0_131 = arith.constant 0 : index
      %248 = vector.load %arg10[%c0_130, %c0_131] : memref<2x32xf32, #tpu.memory_space<vmem>>, vector<2x32xf32>
      tpu.vector_store %arg10[%c0_130, %c0_131], %247 {strides = array<i32>} : memref<2x32xf32, #tpu.memory_space<vmem>>, vector<2x32xf32>,
    } else {
    }
    %c0 = arith.constant 0 : index
    %c0_1 = arith.constant 0 : index
    %3 = vector.load %arg3[%c0, %c0_1] : memref<32x128xf32, #tpu.memory_space<vmem>>, vector<32x128xf32>
    %c0_2 = arith.constant 0 : index
    %c0_3 = arith.constant 0 : index
    %4 = vector.load %arg4[%c0_2, %c0_3] : memref<32x128xf32, #tpu.memory_space<vmem>>, vector<32x128xf32>
    %c0_i32_4 = arith.constant 0 : i32
    %c3_i32 = arith.constant 3 : i32
    %5 = arith.subi %c3_i32, %c0_i32_4 : i32
    %c0_5 = arith.constant 0 : index
    %c0_6 = arith.constant 0 : index
    %6 = vector.load %arg7[%c0_5, %c0_6] : memref<2x32xf32, #tpu.memory_space<vmem>>, vector<2x32xf32>
    %cst = arith.constant dense<0.000000e+00> : vector<2x128xf32>
    %7 = tpu.matmul %6, %3, %cst {dimension_numbers = #tpu.dot_dimension_numbers<[1], [0], [0], [1], [0, 0, 1, 1], [], []>} : vector<2x32xf32>, vector<32x128xf32>, vector<2x128xf32> -> vector<2x128xf32>
    %c0_7 = arith.constant 0 : index
    %c0_8 = arith.constant 0 : index
    %8 = vector.load %arg8[%c0_7, %c0_8] : memref<2x32xf32, #tpu.memory_space<vmem>>, vector<2x32xf32>
    %cst_9 = arith.constant dense<0.000000e+00> : vector<2x128xf32>
    %9 = tpu.matmul %8, %4, %cst_9 {dimension_numbers = #tpu.dot_dimension_numbers<[1], [0], [0], [1], [0, 0, 1, 1], [], []>} : vector<2x32xf32>, vector<32x128xf32>, vector<2x128xf32> -> vector<2x128xf32>
    %10 = arith.index_cast %c0_i32_4 : i32 to index
    %c0_10 = arith.constant 0 : index
    %c0_11 = arith.constant 0 : index
    %11 = vector.load %arg1[%10, %c0_10, %c0_11] : memref<4x2x128xf32, #tpu.memory_space<vmem>>, vector<1x2x128xf32>
    %12 = vector.shape_cast %11 : vector<1x2x128xf32> to vector<2x128xf32>
    %13 = arith.addf %12, %7 : vector<2x128xf32>
    %14 = arith.index_cast %5 : i32 to index
    %c0_12 = arith.constant 0 : index
    %c0_13 = arith.constant 0 : index
    %15 = vector.load %arg2[%14, %c0_12, %c0_13] : memref<4x2x128xf32, #tpu.memory_space<vmem>>, vector<1x2x128xf32>
    %16 = vector.shape_cast %15 : vector<1x2x128xf32> to vector<2x128xf32>
    %17 = arith.addf %16, %9 : vector<2x128xf32>
    %18 = vector.extract_strided_slice %13 {offsets = [0, 0], sizes = [2, 96], strides = [1, 1]} : vector<2x128xf32> to vector<2x96xf32>
    %19 = arith.negf %18 : vector<2x96xf32>
    %20 = math.exp %19 : vector<2x96xf32>
    %cst_14 = arith.constant 1.000000e+00 : f32
    %21 = vector.broadcast %cst_14 : f32 to vector<2x96xf32>
    %22 = arith.addf %21, %20 : vector<2x96xf32>
    %23 = arith.divf %21, %22 : vector<2x96xf32>
    %24 = vector.extract_strided_slice %17 {offsets = [0, 0], sizes = [2, 96], strides = [1, 1]} : vector<2x128xf32> to vector<2x96xf32>
    %25 = arith.negf %24 : vector<2x96xf32>
    %26 = math.exp %25 : vector<2x96xf32>
    %cst_15 = arith.constant 1.000000e+00 : f32
    %27 = vector.broadcast %cst_15 : f32 to vector<2x96xf32>
    %28 = arith.addf %27, %26 : vector<2x96xf32>
    %29 = arith.divf %27, %28 : vector<2x96xf32>
    %30 = vector.extract_strided_slice %13 {offsets = [0, 96], sizes = [2, 32], strides = [1, 1]} : vector<2x128xf32> to vector<2x32xf32>
    %31 = math.tanh %30 : vector<2x32xf32>
    %32 = vector.extract_strided_slice %17 {offsets = [0, 96], sizes = [2, 32], strides = [1, 1]} : vector<2x128xf32> to vector<2x32xf32>
    %33 = math.tanh %32 : vector<2x32xf32>
    %34 = vector.extract_strided_slice %23 {offsets = [0, 32], sizes = [2, 32], strides = [1, 1]} : vector<2x96xf32> to vector<2x32xf32>
    %c0_16 = arith.constant 0 : index
    %c0_17 = arith.constant 0 : index
    %35 = vector.load %arg9[%c0_16, %c0_17] : memref<2x32xf32, #tpu.memory_space<vmem>>, vector<2x32xf32>
    %36 = arith.mulf %34, %35 : vector<2x32xf32>
    %37 = vector.extract_strided_slice %23 {offsets = [0, 0], sizes = [2, 32], strides = [1, 1]} : vector<2x96xf32> to vector<2x32xf32>
    %38 = arith.mulf %37, %31 : vector<2x32xf32>
    %39 = arith.addf %36, %38 : vector<2x32xf32>
    %40 = vector.extract_strided_slice %29 {offsets = [0, 32], sizes = [2, 32], strides = [1, 1]} : vector<2x96xf32> to vector<2x32xf32>
    %c0_18 = arith.constant 0 : index
    %c0_19 = arith.constant 0 : index
    %41 = vector.load %arg10[%c0_18, %c0_19] : memref<2x32xf32, #tpu.memory_space<vmem>>, vector<2x32xf32>
    %42 = arith.mulf %40, %41 : vector<2x32xf32>
    %43 = vector.extract_strided_slice %29 {offsets = [0, 0], sizes = [2, 32], strides = [1, 1]} : vector<2x96xf32> to vector<2x32xf32>
    %44 = arith.mulf %43, %33 : vector<2x32xf32>
    %45 = arith.addf %42, %44 : vector<2x32xf32>
    %46 = vector.extract_strided_slice %23 {offsets = [0, 64], sizes = [2, 32], strides = [1, 1]} : vector<2x96xf32> to vector<2x32xf32>
    %47 = math.tanh %39 : vector<2x32xf32>
    %48 = arith.mulf %46, %47 : vector<2x32xf32>
    %49 = vector.extract_strided_slice %29 {offsets = [0, 64], sizes = [2, 32], strides = [1, 1]} : vector<2x96xf32> to vector<2x32xf32>
    %50 = math.tanh %45 : vector<2x32xf32>
    %51 = arith.mulf %49, %50 : vector<2x32xf32>
    %c0_20 = arith.constant 0 : index
    %c0_21 = arith.constant 0 : index
    %52 = vector.load %arg9[%c0_20, %c0_21] : memref<2x32xf32, #tpu.memory_space<vmem>>, vector<2x32xf32>
    tpu.vector_store %arg9[%c0_20, %c0_21], %39 {strides = array<i32>} : memref<2x32xf32, #tpu.memory_space<vmem>>, vector<2x32xf32>,
    %c0_22 = arith.constant 0 : index
    %c0_23 = arith.constant 0 : index
    %53 = vector.load %arg10[%c0_22, %c0_23] : memref<2x32xf32, #tpu.memory_space<vmem>>, vector<2x32xf32>
    tpu.vector_store %arg10[%c0_22, %c0_23], %45 {strides = array<i32>} : memref<2x32xf32, #tpu.memory_space<vmem>>, vector<2x32xf32>,
    %c0_24 = arith.constant 0 : index
    %c0_25 = arith.constant 0 : index
    %54 = vector.load %arg7[%c0_24, %c0_25] : memref<2x32xf32, #tpu.memory_space<vmem>>, vector<2x32xf32>
    tpu.vector_store %arg7[%c0_24, %c0_25], %48 {strides = array<i32>} : memref<2x32xf32, #tpu.memory_space<vmem>>, vector<2x32xf32>,
    %c0_26 = arith.constant 0 : index
    %c0_27 = arith.constant 0 : index
    %55 = vector.load %arg8[%c0_26, %c0_27] : memref<2x32xf32, #tpu.memory_space<vmem>>, vector<2x32xf32>
    tpu.vector_store %arg8[%c0_26, %c0_27], %51 {strides = array<i32>} : memref<2x32xf32, #tpu.memory_space<vmem>>, vector<2x32xf32>,
    %56 = arith.index_cast %c0_i32_4 : i32 to index
    %c0_28 = arith.constant 0 : index
    %c0_29 = arith.constant 0 : index
    %57 = vector.load %arg5[%56, %c0_28, %c0_29] : memref<4x2x32xf32, #tpu.memory_space<vmem>>, vector<1x2x32xf32>
    %58 = vector.shape_cast %57 : vector<1x2x32xf32> to vector<2x32xf32>
    %59 = vector.shape_cast %48 : vector<2x32xf32> to vector<1x2x32xf32>
    tpu.vector_store %arg5[%56, %c0_28, %c0_29], %59 {strides = array<i32>} : memref<4x2x32xf32, #tpu.memory_space<vmem>>, vector<1x2x32xf32>,
    %60 = arith.index_cast %5 : i32 to index
    %c0_30 = arith.constant 0 : index
    %c0_31 = arith.constant 0 : index
    %61 = vector.load %arg6[%60, %c0_30, %c0_31] : memref<4x2x32xf32, #tpu.memory_space<vmem>>, vector<1x2x32xf32>
    %62 = vector.shape_cast %61 : vector<1x2x32xf32> to vector<2x32xf32>
    %63 = vector.shape_cast %51 : vector<2x32xf32> to vector<1x2x32xf32>
    tpu.vector_store %arg6[%60, %c0_30, %c0_31], %63 {strides = array<i32>} : memref<4x2x32xf32, #tpu.memory_space<vmem>>, vector<1x2x32xf32>,
    %c1_i32 = arith.constant 1 : i32
    %c3_i32_32 = arith.constant 3 : i32
    %64 = arith.subi %c3_i32_32, %c1_i32 : i32
    %c0_33 = arith.constant 0 : index
    %c0_34 = arith.constant 0 : index
    %65 = vector.load %arg7[%c0_33, %c0_34] : memref<2x32xf32, #tpu.memory_space<vmem>>, vector<2x32xf32>
    %cst_35 = arith.constant dense<0.000000e+00> : vector<2x128xf32>
    %66 = tpu.matmul %65, %3, %cst_35 {dimension_numbers = #tpu.dot_dimension_numbers<[1], [0], [0], [1], [0, 0, 1, 1], [], []>} : vector<2x32xf32>, vector<32x128xf32>, vector<2x128xf32> -> vector<2x128xf32>
    %c0_36 = arith.constant 0 : index
    %c0_37 = arith.constant 0 : index
    %67 = vector.load %arg8[%c0_36, %c0_37] : memref<2x32xf32, #tpu.memory_space<vmem>>, vector<2x32xf32>
    %cst_38 = arith.constant dense<0.000000e+00> : vector<2x128xf32>
    %68 = tpu.matmul %67, %4, %cst_38 {dimension_numbers = #tpu.dot_dimension_numbers<[1], [0], [0], [1], [0, 0, 1, 1], [], []>} : vector<2x32xf32>, vector<32x128xf32>, vector<2x128xf32> -> vector<2x128xf32>
    %69 = arith.index_cast %c1_i32 : i32 to index
    %c0_39 = arith.constant 0 : index
    %c0_40 = arith.constant 0 : index
    %70 = vector.load %arg1[%69, %c0_39, %c0_40] : memref<4x2x128xf32, #tpu.memory_space<vmem>>, vector<1x2x128xf32>
    %71 = vector.shape_cast %70 : vector<1x2x128xf32> to vector<2x128xf32>
    %72 = arith.addf %71, %66 : vector<2x128xf32>
    %73 = arith.index_cast %64 : i32 to index
    %c0_41 = arith.constant 0 : index
    %c0_42 = arith.constant 0 : index
    %74 = vector.load %arg2[%73, %c0_41, %c0_42] : memref<4x2x128xf32, #tpu.memory_space<vmem>>, vector<1x2x128xf32>
    %75 = vector.shape_cast %74 : vector<1x2x128xf32> to vector<2x128xf32>
    %76 = arith.addf %75, %68 : vector<2x128xf32>
    %77 = vector.extract_strided_slice %72 {offsets = [0, 0], sizes = [2, 96], strides = [1, 1]} : vector<2x128xf32> to vector<2x96xf32>
    %78 = arith.negf %77 : vector<2x96xf32>
    %79 = math.exp %78 : vector<2x96xf32>
    %cst_43 = arith.constant 1.000000e+00 : f32
    %80 = vector.broadcast %cst_43 : f32 to vector<2x96xf32>
    %81 = arith.addf %80, %79 : vector<2x96xf32>
    %82 = arith.divf %80, %81 : vector<2x96xf32>
    %83 = vector.extract_strided_slice %76 {offsets = [0, 0], sizes = [2, 96], strides = [1, 1]} : vector<2x128xf32> to vector<2x96xf32>
    %84 = arith.negf %83 : vector<2x96xf32>
    %85 = math.exp %84 : vector<2x96xf32>
    %cst_44 = arith.constant 1.000000e+00 : f32
    %86 = vector.broadcast %cst_44 : f32 to vector<2x96xf32>
    %87 = arith.addf %86, %85 : vector<2x96xf32>
    %88 = arith.divf %86, %87 : vector<2x96xf32>
    %89 = vector.extract_strided_slice %72 {offsets = [0, 96], sizes = [2, 32], strides = [1, 1]} : vector<2x128xf32> to vector<2x32xf32>
    %90 = math.tanh %89 : vector<2x32xf32>
    %91 = vector.extract_strided_slice %76 {offsets = [0, 96], sizes = [2, 32], strides = [1, 1]} : vector<2x128xf32> to vector<2x32xf32>
    %92 = math.tanh %91 : vector<2x32xf32>
    %93 = vector.extract_strided_slice %82 {offsets = [0, 32], sizes = [2, 32], strides = [1, 1]} : vector<2x96xf32> to vector<2x32xf32>
    %c0_45 = arith.constant 0 : index
    %c0_46 = arith.constant 0 : index
    %94 = vector.load %arg9[%c0_45, %c0_46] : memref<2x32xf32, #tpu.memory_space<vmem>>, vector<2x32xf32>
    %95 = arith.mulf %93, %94 : vector<2x32xf32>
    %96 = vector.extract_strided_slice %82 {offsets = [0, 0], sizes = [2, 32], strides = [1, 1]} : vector<2x96xf32> to vector<2x32xf32>
    %97 = arith.mulf %96, %90 : vector<2x32xf32>
    %98 = arith.addf %95, %97 : vector<2x32xf32>
    %99 = vector.extract_strided_slice %88 {offsets = [0, 32], sizes = [2, 32], strides = [1, 1]} : vector<2x96xf32> to vector<2x32xf32>
    %c0_47 = arith.constant 0 : index
    %c0_48 = arith.constant 0 : index
    %100 = vector.load %arg10[%c0_47, %c0_48] : memref<2x32xf32, #tpu.memory_space<vmem>>, vector<2x32xf32>
    %101 = arith.mulf %99, %100 : vector<2x32xf32>
    %102 = vector.extract_strided_slice %88 {offsets = [0, 0], sizes = [2, 32], strides = [1, 1]} : vector<2x96xf32> to vector<2x32xf32>
    %103 = arith.mulf %102, %92 : vector<2x32xf32>
    %104 = arith.addf %101, %103 : vector<2x32xf32>
    %105 = vector.extract_strided_slice %82 {offsets = [0, 64], sizes = [2, 32], strides = [1, 1]} : vector<2x96xf32> to vector<2x32xf32>
    %106 = math.tanh %98 : vector<2x32xf32>
    %107 = arith.mulf %105, %106 : vector<2x32xf32>
    %108 = vector.extract_strided_slice %88 {offsets = [0, 64], sizes = [2, 32], strides = [1, 1]} : vector<2x96xf32> to vector<2x32xf32>
    %109 = math.tanh %104 : vector<2x32xf32>
    %110 = arith.mulf %108, %109 : vector<2x32xf32>
    %c0_49 = arith.constant 0 : index
    %c0_50 = arith.constant 0 : index
    %111 = vector.load %arg9[%c0_49, %c0_50] : memref<2x32xf32, #tpu.memory_space<vmem>>, vector<2x32xf32>
    tpu.vector_store %arg9[%c0_49, %c0_50], %98 {strides = array<i32>} : memref<2x32xf32, #tpu.memory_space<vmem>>, vector<2x32xf32>,
    %c0_51 = arith.constant 0 : index
    %c0_52 = arith.constant 0 : index
    %112 = vector.load %arg10[%c0_51, %c0_52] : memref<2x32xf32, #tpu.memory_space<vmem>>, vector<2x32xf32>
    tpu.vector_store %arg10[%c0_51, %c0_52], %104 {strides = array<i32>} : memref<2x32xf32, #tpu.memory_space<vmem>>, vector<2x32xf32>,
    %c0_53 = arith.constant 0 : index
    %c0_54 = arith.constant 0 : index
    %113 = vector.load %arg7[%c0_53, %c0_54] : memref<2x32xf32, #tpu.memory_space<vmem>>, vector<2x32xf32>
    tpu.vector_store %arg7[%c0_53, %c0_54], %107 {strides = array<i32>} : memref<2x32xf32, #tpu.memory_space<vmem>>, vector<2x32xf32>,
    %c0_55 = arith.constant 0 : index
    %c0_56 = arith.constant 0 : index
    %114 = vector.load %arg8[%c0_55, %c0_56] : memref<2x32xf32, #tpu.memory_space<vmem>>, vector<2x32xf32>
    tpu.vector_store %arg8[%c0_55, %c0_56], %110 {strides = array<i32>} : memref<2x32xf32, #tpu.memory_space<vmem>>, vector<2x32xf32>,
    %115 = arith.index_cast %c1_i32 : i32 to index
    %c0_57 = arith.constant 0 : index
    %c0_58 = arith.constant 0 : index
    %116 = vector.load %arg5[%115, %c0_57, %c0_58] : memref<4x2x32xf32, #tpu.memory_space<vmem>>, vector<1x2x32xf32>
    %117 = vector.shape_cast %116 : vector<1x2x32xf32> to vector<2x32xf32>
    %118 = vector.shape_cast %107 : vector<2x32xf32> to vector<1x2x32xf32>
    tpu.vector_store %arg5[%115, %c0_57, %c0_58], %118 {strides = array<i32>} : memref<4x2x32xf32, #tpu.memory_space<vmem>>, vector<1x2x32xf32>,
    %119 = arith.index_cast %64 : i32 to index
    %c0_59 = arith.constant 0 : index
    %c0_60 = arith.constant 0 : index
    %120 = vector.load %arg6[%119, %c0_59, %c0_60] : memref<4x2x32xf32, #tpu.memory_space<vmem>>, vector<1x2x32xf32>
    %121 = vector.shape_cast %120 : vector<1x2x32xf32> to vector<2x32xf32>
    %122 = vector.shape_cast %110 : vector<2x32xf32> to vector<1x2x32xf32>
    tpu.vector_store %arg6[%119, %c0_59, %c0_60], %122 {strides = array<i32>} : memref<4x2x32xf32, #tpu.memory_space<vmem>>, vector<1x2x32xf32>,
    %c2_i32 = arith.constant 2 : i32
    %c3_i32_61 = arith.constant 3 : i32
    %123 = arith.subi %c3_i32_61, %c2_i32 : i32
    %c0_62 = arith.constant 0 : index
    %c0_63 = arith.constant 0 : index
    %124 = vector.load %arg7[%c0_62, %c0_63] : memref<2x32xf32, #tpu.memory_space<vmem>>, vector<2x32xf32>
    %cst_64 = arith.constant dense<0.000000e+00> : vector<2x128xf32>
    %125 = tpu.matmul %124, %3, %cst_64 {dimension_numbers = #tpu.dot_dimension_numbers<[1], [0], [0], [1], [0, 0, 1, 1], [], []>} : vector<2x32xf32>, vector<32x128xf32>, vector<2x128xf32> -> vector<2x128xf32>
    %c0_65 = arith.constant 0 : index
    %c0_66 = arith.constant 0 : index
    %126 = vector.load %arg8[%c0_65, %c0_66] : memref<2x32xf32, #tpu.memory_space<vmem>>, vector<2x32xf32>
    %cst_67 = arith.constant dense<0.000000e+00> : vector<2x128xf32>
    %127 = tpu.matmul %126, %4, %cst_67 {dimension_numbers = #tpu.dot_dimension_numbers<[1], [0], [0], [1], [0, 0, 1, 1], [], []>} : vector<2x32xf32>, vector<32x128xf32>, vector<2x128xf32> -> vector<2x128xf32>
    %128 = arith.index_cast %c2_i32 : i32 to index
    %c0_68 = arith.constant 0 : index
    %c0_69 = arith.constant 0 : index
    %129 = vector.load %arg1[%128, %c0_68, %c0_69] : memref<4x2x128xf32, #tpu.memory_space<vmem>>, vector<1x2x128xf32>
    %130 = vector.shape_cast %129 : vector<1x2x128xf32> to vector<2x128xf32>
    %131 = arith.addf %130, %125 : vector<2x128xf32>
    %132 = arith.index_cast %123 : i32 to index
    %c0_70 = arith.constant 0 : index
    %c0_71 = arith.constant 0 : index
    %133 = vector.load %arg2[%132, %c0_70, %c0_71] : memref<4x2x128xf32, #tpu.memory_space<vmem>>, vector<1x2x128xf32>
    %134 = vector.shape_cast %133 : vector<1x2x128xf32> to vector<2x128xf32>
    %135 = arith.addf %134, %127 : vector<2x128xf32>
    %136 = vector.extract_strided_slice %131 {offsets = [0, 0], sizes = [2, 96], strides = [1, 1]} : vector<2x128xf32> to vector<2x96xf32>
    %137 = arith.negf %136 : vector<2x96xf32>
    %138 = math.exp %137 : vector<2x96xf32>
    %cst_72 = arith.constant 1.000000e+00 : f32
    %139 = vector.broadcast %cst_72 : f32 to vector<2x96xf32>
    %140 = arith.addf %139, %138 : vector<2x96xf32>
    %141 = arith.divf %139, %140 : vector<2x96xf32>
    %142 = vector.extract_strided_slice %135 {offsets = [0, 0], sizes = [2, 96], strides = [1, 1]} : vector<2x128xf32> to vector<2x96xf32>
    %143 = arith.negf %142 : vector<2x96xf32>
    %144 = math.exp %143 : vector<2x96xf32>
    %cst_73 = arith.constant 1.000000e+00 : f32
    %145 = vector.broadcast %cst_73 : f32 to vector<2x96xf32>
    %146 = arith.addf %145, %144 : vector<2x96xf32>
    %147 = arith.divf %145, %146 : vector<2x96xf32>
    %148 = vector.extract_strided_slice %131 {offsets = [0, 96], sizes = [2, 32], strides = [1, 1]} : vector<2x128xf32> to vector<2x32xf32>
    %149 = math.tanh %148 : vector<2x32xf32>
    %150 = vector.extract_strided_slice %135 {offsets = [0, 96], sizes = [2, 32], strides = [1, 1]} : vector<2x128xf32> to vector<2x32xf32>
    %151 = math.tanh %150 : vector<2x32xf32>
    %152 = vector.extract_strided_slice %141 {offsets = [0, 32], sizes = [2, 32], strides = [1, 1]} : vector<2x96xf32> to vector<2x32xf32>
    %c0_74 = arith.constant 0 : index
    %c0_75 = arith.constant 0 : index
    %153 = vector.load %arg9[%c0_74, %c0_75] : memref<2x32xf32, #tpu.memory_space<vmem>>, vector<2x32xf32>
    %154 = arith.mulf %152, %153 : vector<2x32xf32>
    %155 = vector.extract_strided_slice %141 {offsets = [0, 0], sizes = [2, 32], strides = [1, 1]} : vector<2x96xf32> to vector<2x32xf32>
    %156 = arith.mulf %155, %149 : vector<2x32xf32>
    %157 = arith.addf %154, %156 : vector<2x32xf32>
    %158 = vector.extract_strided_slice %147 {offsets = [0, 32], sizes = [2, 32], strides = [1, 1]} : vector<2x96xf32> to vector<2x32xf32>
    %c0_76 = arith.constant 0 : index
    %c0_77 = arith.constant 0 : index
    %159 = vector.load %arg10[%c0_76, %c0_77] : memref<2x32xf32, #tpu.memory_space<vmem>>, vector<2x32xf32>
    %160 = arith.mulf %158, %159 : vector<2x32xf32>
    %161 = vector.extract_strided_slice %147 {offsets = [0, 0], sizes = [2, 32], strides = [1, 1]} : vector<2x96xf32> to vector<2x32xf32>
    %162 = arith.mulf %161, %151 : vector<2x32xf32>
    %163 = arith.addf %160, %162 : vector<2x32xf32>
    %164 = vector.extract_strided_slice %141 {offsets = [0, 64], sizes = [2, 32], strides = [1, 1]} : vector<2x96xf32> to vector<2x32xf32>
    %165 = math.tanh %157 : vector<2x32xf32>
    %166 = arith.mulf %164, %165 : vector<2x32xf32>
    %167 = vector.extract_strided_slice %147 {offsets = [0, 64], sizes = [2, 32], strides = [1, 1]} : vector<2x96xf32> to vector<2x32xf32>
    %168 = math.tanh %163 : vector<2x32xf32>
    %169 = arith.mulf %167, %168 : vector<2x32xf32>
    %c0_78 = arith.constant 0 : index
    %c0_79 = arith.constant 0 : index
    %170 = vector.load %arg9[%c0_78, %c0_79] : memref<2x32xf32, #tpu.memory_space<vmem>>, vector<2x32xf32>
    tpu.vector_store %arg9[%c0_78, %c0_79], %157 {strides = array<i32>} : memref<2x32xf32, #tpu.memory_space<vmem>>, vector<2x32xf32>,
    %c0_80 = arith.constant 0 : index
    %c0_81 = arith.constant 0 : index
    %171 = vector.load %arg10[%c0_80, %c0_81] : memref<2x32xf32, #tpu.memory_space<vmem>>, vector<2x32xf32>
    tpu.vector_store %arg10[%c0_80, %c0_81], %163 {strides = array<i32>} : memref<2x32xf32, #tpu.memory_space<vmem>>, vector<2x32xf32>,
    %c0_82 = arith.constant 0 : index
    %c0_83 = arith.constant 0 : index
    %172 = vector.load %arg7[%c0_82, %c0_83] : memref<2x32xf32, #tpu.memory_space<vmem>>, vector<2x32xf32>
    tpu.vector_store %arg7[%c0_82, %c0_83], %166 {strides = array<i32>} : memref<2x32xf32, #tpu.memory_space<vmem>>, vector<2x32xf32>,
    %c0_84 = arith.constant 0 : index
    %c0_85 = arith.constant 0 : index
    %173 = vector.load %arg8[%c0_84, %c0_85] : memref<2x32xf32, #tpu.memory_space<vmem>>, vector<2x32xf32>
    tpu.vector_store %arg8[%c0_84, %c0_85], %169 {strides = array<i32>} : memref<2x32xf32, #tpu.memory_space<vmem>>, vector<2x32xf32>,
    %174 = arith.index_cast %c2_i32 : i32 to index
    %c0_86 = arith.constant 0 : index
    %c0_87 = arith.constant 0 : index
    %175 = vector.load %arg5[%174, %c0_86, %c0_87] : memref<4x2x32xf32, #tpu.memory_space<vmem>>, vector<1x2x32xf32>
    %176 = vector.shape_cast %175 : vector<1x2x32xf32> to vector<2x32xf32>
    %177 = vector.shape_cast %166 : vector<2x32xf32> to vector<1x2x32xf32>
    tpu.vector_store %arg5[%174, %c0_86, %c0_87], %177 {strides = array<i32>} : memref<4x2x32xf32, #tpu.memory_space<vmem>>, vector<1x2x32xf32>,
    %178 = arith.index_cast %123 : i32 to index
    %c0_88 = arith.constant 0 : index
    %c0_89 = arith.constant 0 : index
    %179 = vector.load %arg6[%178, %c0_88, %c0_89] : memref<4x2x32xf32, #tpu.memory_space<vmem>>, vector<1x2x32xf32>
    %180 = vector.shape_cast %179 : vector<1x2x32xf32> to vector<2x32xf32>
    %181 = vector.shape_cast %169 : vector<2x32xf32> to vector<1x2x32xf32>
    tpu.vector_store %arg6[%178, %c0_88, %c0_89], %181 {strides = array<i32>} : memref<4x2x32xf32, #tpu.memory_space<vmem>>, vector<1x2x32xf32>,
    %c3_i32_90 = arith.constant 3 : i32
    %c3_i32_91 = arith.constant 3 : i32
    %182 = arith.subi %c3_i32_91, %c3_i32_90 : i32
    %c0_92 = arith.constant 0 : index
    %c0_93 = arith.constant 0 : index
    %183 = vector.load %arg7[%c0_92, %c0_93] : memref<2x32xf32, #tpu.memory_space<vmem>>, vector<2x32xf32>
    %cst_94 = arith.constant dense<0.000000e+00> : vector<2x128xf32>
    %184 = tpu.matmul %183, %3, %cst_94 {dimension_numbers = #tpu.dot_dimension_numbers<[1], [0], [0], [1], [0, 0, 1, 1], [], []>} : vector<2x32xf32>, vector<32x128xf32>, vector<2x128xf32> -> vector<2x128xf32>
    %c0_95 = arith.constant 0 : index
    %c0_96 = arith.constant 0 : index
    %185 = vector.load %arg8[%c0_95, %c0_96] : memref<2x32xf32, #tpu.memory_space<vmem>>, vector<2x32xf32>
    %cst_97 = arith.constant dense<0.000000e+00> : vector<2x128xf32>
    %186 = tpu.matmul %185, %4, %cst_97 {dimension_numbers = #tpu.dot_dimension_numbers<[1], [0], [0], [1], [0, 0, 1, 1], [], []>} : vector<2x32xf32>, vector<32x128xf32>, vector<2x128xf32> -> vector<2x128xf32>
    %187 = arith.index_cast %c3_i32_90 : i32 to index
    %c0_98 = arith.constant 0 : index
    %c0_99 = arith.constant 0 : index
    %188 = vector.load %arg1[%187, %c0_98, %c0_99] : memref<4x2x128xf32, #tpu.memory_space<vmem>>, vector<1x2x128xf32>
    %189 = vector.shape_cast %188 : vector<1x2x128xf32> to vector<2x128xf32>
    %190 = arith.addf %189, %184 : vector<2x128xf32>
    %191 = arith.index_cast %182 : i32 to index
    %c0_100 = arith.constant 0 : index
    %c0_101 = arith.constant 0 : index
    %192 = vector.load %arg2[%191, %c0_100, %c0_101] : memref<4x2x128xf32, #tpu.memory_space<vmem>>, vector<1x2x128xf32>
    %193 = vector.shape_cast %192 : vector<1x2x128xf32> to vector<2x128xf32>
    %194 = arith.addf %193, %186 : vector<2x128xf32>
    %195 = vector.extract_strided_slice %190 {offsets = [0, 0], sizes = [2, 96], strides = [1, 1]} : vector<2x128xf32> to vector<2x96xf32>
    %196 = arith.negf %195 : vector<2x96xf32>
    %197 = math.exp %196 : vector<2x96xf32>
    %cst_102 = arith.constant 1.000000e+00 : f32
    %198 = vector.broadcast %cst_102 : f32 to vector<2x96xf32>
    %199 = arith.addf %198, %197 : vector<2x96xf32>
    %200 = arith.divf %198, %199 : vector<2x96xf32>
    %201 = vector.extract_strided_slice %194 {offsets = [0, 0], sizes = [2, 96], strides = [1, 1]} : vector<2x128xf32> to vector<2x96xf32>
    %202 = arith.negf %201 : vector<2x96xf32>
    %203 = math.exp %202 : vector<2x96xf32>
    %cst_103 = arith.constant 1.000000e+00 : f32
    %204 = vector.broadcast %cst_103 : f32 to vector<2x96xf32>
    %205 = arith.addf %204, %203 : vector<2x96xf32>
    %206 = arith.divf %204, %205 : vector<2x96xf32>
    %207 = vector.extract_strided_slice %190 {offsets = [0, 96], sizes = [2, 32], strides = [1, 1]} : vector<2x128xf32> to vector<2x32xf32>
    %208 = math.tanh %207 : vector<2x32xf32>
    %209 = vector.extract_strided_slice %194 {offsets = [0, 96], sizes = [2, 32], strides = [1, 1]} : vector<2x128xf32> to vector<2x32xf32>
    %210 = math.tanh %209 : vector<2x32xf32>
    %211 = vector.extract_strided_slice %200 {offsets = [0, 32], sizes = [2, 32], strides = [1, 1]} : vector<2x96xf32> to vector<2x32xf32>
    %c0_104 = arith.constant 0 : index
    %c0_105 = arith.constant 0 : index
    %212 = vector.load %arg9[%c0_104, %c0_105] : memref<2x32xf32, #tpu.memory_space<vmem>>, vector<2x32xf32>
    %213 = arith.mulf %211, %212 : vector<2x32xf32>
    %214 = vector.extract_strided_slice %200 {offsets = [0, 0], sizes = [2, 32], strides = [1, 1]} : vector<2x96xf32> to vector<2x32xf32>
    %215 = arith.mulf %214, %208 : vector<2x32xf32>
    %216 = arith.addf %213, %215 : vector<2x32xf32>
    %217 = vector.extract_strided_slice %206 {offsets = [0, 32], sizes = [2, 32], strides = [1, 1]} : vector<2x96xf32> to vector<2x32xf32>
    %c0_106 = arith.constant 0 : index
    %c0_107 = arith.constant 0 : index
    %218 = vector.load %arg10[%c0_106, %c0_107] : memref<2x32xf32, #tpu.memory_space<vmem>>, vector<2x32xf32>
    %219 = arith.mulf %217, %218 : vector<2x32xf32>
    %220 = vector.extract_strided_slice %206 {offsets = [0, 0], sizes = [2, 32], strides = [1, 1]} : vector<2x96xf32> to vector<2x32xf32>
    %221 = arith.mulf %220, %210 : vector<2x32xf32>
    %222 = arith.addf %219, %221 : vector<2x32xf32>
    %223 = vector.extract_strided_slice %200 {offsets = [0, 64], sizes = [2, 32], strides = [1, 1]} : vector<2x96xf32> to vector<2x32xf32>
    %224 = math.tanh %216 : vector<2x32xf32>
    %225 = arith.mulf %223, %224 : vector<2x32xf32>
    %226 = vector.extract_strided_slice %206 {offsets = [0, 64], sizes = [2, 32], strides = [1, 1]} : vector<2x96xf32> to vector<2x32xf32>
    %227 = math.tanh %222 : vector<2x32xf32>
    %228 = arith.mulf %226, %227 : vector<2x32xf32>
    %c0_108 = arith.constant 0 : index
    %c0_109 = arith.constant 0 : index
    %229 = vector.load %arg9[%c0_108, %c0_109] : memref<2x32xf32, #tpu.memory_space<vmem>>, vector<2x32xf32>
    tpu.vector_store %arg9[%c0_108, %c0_109], %216 {strides = array<i32>} : memref<2x32xf32, #tpu.memory_space<vmem>>, vector<2x32xf32>,
    %c0_110 = arith.constant 0 : index
    %c0_111 = arith.constant 0 : index
    %230 = vector.load %arg10[%c0_110, %c0_111] : memref<2x32xf32, #tpu.memory_space<vmem>>, vector<2x32xf32>
    tpu.vector_store %arg10[%c0_110, %c0_111], %222 {strides = array<i32>} : memref<2x32xf32, #tpu.memory_space<vmem>>, vector<2x32xf32>,
    %c0_112 = arith.constant 0 : index
    %c0_113 = arith.constant 0 : index
    %231 = vector.load %arg7[%c0_112, %c0_113] : memref<2x32xf32, #tpu.memory_space<vmem>>, vector<2x32xf32>
    tpu.vector_store %arg7[%c0_112, %c0_113], %225 {strides = array<i32>} : memref<2x32xf32, #tpu.memory_space<vmem>>, vector<2x32xf32>,
    %c0_114 = arith.constant 0 : index
    %c0_115 = arith.constant 0 : index
    %232 = vector.load %arg8[%c0_114, %c0_115] : memref<2x32xf32, #tpu.memory_space<vmem>>, vector<2x32xf32>
    tpu.vector_store %arg8[%c0_114, %c0_115], %228 {strides = array<i32>} : memref<2x32xf32, #tpu.memory_space<vmem>>, vector<2x32xf32>,
    %233 = arith.index_cast %c3_i32_90 : i32 to index
    %c0_116 = arith.constant 0 : index
    %c0_117 = arith.constant 0 : index
    %234 = vector.load %arg5[%233, %c0_116, %c0_117] : memref<4x2x32xf32, #tpu.memory_space<vmem>>, vector<1x2x32xf32>
    %235 = vector.shape_cast %234 : vector<1x2x32xf32> to vector<2x32xf32>
    %236 = vector.shape_cast %225 : vector<2x32xf32> to vector<1x2x32xf32>
    tpu.vector_store %arg5[%233, %c0_116, %c0_117], %236 {strides = array<i32>} : memref<4x2x32xf32, #tpu.memory_space<vmem>>, vector<1x2x32xf32>,
    %237 = arith.index_cast %182 : i32 to index
    %c0_118 = arith.constant 0 : index
    %c0_119 = arith.constant 0 : index
    %238 = vector.load %arg6[%237, %c0_118, %c0_119] : memref<4x2x32xf32, #tpu.memory_space<vmem>>, vector<1x2x32xf32>
    %239 = vector.shape_cast %238 : vector<1x2x32xf32> to vector<2x32xf32>
    %240 = vector.shape_cast %228 : vector<2x32xf32> to vector<1x2x32xf32>
    tpu.vector_store %arg6[%237, %c0_118, %c0_119], %240 {strides = array<i32>} : memref<4x2x32xf32, #tpu.memory_space<vmem>>, vector<1x2x32xf32>,
    %c4_i32 = arith.constant 4 : i32
    return
  }
  func.func @transform_0(%arg0: i32) -> (i32, i32, i32) {
    %c0_i32 = arith.constant 0 : i32
    %c0_i32_0 = arith.constant 0 : i32
    %c0_i32_1 = arith.constant 0 : i32
    return %arg0, %c0_i32, %c0_i32_0 : i32, i32, i32
  }
  func.func @transform_1(%arg0: i32) -> (i32, i32, i32) {
    %c1_i32 = arith.constant 1 : i32
    %0 = arith.subi %c1_i32, %arg0 : i32
    %c0_i32 = arith.constant 0 : i32
    %c0_i32_0 = arith.constant 0 : i32
    %c0_i32_1 = arith.constant 0 : i32
    return %0, %c0_i32, %c0_i32_0 : i32, i32, i32
  }
  func.func @transform_2(%arg0: i32) -> (i32, i32) {
    %c0_i32 = arith.constant 0 : i32
    %c0_i32_0 = arith.constant 0 : i32
    %c0_i32_1 = arith.constant 0 : i32
    return %c0_i32, %c0_i32_0 : i32, i32
  }
  func.func @transform_3(%arg0: i32) -> (i32, i32) {
    %c0_i32 = arith.constant 0 : i32
    %c0_i32_0 = arith.constant 0 : i32
    %c0_i32_1 = arith.constant 0 : i32
    return %c0_i32, %c0_i32_0 : i32, i32
  }
  func.func @transform_4(%arg0: i32) -> (i32, i32, i32) {
    %c0_i32 = arith.constant 0 : i32
    %c0_i32_0 = arith.constant 0 : i32
    %c0_i32_1 = arith.constant 0 : i32
    return %arg0, %c0_i32, %c0_i32_0 : i32, i32, i32
  }
  func.func @transform_5(%arg0: i32) -> (i32, i32, i32) {
    %c1_i32 = arith.constant 1 : i32
    %0 = arith.subi %c1_i32, %arg0 : i32
    %c0_i32 = arith.constant 0 : i32
    %c0_i32_0 = arith.constant 0 : i32
    %c0_i32_1 = arith.constant 0 : i32
    return %0, %c0_i32, %c0_i32_0 : i32, i32, i32
  }
}

module attributes {stable_mosaic.version = 11 : i64} {
  func.func @attn_pool_label_kernel(%arg0: i32, %arg1: memref<2x8xf32, #tpu.memory_space<vmem>>, %arg2: memref<4x2x1xf32, #tpu.memory_space<vmem>>, %arg3: memref<4x2x32xf32, #tpu.memory_space<vmem>>, %arg4: memref<4x2x32xf32, #tpu.memory_space<vmem>>, %arg5: memref<32x4xf32, #tpu.memory_space<vmem>>, %arg6: memref<32x4xf32, #tpu.memory_space<vmem>>, %arg7: memref<1x4xf32, #tpu.memory_space<vmem>>, %arg8: memref<2x4xf32, #tpu.memory_space<vmem>>, %arg9: memref<1x1xf32, #tpu.memory_space<vmem>>, %arg10: memref<2x1xf32, #tpu.memory_space<vmem>>, %arg11: memref<2x32xf32, #tpu.memory_space<vmem>>, %arg12: memref<2x32xf32, #tpu.memory_space<vmem>>) attributes {dimension_semantics = [#tpu.dimension_semantics<arbitrary>], iteration_bounds = array<i64: 2>, scalar_prefetch = 0 : i64, scratch_operands = 4 : i64, tpu.core_type = #tpu.core_type<tc>, window_params = [{pipeline_mode = #tpu.pipeline_mode<synchronous>, transform_indices = @transform_0, window_bounds = array<i64: 2, 8>}, {transform_indices = @transform_1, window_bounds = array<i64: 4, 2, 1>}, {transform_indices = @transform_2, window_bounds = array<i64: 4, 2, 32>}, {transform_indices = @transform_3, window_bounds = array<i64: 4, 2, 32>}, {pipeline_mode = #tpu.pipeline_mode<synchronous>, transform_indices = @transform_4, window_bounds = array<i64: 32, 4>}, {pipeline_mode = #tpu.pipeline_mode<synchronous>, transform_indices = @transform_5, window_bounds = array<i64: 32, 4>}, {pipeline_mode = #tpu.pipeline_mode<synchronous>, transform_indices = @transform_6, window_bounds = array<i64: 1, 4>}, {pipeline_mode = #tpu.pipeline_mode<synchronous>, transform_indices = @transform_7, window_bounds = array<i64: 2, 4>}]} {
    %c0_i32 = arith.constant 0 : i32
    %0 = arith.cmpi eq, %arg0, %c0_i32 : i32
    %1 = arith.extui %0 : i1 to i32
    %c0_i32_0 = arith.constant 0 : i32
    %2 = arith.cmpi ne, %1, %c0_i32_0 : i32
    scf.if %2 {
      %c0_21 = arith.constant 0 : index
      %c0_22 = arith.constant 0 : index
      %26 = vector.load %arg1[%c0_21, %c0_22] : memref<2x8xf32, #tpu.memory_space<vmem>>, vector<2x8xf32>
      %cst_23 = arith.constant dense<0xFF800000> : vector<2xf32>
      %27 = vector.multi_reduction <maximumf>, %26, %cst_23 [1] : vector<2x8xf32> to vector<2xf32>
      %28 = vector.shape_cast %27 : vector<2xf32> to vector<2x1xf32>
      %cst_24 = arith.constant dense<0xFF800000> : vector<1xf32>
      %29 = vector.multi_reduction <maximumf>, %28, %cst_24 [0] : vector<2x1xf32> to vector<1xf32>
      %30 = vector.shape_cast %29 : vector<1xf32> to vector<1x1xf32>
      %c0_25 = arith.constant 0 : index
      %c0_26 = arith.constant 0 : index
      %31 = vector.load %arg9[%c0_25, %c0_26] : memref<1x1xf32, #tpu.memory_space<vmem>>, vector<1x1xf32>
      tpu.vector_store %arg9[%c0_25, %c0_26], %30 {strides = array<i32>} : memref<1x1xf32, #tpu.memory_space<vmem>>, vector<1x1xf32>,
      %32 = vector.broadcast %30 : vector<1x1xf32> to vector<2x8xf32>
      %33 = arith.subf %26, %32 : vector<2x8xf32>
      %34 = math.exp %33 : vector<2x8xf32>
      %cst_27 = arith.constant dense<0.000000e+00> : vector<2xf32>
      %35 = vector.multi_reduction <add>, %34, %cst_27 [1] : vector<2x8xf32> to vector<2xf32>
      %36 = vector.shape_cast %35 : vector<2xf32> to vector<2x1xf32>
      %37 = tpu.reciprocal %36 {approx = true} : vector<2x1xf32> -> vector<2x1xf32>
      %c0_28 = arith.constant 0 : index
      %c0_29 = arith.constant 0 : index
      %38 = vector.load %arg10[%c0_28, %c0_29] : memref<2x1xf32, #tpu.memory_space<vmem>>, vector<2x1xf32>
      tpu.vector_store %arg10[%c0_28, %c0_29], %37 {strides = array<i32>} : memref<2x1xf32, #tpu.memory_space<vmem>>, vector<2x1xf32>,
      %cst_30 = arith.constant 0.000000e+00 : f32
      %39 = vector.broadcast %cst_30 : f32 to vector<2x32xf32>
      %c0_31 = arith.constant 0 : index
      %c0_32 = arith.constant 0 : index
      %40 = vector.load %arg11[%c0_31, %c0_32] : memref<2x32xf32, #tpu.memory_space<vmem>>, vector<2x32xf32>
      tpu.vector_store %arg11[%c0_31, %c0_32], %39 {strides = array<i32>} : memref<2x32xf32, #tpu.memory_space<vmem>>, vector<2x32xf32>,
      %cst_33 = arith.constant 0.000000e+00 : f32
      %41 = vector.broadcast %cst_33 : f32 to vector<2x32xf32>
      %c0_34 = arith.constant 0 : index
      %c0_35 = arith.constant 0 : index
      %42 = vector.load %arg12[%c0_34, %c0_35] : memref<2x32xf32, #tpu.memory_space<vmem>>, vector<2x32xf32>
      tpu.vector_store %arg12[%c0_34, %c0_35], %41 {strides = array<i32>} : memref<2x32xf32, #tpu.memory_space<vmem>>, vector<2x32xf32>,
    } else {
    }
    %c0 = arith.constant 0 : index
    %c0_1 = arith.constant 0 : index
    %c0_2 = arith.constant 0 : index
    %3 = vector.load %arg2[%c0, %c0_1, %c0_2] : memref<4x2x1xf32, #tpu.memory_space<vmem>>, vector<4x2x1xf32>
    %c0_3 = arith.constant 0 : index
    %c0_4 = arith.constant 0 : index
    %4 = vector.load %arg9[%c0_3, %c0_4] : memref<1x1xf32, #tpu.memory_space<vmem>>, vector<1x1xf32>
    %5 = vector.shape_cast %4 : vector<1x1xf32> to vector<1x1x1xf32>
    %6 = vector.broadcast %5 : vector<1x1x1xf32> to vector<4x2x1xf32>
    %7 = arith.subf %3, %6 : vector<4x2x1xf32>
    %8 = math.exp %7 : vector<4x2x1xf32>
    %c0_5 = arith.constant 0 : index
    %c0_6 = arith.constant 0 : index
    %9 = vector.load %arg11[%c0_5, %c0_6] : memref<2x32xf32, #tpu.memory_space<vmem>>, vector<2x32xf32>
    %c0_7 = arith.constant 0 : index
    %c0_8 = arith.constant 0 : index
    %c0_9 = arith.constant 0 : index
    %10 = vector.load %arg3[%c0_7, %c0_8, %c0_9] : memref<4x2x32xf32, #tpu.memory_space<vmem>>, vector<4x2x32xf32>
    %11 = vector.broadcast %8 : vector<4x2x1xf32> to vector<4x2x32xf32>
    %12 = arith.mulf %11, %10 : vector<4x2x32xf32>
    %cst = arith.constant dense<0.000000e+00> : vector<2x32xf32>
    %13 = vector.multi_reduction <add>, %12, %cst [0] : vector<4x2x32xf32> to vector<2x32xf32>
    %14 = arith.addf %9, %13 : vector<2x32xf32>
    %c0_10 = arith.constant 0 : index
    %c0_11 = arith.constant 0 : index
    %15 = vector.load %arg11[%c0_10, %c0_11] : memref<2x32xf32, #tpu.memory_space<vmem>>, vector<2x32xf32>
    tpu.vector_store %arg11[%c0_10, %c0_11], %14 {strides = array<i32>} : memref<2x32xf32, #tpu.memory_space<vmem>>, vector<2x32xf32>,
    %c0_12 = arith.constant 0 : index
    %c0_13 = arith.constant 0 : index
    %16 = vector.load %arg12[%c0_12, %c0_13] : memref<2x32xf32, #tpu.memory_space<vmem>>, vector<2x32xf32>
    %c0_14 = arith.constant 0 : index
    %c0_15 = arith.constant 0 : index
    %c0_16 = arith.constant 0 : index
    %17 = vector.load %arg4[%c0_14, %c0_15, %c0_16] : memref<4x2x32xf32, #tpu.memory_space<vmem>>, vector<4x2x32xf32>
    %18 = vector.broadcast %8 : vector<4x2x1xf32> to vector<4x2x32xf32>
    %19 = arith.mulf %18, %17 : vector<4x2x32xf32>
    %cst_17 = arith.constant dense<0.000000e+00> : vector<2x32xf32>
    %20 = vector.multi_reduction <add>, %19, %cst_17 [0] : vector<4x2x32xf32> to vector<2x32xf32>
    %21 = arith.addf %16, %20 : vector<2x32xf32>
    %c0_18 = arith.constant 0 : index
    %c0_19 = arith.constant 0 : index
    %22 = vector.load %arg12[%c0_18, %c0_19] : memref<2x32xf32, #tpu.memory_space<vmem>>, vector<2x32xf32>
    tpu.vector_store %arg12[%c0_18, %c0_19], %21 {strides = array<i32>} : memref<2x32xf32, #tpu.memory_space<vmem>>, vector<2x32xf32>,
    %c1_i32 = arith.constant 1 : i32
    %23 = arith.cmpi eq, %arg0, %c1_i32 : i32
    %24 = arith.extui %23 : i1 to i32
    %c0_i32_20 = arith.constant 0 : i32
    %25 = arith.cmpi ne, %24, %c0_i32_20 : i32
    scf.if %25 {
      %c0_21 = arith.constant 0 : index
      %c0_22 = arith.constant 0 : index
      %26 = vector.load %arg11[%c0_21, %c0_22] : memref<2x32xf32, #tpu.memory_space<vmem>>, vector<2x32xf32>
      %c0_23 = arith.constant 0 : index
      %c0_24 = arith.constant 0 : index
      %27 = vector.load %arg10[%c0_23, %c0_24] : memref<2x1xf32, #tpu.memory_space<vmem>>, vector<2x1xf32>
      %28 = vector.broadcast %27 : vector<2x1xf32> to vector<2x32xf32>
      %29 = arith.mulf %26, %28 : vector<2x32xf32>
      %c0_25 = arith.constant 0 : index
      %c0_26 = arith.constant 0 : index
      %30 = vector.load %arg12[%c0_25, %c0_26] : memref<2x32xf32, #tpu.memory_space<vmem>>, vector<2x32xf32>
      %c0_27 = arith.constant 0 : index
      %c0_28 = arith.constant 0 : index
      %31 = vector.load %arg10[%c0_27, %c0_28] : memref<2x1xf32, #tpu.memory_space<vmem>>, vector<2x1xf32>
      %32 = vector.broadcast %31 : vector<2x1xf32> to vector<2x32xf32>
      %33 = arith.mulf %30, %32 : vector<2x32xf32>
      %c0_29 = arith.constant 0 : index
      %c0_30 = arith.constant 0 : index
      %34 = vector.load %arg5[%c0_29, %c0_30] : memref<32x4xf32, #tpu.memory_space<vmem>>, vector<32x4xf32>
      %cst_31 = arith.constant dense<0.000000e+00> : vector<2x4xf32>
      %35 = tpu.matmul %29, %34, %cst_31 {dimension_numbers = #tpu.dot_dimension_numbers<[1], [0], [0], [1], [0, 0, 1, 1], [], []>} : vector<2x32xf32>, vector<32x4xf32>, vector<2x4xf32> -> vector<2x4xf32>
      %c0_32 = arith.constant 0 : index
      %c0_33 = arith.constant 0 : index
      %36 = vector.load %arg6[%c0_32, %c0_33] : memref<32x4xf32, #tpu.memory_space<vmem>>, vector<32x4xf32>
      %cst_34 = arith.constant dense<0.000000e+00> : vector<2x4xf32>
      %37 = tpu.matmul %33, %36, %cst_34 {dimension_numbers = #tpu.dot_dimension_numbers<[1], [0], [0], [1], [0, 0, 1, 1], [], []>} : vector<2x32xf32>, vector<32x4xf32>, vector<2x4xf32> -> vector<2x4xf32>
      %38 = arith.addf %35, %37 : vector<2x4xf32>
      %c0_35 = arith.constant 0 : index
      %c0_36 = arith.constant 0 : index
      %39 = vector.load %arg7[%c0_35, %c0_36] : memref<1x4xf32, #tpu.memory_space<vmem>>, vector<1x4xf32>
      %40 = vector.broadcast %39 : vector<1x4xf32> to vector<2x4xf32>
      %41 = arith.addf %38, %40 : vector<2x4xf32>
      %c0_37 = arith.constant 0 : index
      %c0_38 = arith.constant 0 : index
      %42 = vector.load %arg8[%c0_37, %c0_38] : memref<2x4xf32, #tpu.memory_space<vmem>>, vector<2x4xf32>
      tpu.vector_store %arg8[%c0_37, %c0_38], %41 {strides = array<i32>} : memref<2x4xf32, #tpu.memory_space<vmem>>, vector<2x4xf32>,
    } else {
    }
    return
  }
  func.func @transform_0(%arg0: i32) -> (i32, i32) {
    %c0_i32 = arith.constant 0 : i32
    %c0_i32_0 = arith.constant 0 : i32
    %c0_i32_1 = arith.constant 0 : i32
    return %c0_i32, %c0_i32_0 : i32, i32
  }
  func.func @transform_1(%arg0: i32) -> (i32, i32, i32) {
    %c0_i32 = arith.constant 0 : i32
    %c0_i32_0 = arith.constant 0 : i32
    %c0_i32_1 = arith.constant 0 : i32
    return %arg0, %c0_i32, %c0_i32_0 : i32, i32, i32
  }
  func.func @transform_2(%arg0: i32) -> (i32, i32, i32) {
    %c0_i32 = arith.constant 0 : i32
    %c0_i32_0 = arith.constant 0 : i32
    %c0_i32_1 = arith.constant 0 : i32
    return %arg0, %c0_i32, %c0_i32_0 : i32, i32, i32
  }
  func.func @transform_3(%arg0: i32) -> (i32, i32, i32) {
    %c0_i32 = arith.constant 0 : i32
    %c0_i32_0 = arith.constant 0 : i32
    %c0_i32_1 = arith.constant 0 : i32
    return %arg0, %c0_i32, %c0_i32_0 : i32, i32, i32
  }
  func.func @transform_4(%arg0: i32) -> (i32, i32) {
    %c0_i32 = arith.constant 0 : i32
    %c0_i32_0 = arith.constant 0 : i32
    %c0_i32_1 = arith.constant 0 : i32
    return %c0_i32, %c0_i32_0 : i32, i32
  }
  func.func @transform_5(%arg0: i32) -> (i32, i32) {
    %c0_i32 = arith.constant 0 : i32
    %c0_i32_0 = arith.constant 0 : i32
    %c0_i32_1 = arith.constant 0 : i32
    return %c0_i32, %c0_i32_0 : i32, i32
  }
  func.func @transform_6(%arg0: i32) -> (i32, i32) {
    %c0_i32 = arith.constant 0 : i32
    %c0_i32_0 = arith.constant 0 : i32
    %c0_i32_1 = arith.constant 0 : i32
    return %c0_i32, %c0_i32_0 : i32, i32
  }
  func.func @transform_7(%arg0: i32) -> (i32, i32) {
    %c0_i32 = arith.constant 0 : i32
    %c0_i32_0 = arith.constant 0 : i32
    %c0_i32_1 = arith.constant 0 : i32
    return %c0_i32, %c0_i32_0 : i32, i32
  }
}

</mosaic_0001>

<llo_original>
// kernel: bilstm_forward.4
$region0: #{bilstm_forward.4}
  #allocation0 [shape = 'u32[]', space=smem, size = 0x4, offset = 0x4, fixed_abs, tag = 'smem constant byte address 0x4 - core index']
  #allocation1 [shape = 'u32[144,128]{1,0:T(1,128)}', space=vmem, size = 0x12000, scoped, tag = 'internal scratch']
  %s0 = inlined_call_operand.vmem [shape: f32[16,32], index: 0, kind: input, shape index: {}]
  %s1 = inlined_call_operand.vmem [shape: f32[32,128], index: 1, kind: input, shape index: {}]
  %s2 = inlined_call_operand.vmem [shape: f32[32,128], index: 2, kind: input, shape index: {}]
  %s3 = inlined_call_operand.vmem [shape: f32[1,128], index: 3, kind: input, shape index: {}]
  %s4 = inlined_call_operand.vmem [shape: f32[1,128], index: 4, kind: input, shape index: {}]
  %s5 = inlined_call_operand.vmem [shape: f32[16,128], index: 5, kind: output, shape index: {0}]
  %s6 = inlined_call_operand.vmem [shape: f32[16,128], index: 6, kind: output, shape index: {1}]
  %7 = xla_tuple %s5, %s6
  %s8 = sld [smem:[#allocation0]]
  $region61: #{bilstm_forward.4} parent=0
    _
  %s10 = ssub.s32 1, %s8
  %s11 = scalar_select 0, %s10, %s8
  loop: start=0, step=1, limit=4
  $region2: #{bilstm_forward.4} parent=0 // loop_pre_header
    _
  $region3: #{bilstm_forward.4} parent=0 // loop_header
    %s13 = sphi 0, %s17
    %p14 = scmp.ge.s32.totalorder %s13, 4
    %s23 = sphi 0, %s25
    %s26 = sphi 0, %s23
    %s27 = sphi 0, %s26
    %s43 = sphi 0, %s27
    %s47 = sphi 0, %s47
    %s49 = sphi 0, %s47
    %s50 = sphi 0, %s49
    %s64 = sphi 0, %s50
    %s68 = sphi 0, %s68
    %s70 = sphi 0, %s68
    %s71 = sphi 0, %s70
    %s85 = sphi 0, %s71
    %s89 = sphi 0, %s89
    %s91 = sphi 0, %s89
    %s92 = sphi 0, %s91
    %s106 = sphi 0, %s92
    %s110 = sphi 0, %s110
    %s112 = sphi 0, %s110
    %s113 = sphi 0, %s112
    %s127 = sphi 0, %s113
    %s133 = sphi 0, %s135
    %s136 = sphi 0, %s133
    %s137 = sphi 0, %s136
    %s153 = sphi 0, %s137
    %s159 = sphi 0, %s161
    %s162 = sphi 0, %s159
    %s163 = sphi 0, %s162
    %s179 = sphi 0, %s163
  $region4: #{bilstm_forward.4} parent=0 // loop_header_branch
    %16 = sbr.rel (%p14) target = $region8
  $region5: #{bilstm_forward.4} parent=0 // loop_body
    %s18 = ssub.s32 %s13, 1
    %s19 = ssub.s32 %s13, 2
    %s20 = sadd.s32 %s13, 1
    %s21 = ssub.s32 %s13, %s20
    %p22 = scmp.eq.s32.totalorder %s21, 0
    %s24 = sadd.s32 %s23, 1
    %s25 = scalar_select %p22, %s23, %s24
    %p28 = pneg %p22
    %p29 = scmp.eq.s32.totalorder %s13, 1
    %p30 = por %p28, %p29
    %p31 = scmp.ne.s32.totalorder %s23, %s26
    %p32 = scmp.eq.s32.totalorder %s13, 0
    %p33 = por %p31, %p32
    %p34 = scmp.ne.s32.totalorder %s23, %s26
    %p35 = scmp.eq.s32.totalorder %s18, 1
    %p36 = por %p34, %p35
    %p37 = scmp.ne.s32.totalorder %s26, %s27
    %p38 = scmp.eq.s32.totalorder %s18, 0
    %p39 = por %p37, %p38
    %p40 = scmp.ne.s32.totalorder %s26, %s27
    %p41 = scmp.eq.s32.totalorder %s19, 1
    %p42 = por %p40, %p41
    %p44 = scmp.ne.s32.totalorder %s27, %s43
    %p45 = scmp.eq.s32.totalorder %s19, 0
    %p46 = por %p44, %p45
    %s48 = sadd.s32 %s47, 1
    %p51 = scmp.eq.s32.totalorder %s13, 1
    %p52 = scmp.ne.s32.totalorder %s47, %s49
    %p53 = scmp.eq.s32.totalorder %s13, 0
    %p54 = por %p52, %p53
    %p55 = scmp.ne.s32.totalorder %s47, %s49
    %p56 = scmp.eq.s32.totalorder %s18, 1
    %p57 = por %p55, %p56
    %p58 = scmp.ne.s32.totalorder %s49, %s50
    %p59 = scmp.eq.s32.totalorder %s18, 0
    %p60 = por %p58, %p59
    %p61 = scmp.ne.s32.totalorder %s49, %s50
    %p62 = scmp.eq.s32.totalorder %s19, 1
    %p63 = por %p61, %p62
    %p65 = scmp.ne.s32.totalorder %s50, %s64
    %p66 = scmp.eq.s32.totalorder %s19, 0
    %p67 = por %p65, %p66
    %s69 = sadd.s32 %s68, 1
    %p72 = scmp.eq.s32.totalorder %s13, 1
    %p73 = scmp.ne.s32.totalorder %s68, %s70
    %p74 = scmp.eq.s32.totalorder %s13, 0
    %p75 = por %p73, %p74
    %p76 = scmp.ne.s32.totalorder %s68, %s70
    %p77 = scmp.eq.s32.totalorder %s18, 1
    %p78 = por %p76, %p77
    %p79 = scmp.ne.s32.totalorder %s70, %s71
    %p80 = scmp.eq.s32.totalorder %s18, 0
    %p81 = por %p79, %p80
    %p82 = scmp.ne.s32.totalorder %s70, %s71
    %p83 = scmp.eq.s32.totalorder %s19, 1
    %p84 = por %p82, %p83
    %p86 = scmp.ne.s32.totalorder %s71, %s85
    %p87 = scmp.eq.s32.totalorder %s19, 0
    %p88 = por %p86, %p87
    %s90 = sadd.s32 %s89, 1
    %p93 = scmp.eq.s32.totalorder %s13, 1
    %p94 = scmp.ne.s32.totalorder %s89, %s91
    %p95 = scmp.eq.s32.totalorder %s13, 0
    %p96 = por %p94, %p95
    %p97 = scmp.ne.s32.totalorder %s89, %s91
    %p98 = scmp.eq.s32.totalorder %s18, 1
    %p99 = por %p97, %p98
    %p100 = scmp.ne.s32.totalorder %s91, %s92
    %p101 = scmp.eq.s32.totalorder %s18, 0
    %p102 = por %p100, %p101
    %p103 = scmp.ne.s32.totalorder %s91, %s92
    %p104 = scmp.eq.s32.totalorder %s19, 1
    %p105 = por %p103, %p104
    %p107 = scmp.ne.s32.totalorder %s92, %s106
    %p108 = scmp.eq.s32.totalorder %s19, 0
    %p109 = por %p107, %p108
    %s111 = sadd.s32 %s110, 1
    %p114 = scmp.eq.s32.totalorder %s13, 1
    %p115 = scmp.ne.s32.totalorder %s110, %s112
    %p116 = scmp.eq.s32.totalorder %s13, 0
    %p117 = por %p115, %p116
    %p118 = scmp.ne.s32.totalorder %s110, %s112
    %p119 = scmp.eq.s32.totalorder %s18, 1
    %p120 = por %p118, %p119
    %p121 = scmp.ne.s32.totalorder %s112, %s113
    %p122 = scmp.eq.s32.totalorder %s18, 0
    %p123 = por %p121, %p122
    %p124 = scmp.ne.s32.totalorder %s112, %s113
    %p125 = scmp.eq.s32.totalorder %s19, 1
    %p126 = por %p124, %p125
    %p128 = scmp.ne.s32.totalorder %s113, %s127
    %p129 = scmp.eq.s32.totalorder %s19, 0
    %p130 = por %p128, %p129
    %s131 = ssub.s32 %s13, %s20
    %p132 = scmp.eq.s32.totalorder %s131, 0
    %s134 = sadd.s32 %s133, 1
    %s135 = scalar_select %p132, %s133, %s134
    %p138 = pneg %p132
    %p139 = scmp.eq.s32.totalorder %s13, 1
    %p140 = por %p138, %p139
    %p141 = scmp.ne.s32.totalorder %s133, %s136
    %p142 = scmp.eq.s32.totalorder %s13, 0
    %p143 = por %p141, %p142
    %p144 = scmp.ne.s32.totalorder %s133, %s136
    %p145 = scmp.eq.s32.totalorder %s18, 1
    %p146 = por %p144, %p145
    %p147 = scmp.ne.s32.totalorder %s136, %s137
    %p148 = scmp.eq.s32.totalorder %s18, 0
    %p149 = por %p147, %p148
    %p150 = scmp.ne.s32.totalorder %s136, %s137
    %p151 = scmp.eq.s32.totalorder %s19, 1
    %p152 = por %p150, %p151
    %p154 = scmp.ne.s32.totalorder %s137, %s153
    %p155 = scmp.eq.s32.totalorder %s19, 0
    %p156 = por %p154, %p155
    %s157 = ssub.s32 %s13, %s20
    %p158 = scmp.eq.s32.totalorder %s157, 0
    %s160 = sadd.s32 %s159, 1
    %s161 = scalar_select %p158, %s159, %s160
    %p164 = pneg %p158
    %p165 = scmp.eq.s32.totalorder %s13, 1
    %p166 = por %p164, %p165
    %p167 = scmp.ne.s32.totalorder %s159, %s162
    %p168 = scmp.eq.s32.totalorder %s13, 0
    %p169 = por %p167, %p168
    %p170 = scmp.ne.s32.totalorder %s159, %s162
    %p171 = scmp.eq.s32.totalorder %s18, 1
    %p172 = por %p170, %p171
    %p173 = scmp.ne.s32.totalorder %s162, %s163
    %p174 = scmp.eq.s32.totalorder %s18, 0
    %p175 = por %p173, %p174
    %p176 = scmp.ne.s32.totalorder %s162, %s163
    %p177 = scmp.eq.s32.totalorder %s19, 1
    %p178 = por %p176, %p177
    %p180 = scmp.ne.s32.totalorder %s163, %s179
    %p181 = scmp.eq.s32.totalorder %s19, 0
    %p182 = por %p180, %p181
    %p183 = scmp.le.s32.totalorder 1, %s13
    %p184 = scmp.lt.s32.totalorder %s13, 3
    %p185 = pnand %p183, %p184
    %p186 = pneg %p185
    // Predicated region
    $region9: #{bilstm_forward.4} parent=5 // pred_check
      _
    $region10: #{bilstm_forward.4} parent=5 // pred_check_branch
      %188 = sbr.rel (%p185) target = $region12
    $region11: #{bilstm_forward.4} parent=5 // pred_region
      %s189 = ssub.s32 %s13, 1
      // Predicated region
      $region13: #{bilstm_forward.4} parent=11 // pred_check
        %p190 = pneg %p60
      $region14: #{bilstm_forward.4} parent=11 // pred_check_branch
        %192 = sbr.rel (%p190) target = $region16
      $region15: #{bilstm_forward.4} parent=11 // pred_region
        _
      $region16: #{bilstm_forward.4} parent=11 // pred_fallthru
        _
      // Predicated region
      $region17: #{bilstm_forward.4} parent=11 // pred_check
        %p193 = pneg %p81
      $region18: #{bilstm_forward.4} parent=11 // pred_check_branch
        %195 = sbr.rel (%p193) target = $region20
      $region19: #{bilstm_forward.4} parent=11 // pred_region
        _
      $region20: #{bilstm_forward.4} parent=11 // pred_fallthru
        _
      // Predicated region
      $region21: #{bilstm_forward.4} parent=11 // pred_check
        %p196 = pneg %p102
      $region22: #{bilstm_forward.4} parent=11 // pred_check_branch
        %198 = sbr.rel (%p196) target = $region24
      $region23: #{bilstm_forward.4} parent=11 // pred_region
        _
      $region24: #{bilstm_forward.4} parent=11 // pred_fallthru
        _
      // Predicated region
      $region25: #{bilstm_forward.4} parent=11 // pred_check
        %p199 = pneg %p123
      $region26: #{bilstm_forward.4} parent=11 // pred_check_branch
        %201 = sbr.rel (%p199) target = $region28
      $region27: #{bilstm_forward.4} parent=11 // pred_region
        _
      $region28: #{bilstm_forward.4} parent=11 // pred_fallthru
        _
    $region12: #{bilstm_forward.4} parent=5 // pred_fallthru
      _
    %p202 = scmp.lt.s32.totalorder %s13, 2
    // Predicated region
    $region29: #{bilstm_forward.4} parent=5 // pred_check
      %p203 = pneg %p202
    $region30: #{bilstm_forward.4} parent=5 // pred_check_branch
      %205 = sbr.rel (%p203) target = $region32
    $region31: #{bilstm_forward.4} parent=5 // pred_region
      // Predicated region
      $region33: #{bilstm_forward.4} parent=31 // pred_check
        %p206 = pneg %p33
      $region34: #{bilstm_forward.4} parent=31 // pred_check_branch
        %208 = sbr.rel (%p206) target = $region36
      $region35: #{bilstm_forward.4} parent=31 // pred_region
        %p209 = scmp.lt.s32.totalorder %s13, 1
        %s210 = scalar_select %p209, %s13, 1
        %s211 = smul.addr %s210, 8
        %s212 = scalar_lea.vmem %s0, %s211
      $region36: #{bilstm_forward.4} parent=31 // pred_fallthru
        _
    $region32: #{bilstm_forward.4} parent=5 // pred_fallthru
      _
    %p213 = scmp.le.s32.totalorder 1, %s13
    %p214 = scmp.lt.s32.totalorder %s13, 3
    %p215 = pnand %p213, %p214
    %p216 = pneg %p215
    // Predicated region
    $region37: #{bilstm_forward.4} parent=5 // pred_check
      _
    $region38: #{bilstm_forward.4} parent=5 // pred_check_branch
      %218 = sbr.rel (%p215) target = $region40
    $region39: #{bilstm_forward.4} parent=5 // pred_region
      %s219 = ssub.s32 %s13, 1
      %p220 = scmp.lt.s32.totalorder %s18, 1
      %s221 = scalar_select %p220, %s18, 1
      %s222 = smul.addr %s221, 8
      %s223 = scalar_lea.vmem %s0, %s222
      %p224 = pneg %p39
      %p225 = pneg %p36
      %p226 = pneg %p60
      %p227 = pneg %p57
      %p228 = pneg %p81
      %p229 = pneg %p78
      %p230 = pneg %p102
      %p231 = pneg %p99
      %p232 = pneg %p123
      %p233 = pneg %p120
      %p234 = pneg %p149
      %p235 = pneg %p146
      %p236 = scmp.lt.s32.totalorder %s18, 1
      %s237 = scalar_select %p236, %s18, 1
      %s238 = smul.addr %s237, 8
      %s239 = scalar_lea.vmem %s5, %s238
      %p240 = pneg %p175
      %p241 = pneg %p172
      %p242 = scmp.lt.s32.totalorder %s18, 1
      %s243 = scalar_select %p242, %s18, 1
      %s244 = smul.addr %s243, 8
      %s245 = scalar_lea.vmem %s6, %s244
      %p246 = scmp.lt.s32.totalorder %s18, 1
      %s247 = scalar_select %p246, %s18, 1
      %s248 = smul.addr %s247, 8
      %s249 = scalar_lea.vmem %s0, %s248
      %p250 = scmp.lt.s32.totalorder %s18, 1
      %s251 = scalar_select %p250, %s18, 1
      %s252 = smul.addr %s251, 8
      %s253 = scalar_lea.vmem %s5, %s252
      %p254 = scmp.lt.s32.totalorder %s18, 1
      %s255 = scalar_select %p254, %s18, 1
      %s256 = smul.addr %s255, 8
      %s257 = scalar_lea.vmem %s6, %s256
      %v258 = vld [vmem:[%s249] sm:$0xff]
      %v259 = vld [vmem:[%s1] sm:$0xff]
      %v260 = vld [vmem:[%s1 + $0x8] sm:$0xff]
      %v261 = vld [vmem:[%s1 + $0x10] sm:$0xff]
      %v262 = vld [vmem:[%s1 + $0x18] sm:$0xff]
      %v263 = vld [vmem:[%s3] sm:$0x1]
      %v265 = vlaneseq
      %v266 = vshrl.u32 %v265, 7
      %v267 = vsub.s32 0, %v266
      %v268 = vrot.slane %v263, %v267
      %vm270 = vcmask 261120
      %v272 = vsel %vm270, %v258, 0
      %274 = vmatprep.subr.mxu0 0.0
      %275 = vmatpush1.msra.mxu0 %v259
      %276 = vmatprep.subr.mxu0 0.0
      %277 = vmatpush1.msra.mxu0 %v260
      %278 = vmatprep.subr.mxu0 0.0
      %279 = vmatpush1.msra.mxu0 %v261
      %280 = vmatprep.subr.mxu0 0.0
      %281 = vmatpush1.msra.mxu0 %v262
      %282 = vmatprep.subr.mxu0 0.0
      %283 = vmatpush1.msra.mxu0 0.0
      %284 = vmatprep.subr.mxu0 0.0
      %285 = vmatpush1.msra.mxu0 0.0
      %286 = vmatprep.subr.mxu0 0.0
      %287 = vmatpush1.msra.mxu0 0.0
      %288 = vmatprep.subr.mxu0 0.0
      %289 = vmatpush1.msra.mxu0 0.0
      %290 = vmatprep.subr.mxu0 0.0
      %291 = vmatpush1.msra.mxu0 0.0
      %292 = vmatprep.subr.mxu0 0.0
      %293 = vmatpush1.msra.mxu0 0.0
      %294 = vmatprep.subr.mxu0 0.0
      %295 = vmatpush1.msra.mxu0 0.0
      %296 = vmatprep.subr.mxu0 0.0
      %297 = vmatpush1.msra.mxu0 0.0
      %298 = vmatprep.subr.mxu0 0.0
      %299 = vmatpush1.msra.mxu0 0.0
      %300 = vmatprep.subr.mxu0 0.0
      %301 = vmatpush1.msra.mxu0 0.0
      %302 = vmatprep.subr.mxu0 0.0
      %303 = vmatpush1.msra.mxu0 0.0
      %304 = vmatprep.subr.mxu0 0.0
      %305 = vmatpush1.msra.mxu0 0.0
      %306 = vmatprep.subr.mxu0 0.0
      %307 = vmatpush1.msra.mxu0 0.0
      %308 = vmatprep.subr.mxu0 0.0
      %309 = vmatpush1.msra.mxu0 0.0
      %310 = vmatprep.subr.mxu0 0.0
      %311 = vmatpush1.msra.mxu0 0.0
      %312 = vmatprep.subr.mxu0 0.0
      %313 = vmatpush1.msra.mxu0 0.0
      %314 = vmatprep.subr.mxu0 0.0
      %315 = vmatpush1.msra.mxu0 0.0
      %316 = vmatprep.subr.mxu0 0.0
      %317 = vmatpush1.msra.mxu0 0.0
      %318 = vmatprep.subr.mxu0 0.0
      %319 = vmatpush1.msra.mxu0 0.0
      %320 = vmatprep.subr.mxu0 0.0
      %321 = vmatpush1.msra.mxu0 0.0
      %322 = vmatprep.subr.mxu0 0.0
      %323 = vmatpush1.msra.mxu0 0.0
      %324 = vmatprep.subr.mxu0 0.0
      %325 = vmatpush1.msra.mxu0 0.0
      %326 = vmatprep.subr.mxu0 0.0
      %327 = vmatpush1.msra.mxu0 0.0
      %328 = vmatprep.subr.mxu0 0.0
      %329 = vmatpush1.msra.mxu0 0.0
      %330 = vmatprep.subr.mxu0 0.0
      %331 = vmatpush1.msra.mxu0 0.0
      %332 = vmatprep.subr.mxu0 0.0
      %333 = vmatpush1.msra.mxu0 0.0
      %334 = vmatprep.subr.mxu0 0.0
      %335 = vmatpush1.msra.mxu0 0.0
      %336 = vmatprep.subr.mxu0 0.0
      %337 = vmatpush1.msra.mxu0 0.0
      %338 = vmatprep.mubr.f32.mxu0 0.0
      %339 = vmatmul.mubr.f32.gmra.mrb[0].mxu0 %v272
      %v340 = vpop.f32.mrb[0].mxu0
      %v341 = vadd.f32 %v268, %v340
      %v342 = vpop.f32.mrb[0].mxu0
      %343 = vdwg.mxu0
      %344 = vst [vmem:[%s253] sm:$0xff] %v341
      %v345 = vld [vmem:[%s2] sm:$0xff]
      %v346 = vld [vmem:[%s2 + $0x8] sm:$0xff]
      %v347 = vld [vmem:[%s2 + $0x10] sm:$0xff]
      %v348 = vld [vmem:[%s2 + $0x18] sm:$0xff]
      %v349 = vld [vmem:[%s4] sm:$0x1]
      %v351 = vlaneseq
      %v352 = vshrl.u32 %v351, 7
      %v353 = vsub.s32 0, %v352
      %v354 = vrot.slane %v349, %v353
      %356 = vmatprep.subr.mxu0 0.0
      %357 = vmatpush1.msra.mxu0 %v345
      %358 = vmatprep.subr.mxu0 0.0
      %359 = vmatpush1.msra.mxu0 %v346
      %360 = vmatprep.subr.mxu0 0.0
      %361 = vmatpush1.msra.mxu0 %v347
      %362 = vmatprep.subr.mxu0 0.0
      %363 = vmatpush1.msra.mxu0 %v348
      %364 = vmatprep.subr.mxu0 0.0
      %365 = vmatpush1.msra.mxu0 0.0
      %366 = vmatprep.subr.mxu0 0.0
      %367 = vmatpush1.msra.mxu0 0.0
      %368 = vmatprep.subr.mxu0 0.0
      %369 = vmatpush1.msra.mxu0 0.0
      %370 = vmatprep.subr.mxu0 0.0
      %371 = vmatpush1.msra.mxu0 0.0
      %372 = vmatprep.subr.mxu0 0.0
      %373 = vmatpush1.msra.mxu0 0.0
      %374 = vmatprep.subr.mxu0 0.0
      %375 = vmatpush1.msra.mxu0 0.0
      %376 = vmatprep.subr.mxu0 0.0
      %377 = vmatpush1.msra.mxu0 0.0
      %378 = vmatprep.subr.mxu0 0.0
      %379 = vmatpush1.msra.mxu0 0.0
      %380 = vmatprep.subr.mxu0 0.0
      %381 = vmatpush1.msra.mxu0 0.0
      %382 = vmatprep.subr.mxu0 0.0
      %383 = vmatpush1.msra.mxu0 0.0
      %384 = vmatprep.subr.mxu0 0.0
      %385 = vmatpush1.msra.mxu0 0.0
      %386 = vmatprep.subr.mxu0 0.0
      %387 = vmatpush1.msra.mxu0 0.0
      %388 = vmatprep.subr.mxu0 0.0
      %389 = vmatpush1.msra.mxu0 0.0
      %390 = vmatprep.subr.mxu0 0.0
      %391 = vmatpush1.msra.mxu0 0.0
      %392 = vmatprep.subr.mxu0 0.0
      %393 = vmatpush1.msra.mxu0 0.0
      %394 = vmatprep.subr.mxu0 0.0
      %395 = vmatpush1.msra.mxu0 0.0
      %396 = vmatprep.subr.mxu0 0.0
      %397 = vmatpush1.msra.mxu0 0.0
      %398 = vmatprep.subr.mxu0 0.0
      %399 = vmatpush1.msra.mxu0 0.0
      %400 = vmatprep.subr.mxu0 0.0
      %401 = vmatpush1.msra.mxu0 0.0
      %402 = vmatprep.subr.mxu0 0.0
      %403 = vmatpush1.msra.mxu0 0.0
      %404 = vmatprep.subr.mxu0 0.0
      %405 = vmatpush1.msra.mxu0 0.0
      %406 = vmatprep.subr.mxu0 0.0
      %407 = vmatpush1.msra.mxu0 0.0
      %408 = vmatprep.subr.mxu0 0.0
      %409 = vmatpush1.msra.mxu0 0.0
      %410 = vmatprep.subr.mxu0 0.0
      %411 = vmatpush1.msra.mxu0 0.0
      %412 = vmatprep.subr.mxu0 0.0
      %413 = vmatpush1.msra.mxu0 0.0
      %414 = vmatprep.subr.mxu0 0.0
      %415 = vmatpush1.msra.mxu0 0.0
      %416 = vmatprep.subr.mxu0 0.0
      %417 = vmatpush1.msra.mxu0 0.0
      %418 = vmatprep.subr.mxu0 0.0
      %419 = vmatpush1.msra.mxu0 0.0
      %420 = vmatprep.mubr.f32.mxu0 0.0
      %421 = vmatmul.mubr.f32.gmra.mrb[0].mxu0 %v272
      %v422 = vpop.f32.mrb[0].mxu0
      %v423 = vadd.f32 %v354, %v422
      %v424 = vpop.f32.mrb[0].mxu0
      %425 = vdwg.mxu0
      %426 = vst [vmem:[%s257] sm:$0xff] %v423
      %p427 = scmp.lt.s32.totalorder %s18, 1
      %s428 = scalar_select %p427, %s18, 1
      %s429 = smul.addr %s428, 8
      %s430 = scalar_lea.vmem %s5, %s429
      %p431 = scmp.lt.s32.totalorder %s18, 1
      %s432 = scalar_select %p431, %s18, 1
      %s433 = smul.addr %s432, 8
      %s434 = scalar_lea.vmem %s6, %s433
      // Predicated region
      $region41: #{bilstm_forward.4} parent=39 // pred_check
        %p435 = pneg %p146
      $region42: #{bilstm_forward.4} parent=39 // pred_check_branch
        %437 = sbr.rel (%p435) target = $region44
      $region43: #{bilstm_forward.4} parent=39 // pred_region
        _
      $region44: #{bilstm_forward.4} parent=39 // pred_fallthru
        _
      // Predicated region
      $region45: #{bilstm_forward.4} parent=39 // pred_check
        %p438 = pneg %p172
      $region46: #{bilstm_forward.4} parent=39 // pred_check_branch
        %440 = sbr.rel (%p438) target = $region48
      $region47: #{bilstm_forward.4} parent=39 // pred_region
        _
      $region48: #{bilstm_forward.4} parent=39 // pred_fallthru
        _
    $region40: #{bilstm_forward.4} parent=5 // pred_fallthru
      _
    %p441 = scmp.le.s32.totalorder 2, %s13
    // Predicated region
    $region49: #{bilstm_forward.4} parent=5 // pred_check
      %p442 = pneg %p441
    $region50: #{bilstm_forward.4} parent=5 // pred_check_branch
      %444 = sbr.rel (%p442) target = $region52
    $region51: #{bilstm_forward.4} parent=5 // pred_region
      %s445 = ssub.s32 %s13, 2
      // Predicated region
      $region53: #{bilstm_forward.4} parent=51 // pred_check
        %p446 = pneg %p152
      $region54: #{bilstm_forward.4} parent=51 // pred_check_branch
        %448 = sbr.rel (%p446) target = $region56
      $region55: #{bilstm_forward.4} parent=51 // pred_region
        %p449 = scmp.lt.s32.totalorder %s19, 1
        %s450 = scalar_select %p449, %s19, 1
        %s451 = smul.addr %s450, 8
        %s452 = scalar_lea.vmem %s5, %s451
      $region56: #{bilstm_forward.4} parent=51 // pred_fallthru
        _
      // Predicated region
      $region57: #{bilstm_forward.4} parent=51 // pred_check
        %p453 = pneg %p178
      $region58: #{bilstm_forward.4} parent=51 // pred_check_branch
        %455 = sbr.rel (%p453) target = $region60
      $region59: #{bilstm_forward.4} parent=51 // pred_region
        %p456 = scmp.lt.s32.totalorder %s19, 1
        %s457 = scalar_select %p456, %s19, 1
        %s458 = smul.addr %s457, 8
        %s459 = scalar_lea.vmem %s6, %s458
      $region60: #{bilstm_forward.4} parent=51 // pred_fallthru
        _
    $region52: #{bilstm_forward.4} parent=5 // pred_fallthru
      _
  $region6: #{bilstm_forward.4} parent=0 // loop_footer
    %s17 = sadd.s32 1, %s13
  $region7: #{bilstm_forward.4} parent=0 // loop_footer_branch
    %12 = sbr.rel target = $region3
  $region8: #{bilstm_forward.4} parent=0 // loop_exit
    _

// kernel: bilstm_forward.6
$region0: #{bilstm_forward.6}
  #allocation0 [shape = 'u32[]', space=smem, size = 0x4, offset = 0x4, fixed_abs, tag = 'smem constant byte address 0x4 - core index']
  #allocation1 [shape = 'u32[144,128]{1,0:T(1,128)}', space=vmem, size = 0x12000, scoped, tag = 'internal scratch']
  %s0 = inlined_call_operand.vmem [shape: f32[16,32], index: 0, kind: input, shape index: {}]
  %s1 = inlined_call_operand.vmem [shape: f32[16,32], index: 1, kind: input, shape index: {}]
  %s2 = inlined_call_operand.vmem [shape: f32[32,16], index: 2, kind: input, shape index: {}]
  %s3 = inlined_call_operand.vmem [shape: f32[32,16], index: 3, kind: input, shape index: {}]
  %s4 = inlined_call_operand.vmem [shape: f32[1,16], index: 4, kind: input, shape index: {}]
  %s5 = inlined_call_operand.vmem [shape: f32[16,1], index: 5, kind: output, shape index: {}]
  %s6 = sld [smem:[#allocation0]]
  $region53: #{bilstm_forward.6} parent=0
    _
  %s8 = ssub.s32 1, %s6
  %s9 = scalar_select 0, %s8, %s6
  loop: start=0, step=1, limit=4
  $region2: #{bilstm_forward.6} parent=0 // loop_pre_header
    _
  $region3: #{bilstm_forward.6} parent=0 // loop_header
    %s11 = sphi 0, %s15
    %p12 = scmp.ge.s32.totalorder %s11, 4
    %s21 = sphi 0, %s23
    %s24 = sphi 0, %s21
    %s25 = sphi 0, %s24
    %s41 = sphi 0, %s25
    %s47 = sphi 0, %s49
    %s50 = sphi 0, %s47
    %s51 = sphi 0, %s50
    %s67 = sphi 0, %s51
    %s71 = sphi 0, %s71
    %s73 = sphi 0, %s71
    %s74 = sphi 0, %s73
    %s88 = sphi 0, %s74
    %s92 = sphi 0, %s92
    %s94 = sphi 0, %s92
    %s95 = sphi 0, %s94
    %s109 = sphi 0, %s95
    %s113 = sphi 0, %s113
    %s115 = sphi 0, %s113
    %s116 = sphi 0, %s115
    %s130 = sphi 0, %s116
    %s136 = sphi 0, %s138
    %s139 = sphi 0, %s136
    %s140 = sphi 0, %s139
    %s156 = sphi 0, %s140
  $region4: #{bilstm_forward.6} parent=0 // loop_header_branch
    %14 = sbr.rel (%p12) target = $region8
  $region5: #{bilstm_forward.6} parent=0 // loop_body
    %s16 = ssub.s32 %s11, 1
    %s17 = ssub.s32 %s11, 2
    %s18 = sadd.s32 %s11, 1
    %s19 = ssub.s32 %s11, %s18
    %p20 = scmp.eq.s32.totalorder %s19, 0
    %s22 = sadd.s32 %s21, 1
    %s23 = scalar_select %p20, %s21, %s22
    %p26 = pneg %p20
    %p27 = scmp.eq.s32.totalorder %s11, 1
    %p28 = por %p26, %p27
    %p29 = scmp.ne.s32.totalorder %s21, %s24
    %p30 = scmp.eq.s32.totalorder %s11, 0
    %p31 = por %p29, %p30
    %p32 = scmp.ne.s32.totalorder %s21, %s24
    %p33 = scmp.eq.s32.totalorder %s16, 1
    %p34 = por %p32, %p33
    %p35 = scmp.ne.s32.totalorder %s24, %s25
    %p36 = scmp.eq.s32.totalorder %s16, 0
    %p37 = por %p35, %p36
    %p38 = scmp.ne.s32.totalorder %s24, %s25
    %p39 = scmp.eq.s32.totalorder %s17, 1
    %p40 = por %p38, %p39
    %p42 = scmp.ne.s32.totalorder %s25, %s41
    %p43 = scmp.eq.s32.totalorder %s17, 0
    %p44 = por %p42, %p43
    %s45 = ssub.s32 %s11, %s18
    %p46 = scmp.eq.s32.totalorder %s45, 0
    %s48 = sadd.s32 %s47, 1
    %s49 = scalar_select %p46, %s47, %s48
    %p52 = pneg %p46
    %p53 = scmp.eq.s32.totalorder %s11, 1
    %p54 = por %p52, %p53
    %p55 = scmp.ne.s32.totalorder %s47, %s50
    %p56 = scmp.eq.s32.totalorder %s11, 0
    %p57 = por %p55, %p56
    %p58 = scmp.ne.s32.totalorder %s47, %s50
    %p59 = scmp.eq.s32.totalorder %s16, 1
    %p60 = por %p58, %p59
    %p61 = scmp.ne.s32.totalorder %s50, %s51
    %p62 = scmp.eq.s32.totalorder %s16, 0
    %p63 = por %p61, %p62
    %p64 = scmp.ne.s32.totalorder %s50, %s51
    %p65 = scmp.eq.s32.totalorder %s17, 1
    %p66 = por %p64, %p65
    %p68 = scmp.ne.s32.totalorder %s51, %s67
    %p69 = scmp.eq.s32.totalorder %s17, 0
    %p70 = por %p68, %p69
    %s72 = sadd.s32 %s71, 1
    %p75 = scmp.eq.s32.totalorder %s11, 1
    %p76 = scmp.ne.s32.totalorder %s71, %s73
    %p77 = scmp.eq.s32.totalorder %s11, 0
    %p78 = por %p76, %p77
    %p79 = scmp.ne.s32.totalorder %s71, %s73
    %p80 = scmp.eq.s32.totalorder %s16, 1
    %p81 = por %p79, %p80
    %p82 = scmp.ne.s32.totalorder %s73, %s74
    %p83 = scmp.eq.s32.totalorder %s16, 0
    %p84 = por %p82, %p83
    %p85 = scmp.ne.s32.totalorder %s73, %s74
    %p86 = scmp.eq.s32.totalorder %s17, 1
    %p87 = por %p85, %p86
    %p89 = scmp.ne.s32.totalorder %s74, %s88
    %p90 = scmp.eq.s32.totalorder %s17, 0
    %p91 = por %p89, %p90
    %s93 = sadd.s32 %s92, 1
    %p96 = scmp.eq.s32.totalorder %s11, 1
    %p97 = scmp.ne.s32.totalorder %s92, %s94
    %p98 = scmp.eq.s32.totalorder %s11, 0
    %p99 = por %p97, %p98
    %p100 = scmp.ne.s32.totalorder %s92, %s94
    %p101 = scmp.eq.s32.totalorder %s16, 1
    %p102 = por %p100, %p101
    %p103 = scmp.ne.s32.totalorder %s94, %s95
    %p104 = scmp.eq.s32.totalorder %s16, 0
    %p105 = por %p103, %p104
    %p106 = scmp.ne.s32.totalorder %s94, %s95
    %p107 = scmp.eq.s32.totalorder %s17, 1
    %p108 = por %p106, %p107
    %p110 = scmp.ne.s32.totalorder %s95, %s109
    %p111 = scmp.eq.s32.totalorder %s17, 0
    %p112 = por %p110, %p111
    %s114 = sadd.s32 %s113, 1
    %p117 = scmp.eq.s32.totalorder %s11, 1
    %p118 = scmp.ne.s32.totalorder %s113, %s115
    %p119 = scmp.eq.s32.totalorder %s11, 0
    %p120 = por %p118, %p119
    %p121 = scmp.ne.s32.totalorder %s113, %s115
    %p122 = scmp.eq.s32.totalorder %s16, 1
    %p123 = por %p121, %p122
    %p124 = scmp.ne.s32.totalorder %s115, %s116
    %p125 = scmp.eq.s32.totalorder %s16, 0
    %p126 = por %p124, %p125
    %p127 = scmp.ne.s32.totalorder %s115, %s116
    %p128 = scmp.eq.s32.totalorder %s17, 1
    %p129 = por %p127, %p128
    %p131 = scmp.ne.s32.totalorder %s116, %s130
    %p132 = scmp.eq.s32.totalorder %s17, 0
    %p133 = por %p131, %p132
    %s134 = ssub.s32 %s11, %s18
    %p135 = scmp.eq.s32.totalorder %s134, 0
    %s137 = sadd.s32 %s136, 1
    %s138 = scalar_select %p135, %s136, %s137
    %p141 = pneg %p135
    %p142 = scmp.eq.s32.totalorder %s11, 1
    %p143 = por %p141, %p142
    %p144 = scmp.ne.s32.totalorder %s136, %s139
    %p145 = scmp.eq.s32.totalorder %s11, 0
    %p146 = por %p144, %p145
    %p147 = scmp.ne.s32.totalorder %s136, %s139
    %p148 = scmp.eq.s32.totalorder %s16, 1
    %p149 = por %p147, %p148
    %p150 = scmp.ne.s32.totalorder %s139, %s140
    %p151 = scmp.eq.s32.totalorder %s16, 0
    %p152 = por %p150, %p151
    %p153 = scmp.ne.s32.totalorder %s139, %s140
    %p154 = scmp.eq.s32.totalorder %s17, 1
    %p155 = por %p153, %p154
    %p157 = scmp.ne.s32.totalorder %s140, %s156
    %p158 = scmp.eq.s32.totalorder %s17, 0
    %p159 = por %p157, %p158
    %p160 = scmp.le.s32.totalorder 1, %s11
    %p161 = scmp.lt.s32.totalorder %s11, 3
    %p162 = pnand %p160, %p161
    %p163 = pneg %p162
    // Predicated region
    $region9: #{bilstm_forward.6} parent=5 // pred_check
      _
    $region10: #{bilstm_forward.6} parent=5 // pred_check_branch
      %165 = sbr.rel (%p162) target = $region12
    $region11: #{bilstm_forward.6} parent=5 // pred_region
      %s166 = ssub.s32 %s11, 1
      // Predicated region
      $region13: #{bilstm_forward.6} parent=11 // pred_check
        %p167 = pneg %p84
      $region14: #{bilstm_forward.6} parent=11 // pred_check_branch
        %169 = sbr.rel (%p167) target = $region16
      $region15: #{bilstm_forward.6} parent=11 // pred_region
        _
      $region16: #{bilstm_forward.6} parent=11 // pred_fallthru
        _
      // Predicated region
      $region17: #{bilstm_forward.6} parent=11 // pred_check
        %p170 = pneg %p105
      $region18: #{bilstm_forward.6} parent=11 // pred_check_branch
        %172 = sbr.rel (%p170) target = $region20
      $region19: #{bilstm_forward.6} parent=11 // pred_region
        _
      $region20: #{bilstm_forward.6} parent=11 // pred_fallthru
        _
      // Predicated region
      $region21: #{bilstm_forward.6} parent=11 // pred_check
        %p173 = pneg %p126
      $region22: #{bilstm_forward.6} parent=11 // pred_check_branch
        %175 = sbr.rel (%p173) target = $region24
      $region23: #{bilstm_forward.6} parent=11 // pred_region
        _
      $region24: #{bilstm_forward.6} parent=11 // pred_fallthru
        _
    $region12: #{bilstm_forward.6} parent=5 // pred_fallthru
      _
    %p176 = scmp.lt.s32.totalorder %s11, 2
    // Predicated region
    $region25: #{bilstm_forward.6} parent=5 // pred_check
      %p177 = pneg %p176
    $region26: #{bilstm_forward.6} parent=5 // pred_check_branch
      %179 = sbr.rel (%p177) target = $region28
    $region27: #{bilstm_forward.6} parent=5 // pred_region
      // Predicated region
      $region29: #{bilstm_forward.6} parent=27 // pred_check
        %p180 = pneg %p31
      $region30: #{bilstm_forward.6} parent=27 // pred_check_branch
        %182 = sbr.rel (%p180) target = $region32
      $region31: #{bilstm_forward.6} parent=27 // pred_region
        %p183 = scmp.lt.s32.totalorder %s11, 1
        %s184 = scalar_select %p183, %s11, 1
        %s185 = smul.addr %s184, 8
        %s186 = scalar_lea.vmem %s0, %s185
      $region32: #{bilstm_forward.6} parent=27 // pred_fallthru
        _
      // Predicated region
      $region33: #{bilstm_forward.6} parent=27 // pred_check
        %p187 = pneg %p57
      $region34: #{bilstm_forward.6} parent=27 // pred_check_branch
        %189 = sbr.rel (%p187) target = $region36
      $region35: #{bilstm_forward.6} parent=27 // pred_region
        %p190 = scmp.lt.s32.totalorder %s11, 1
        %s191 = scalar_select %p190, %s11, 1
        %s192 = smul.addr %s191, 8
        %s193 = scalar_lea.vmem %s1, %s192
      $region36: #{bilstm_forward.6} parent=27 // pred_fallthru
        _
    $region28: #{bilstm_forward.6} parent=5 // pred_fallthru
      _
    %p194 = scmp.le.s32.totalorder 1, %s11
    %p195 = scmp.lt.s32.totalorder %s11, 3
    %p196 = pnand %p194, %p195
    %p197 = pneg %p196
    // Predicated region
    $region37: #{bilstm_forward.6} parent=5 // pred_check
      _
    $region38: #{bilstm_forward.6} parent=5 // pred_check_branch
      %199 = sbr.rel (%p196) target = $region40
    $region39: #{bilstm_forward.6} parent=5 // pred_region
      %s200 = ssub.s32 %s11, 1
      %p201 = scmp.lt.s32.totalorder %s16, 1
      %s202 = scalar_select %p201, %s16, 1
      %s203 = smul.addr %s202, 8
      %s204 = scalar_lea.vmem %s0, %s203
      %p205 = pneg %p37
      %p206 = pneg %p34
      %p207 = scmp.lt.s32.totalorder %s16, 1
      %s208 = scalar_select %p207, %s16, 1
      %s209 = smul.addr %s208, 8
      %s210 = scalar_lea.vmem %s1, %s209
      %p211 = pneg %p63
      %p212 = pneg %p60
      %p213 = pneg %p84
      %p214 = pneg %p81
      %p215 = pneg %p105
      %p216 = pneg %p102
      %p217 = pneg %p126
      %p218 = pneg %p123
      %p219 = pneg %p152
      %p220 = pneg %p149
      %p221 = scmp.lt.s32.totalorder %s16, 1
      %s222 = scalar_select %p221, %s16, 1
      %s223 = smul.addr %s222, 8
      %s224 = scalar_lea.vmem %s5, %s223
      %p225 = scmp.lt.s32.totalorder %s16, 1
      %s226 = scalar_select %p225, %s16, 1
      %s227 = smul.addr %s226, 8
      %s228 = scalar_lea.vmem %s0, %s227
      %p229 = scmp.lt.s32.totalorder %s16, 1
      %s230 = scalar_select %p229, %s16, 1
      %s231 = smul.addr %s230, 8
      %s232 = scalar_lea.vmem %s1, %s231
      %p233 = scmp.lt.s32.totalorder %s16, 1
      %s234 = scalar_select %p233, %s16, 1
      %s235 = smul.addr %s234, 8
      %s236 = scalar_lea.vmem %s5, %s235
      %v237 = vld [vmem:[%s228] sm:$0xff]
      %v238 = vld [vmem:[%s2] sm:$0xff]
      %v239 = vld [vmem:[%s2 + $0x8] sm:$0xff]
      %v240 = vld [vmem:[%s2 + $0x10] sm:$0xff]
      %v241 = vld [vmem:[%s2 + $0x18] sm:$0xff]
      %v242 = vld [vmem:[%s232] sm:$0xff]
      %v243 = vld [vmem:[%s3] sm:$0xff]
      %v244 = vld [vmem:[%s3 + $0x8] sm:$0xff]
      %v245 = vld [vmem:[%s3 + $0x10] sm:$0xff]
      %v246 = vld [vmem:[%s3 + $0x18] sm:$0xff]
      %vm247 = vcmask 261120
      %v249 = vsel %vm247, %v242, 0
      %251 = vmatprep.subr.mxu0 0.0
      %252 = vmatpush1.msra.mxu0 %v243
      %253 = vmatprep.subr.mxu0 0.0
      %254 = vmatpush1.msra.mxu0 %v244
      %255 = vmatprep.subr.mxu0 0.0
      %256 = vmatpush1.msra.mxu0 %v245
      %257 = vmatprep.subr.mxu0 0.0
      %258 = vmatpush1.msra.mxu0 %v246
      %259 = vmatprep.subr.mxu0 0.0
      %260 = vmatpush1.msra.mxu0 0.0
      %261 = vmatprep.subr.mxu0 0.0
      %262 = vmatpush1.msra.mxu0 0.0
      %263 = vmatprep.subr.mxu0 0.0
      %264 = vmatpush1.msra.mxu0 0.0
      %265 = vmatprep.subr.mxu0 0.0
      %266 = vmatpush1.msra.mxu0 0.0
      %267 = vmatprep.subr.mxu0 0.0
      %268 = vmatpush1.msra.mxu0 0.0
      %269 = vmatprep.subr.mxu0 0.0
      %270 = vmatpush1.msra.mxu0 0.0
      %271 = vmatprep.subr.mxu0 0.0
      %272 = vmatpush1.msra.mxu0 0.0
      %273 = vmatprep.subr.mxu0 0.0
      %274 = vmatpush1.msra.mxu0 0.0
      %275 = vmatprep.subr.mxu0 0.0
      %276 = vmatpush1.msra.mxu0 0.0
      %277 = vmatprep.subr.mxu0 0.0
      %278 = vmatpush1.msra.mxu0 0.0
      %279 = vmatprep.subr.mxu0 0.0
      %280 = vmatpush1.msra.mxu0 0.0
      %281 = vmatprep.subr.mxu0 0.0
      %282 = vmatpush1.msra.mxu0 0.0
      %283 = vmatprep.subr.mxu0 0.0
      %284 = vmatpush1.msra.mxu0 0.0
      %285 = vmatprep.subr.mxu0 0.0
      %286 = vmatpush1.msra.mxu0 0.0
      %287 = vmatprep.subr.mxu0 0.0
      %288 = vmatpush1.msra.mxu0 0.0
      %289 = vmatprep.subr.mxu0 0.0
      %290 = vmatpush1.msra.mxu0 0.0
      %291 = vmatprep.subr.mxu0 0.0
      %292 = vmatpush1.msra.mxu0 0.0
      %293 = vmatprep.subr.mxu0 0.0
      %294 = vmatpush1.msra.mxu0 0.0
      %295 = vmatprep.subr.mxu0 0.0
      %296 = vmatpush1.msra.mxu0 0.0
      %297 = vmatprep.subr.mxu0 0.0
      %298 = vmatpush1.msra.mxu0 0.0
      %299 = vmatprep.subr.mxu0 0.0
      %300 = vmatpush1.msra.mxu0 0.0
      %301 = vmatprep.subr.mxu0 0.0
      %302 = vmatpush1.msra.mxu0 0.0
      %303 = vmatprep.subr.mxu0 0.0
      %304 = vmatpush1.msra.mxu0 0.0
      %305 = vmatprep.subr.mxu0 0.0
      %306 = vmatpush1.msra.mxu0 0.0
      %307 = vmatprep.subr.mxu0 0.0
      %308 = vmatpush1.msra.mxu0 0.0
      %309 = vmatprep.subr.mxu0 0.0
      %310 = vmatpush1.msra.mxu0 0.0
      %311 = vmatprep.subr.mxu0 0.0
      %312 = vmatpush1.msra.mxu0 0.0
      %313 = vmatprep.subr.mxu0 0.0
      %314 = vmatpush1.msra.mxu0 0.0
      %315 = vmatprep.mubr.f32.mxu0 0.0
      %316 = vmatmul.mubr.f32.gmra.mrb[0].mxu0 %v249
      %v317 = vpop.f32.mrb[0].mxu0
      %v318 = vadd.f32 0.0, %v317
      %v319 = vpop.f32.mrb[0].mxu0
      %320 = vdwg.mxu0
      %v322 = vsel %vm247, %v237, 0
      %324 = vmatprep.subr.mxu0 0.0
      %325 = vmatpush1.msra.mxu0 %v238
      %326 = vmatprep.subr.mxu0 0.0
      %327 = vmatpush1.msra.mxu0 %v239
      %328 = vmatprep.subr.mxu0 0.0
      %329 = vmatpush1.msra.mxu0 %v240
      %330 = vmatprep.subr.mxu0 0.0
      %331 = vmatpush1.msra.mxu0 %v241
      %332 = vmatprep.subr.mxu0 0.0
      %333 = vmatpush1.msra.mxu0 0.0
      %334 = vmatprep.subr.mxu0 0.0
      %335 = vmatpush1.msra.mxu0 0.0
      %336 = vmatprep.subr.mxu0 0.0
      %337 = vmatpush1.msra.mxu0 0.0
      %338 = vmatprep.subr.mxu0 0.0
      %339 = vmatpush1.msra.mxu0 0.0
      %340 = vmatprep.subr.mxu0 0.0
      %341 = vmatpush1.msra.mxu0 0.0
      %342 = vmatprep.subr.mxu0 0.0
      %343 = vmatpush1.msra.mxu0 0.0
      %344 = vmatprep.subr.mxu0 0.0
      %345 = vmatpush1.msra.mxu0 0.0
      %346 = vmatprep.subr.mxu0 0.0
      %347 = vmatpush1.msra.mxu0 0.0
      %348 = vmatprep.subr.mxu0 0.0
      %349 = vmatpush1.msra.mxu0 0.0
      %350 = vmatprep.subr.mxu0 0.0
      %351 = vmatpush1.msra.mxu0 0.0
      %352 = vmatprep.subr.mxu0 0.0
      %353 = vmatpush1.msra.mxu0 0.0
      %354 = vmatprep.subr.mxu0 0.0
      %355 = vmatpush1.msra.mxu0 0.0
      %356 = vmatprep.subr.mxu0 0.0
      %357 = vmatpush1.msra.mxu0 0.0
      %358 = vmatprep.subr.mxu0 0.0
      %359 = vmatpush1.msra.mxu0 0.0
      %360 = vmatprep.subr.mxu0 0.0
      %361 = vmatpush1.msra.mxu0 0.0
      %362 = vmatprep.subr.mxu0 0.0
      %363 = vmatpush1.msra.mxu0 0.0
      %364 = vmatprep.subr.mxu0 0.0
      %365 = vmatpush1.msra.mxu0 0.0
      %366 = vmatprep.subr.mxu0 0.0
      %367 = vmatpush1.msra.mxu0 0.0
      %368 = vmatprep.subr.mxu0 0.0
      %369 = vmatpush1.msra.mxu0 0.0
      %370 = vmatprep.subr.mxu0 0.0
      %371 = vmatpush1.msra.mxu0 0.0
      %372 = vmatprep.subr.mxu0 0.0
      %373 = vmatpush1.msra.mxu0 0.0
      %374 = vmatprep.subr.mxu0 0.0
      %375 = vmatpush1.msra.mxu0 0.0
      %376 = vmatprep.subr.mxu0 0.0
      %377 = vmatpush1.msra.mxu0 0.0
      %378 = vmatprep.subr.mxu0 0.0
      %379 = vmatpush1.msra.mxu0 0.0
      %380 = vmatprep.subr.mxu0 0.0
      %381 = vmatpush1.msra.mxu0 0.0
      %382 = vmatprep.subr.mxu0 0.0
      %383 = vmatpush1.msra.mxu0 0.0
      %384 = vmatprep.subr.mxu0 0.0
      %385 = vmatpush1.msra.mxu0 0.0
      %386 = vmatprep.subr.mxu0 0.0
      %387 = vmatpush1.msra.mxu0 0.0
      %388 = vmatprep.mubr.f32.mxu0 0.0
      %389 = vmatmul.mubr.f32.gmra.mrb[0].mxu0 %v322
      %v390 = vpop.f32.mrb[0].mxu0
      %v391 = vadd.f32 %v318, %v390
      %v392 = vpop.f32.mrb[0].mxu0
      %393 = vdwg.mxu0
      %v394 = vtanh.pop %v391
      %v395 = vld [vmem:[%s4] sm:$0x1]
      %v397 = vlaneseq
      %v398 = vshrl.u32 %v397, 7
      %v399 = vsub.s32 0, %v398
      %v400 = vrot.slane %v395, %v399
      %v402 = vmul.f32 %v394, %v400
      %vm403 = vcmask 130048
      %v404 = vsel %vm403, %v402, 0.0
      %405 = vadd.xlane.f32.xlu0 %v404
      %v406 = vpop.xlane.xlu0 %405
      %vm407 = vcmask 7168
      %408 = vst.msk [vmem:[%s236] sm:$0xff] %vm407, %v406
      %p409 = scmp.lt.s32.totalorder %s16, 1
      %s410 = scalar_select %p409, %s16, 1
      %s411 = smul.addr %s410, 8
      %s412 = scalar_lea.vmem %s5, %s411
      // Predicated region
      $region41: #{bilstm_forward.6} parent=39 // pred_check
        %p413 = pneg %p149
      $region42: #{bilstm_forward.6} parent=39 // pred_check_branch
        %415 = sbr.rel (%p413) target = $region44
      $region43: #{bilstm_forward.6} parent=39 // pred_region
        _
      $region44: #{bilstm_forward.6} parent=39 // pred_fallthru
        _
    $region40: #{bilstm_forward.6} parent=5 // pred_fallthru
      _
    %p416 = scmp.le.s32.totalorder 2, %s11
    // Predicated region
    $region45: #{bilstm_forward.6} parent=5 // pred_check
      %p417 = pneg %p416
    $region46: #{bilstm_forward.6} parent=5 // pred_check_branch
      %419 = sbr.rel (%p417) target = $region48
    $region47: #{bilstm_forward.6} parent=5 // pred_region
      %s420 = ssub.s32 %s11, 2
      // Predicated region
      $region49: #{bilstm_forward.6} parent=47 // pred_check
        %p421 = pneg %p155
      $region50: #{bilstm_forward.6} parent=47 // pred_check_branch
        %423 = sbr.rel (%p421) target = $region52
      $region51: #{bilstm_forward.6} parent=47 // pred_region
        %p424 = scmp.lt.s32.totalorder %s17, 1
        %s425 = scalar_select %p424, %s17, 1
        %s426 = smul.addr %s425, 8
        %s427 = scalar_lea.vmem %s5, %s426
      $region52: #{bilstm_forward.6} parent=47 // pred_fallthru
        _
    $region48: #{bilstm_forward.6} parent=5 // pred_fallthru
      _
  $region6: #{bilstm_forward.6} parent=0 // loop_footer
    %s15 = sadd.s32 1, %s11
  $region7: #{bilstm_forward.6} parent=0 // loop_footer_branch
    %10 = sbr.rel target = $region3
  $region8: #{bilstm_forward.6} parent=0 // loop_exit
    _

// kernel: bilstm_forward.7
$region0: #{bilstm_forward.7}
  #allocation0 [shape = 'u32[]', space=smem, size = 0x4, offset = 0x4, fixed_abs, tag = 'smem constant byte address 0x4 - core index']
  #allocation1 [shape = 'u32[144,128]{1,0:T(1,128)}', space=vmem, size = 0x12000, scoped, tag = 'internal scratch']
  #allocation2 [shape = 'f32[1,1]{1,0:T(1,128)}', space=vmem, size = 0x200, scoped, tag = 'scratch operand']
  #allocation3 [shape = 'f32[2,1]{1,0:T(2,128)}', space=vmem, size = 0x400, scoped, tag = 'scratch operand']
  #allocation4 [shape = 'f32[2,32]{1,0:T(2,128)}', space=vmem, size = 0x400, scoped, tag = 'scratch operand']
  #allocation5 [shape = 'f32[2,32]{1,0:T(2,128)}', space=vmem, size = 0x400, scoped, tag = 'scratch operand']
  %s0 = inlined_call_operand.vmem [shape: f32[2,8], index: 0, kind: input, shape index: {}]
  %s1 = inlined_call_operand.vmem [shape: f32[8,2,1], index: 1, kind: input, shape index: {}]
  %s2 = inlined_call_operand.vmem [shape: f32[8,2,32], index: 2, kind: input, shape index: {}]
  %s3 = inlined_call_operand.vmem [shape: f32[8,2,32], index: 3, kind: input, shape index: {}]
  %s4 = inlined_call_operand.vmem [shape: f32[32,4], index: 4, kind: input, shape index: {}]
  %s5 = inlined_call_operand.vmem [shape: f32[32,4], index: 5, kind: input, shape index: {}]
  %s6 = inlined_call_operand.vmem [shape: f32[1,4], index: 6, kind: input, shape index: {}]
  %s7 = inlined_call_operand.hbm [shape: f32[2,4], index: 7, kind: output, shape index: {}]
  %s8 = sld [smem:[#allocation0]]
  $region69: #{bilstm_forward.7} parent=0
    _
  %s10 = ssub.s32 1, %s8
  %s11 = scalar_select 0, %s10, %s8
  $region1: #{bilstm_forward.7} parent=0
    #allocation6 [shape = 'u8[1024]{0}', space=vmem, size = 0x400, scoped, tag = 'output window, operand 0, single buffered']
    #allocation7 [shape = 's32[2]{0}', space=sflag, size = 0x8, scoped, tag = 'scoped memory for bilstm_forward.7']
    %12 = vsyncpa [#allocation7], 0
    loop: start=0, step=1, limit=4
    $region2: #{bilstm_forward.7} parent=1 // loop_pre_header
      _
    $region3: #{bilstm_forward.7} parent=1 // loop_header
      %s14 = sphi 0, %s18
      %p15 = scmp.ge.s32.totalorder %s14, 4
      %s22 = sphi 0, %s22
      %s24 = sphi 0, %s22
      %s25 = sphi 0, %s24
      %s39 = sphi 0, %s25
      %s45 = sphi 0, %s47
      %s48 = sphi 0, %s45
      %s49 = sphi 0, %s48
      %s65 = sphi 0, %s49
      %s71 = sphi 0, %s73
      %s74 = sphi 0, %s71
      %s75 = sphi 0, %s74
      %s91 = sphi 0, %s75
      %s97 = sphi 0, %s99
      %s100 = sphi 0, %s97
      %s101 = sphi 0, %s100
      %s117 = sphi 0, %s101
      %s121 = sphi 0, %s121
      %s123 = sphi 0, %s121
      %s124 = sphi 0, %s123
      %s138 = sphi 0, %s124
      %s142 = sphi 0, %s142
      %s144 = sphi 0, %s142
      %s145 = sphi 0, %s144
      %s159 = sphi 0, %s145
      %s163 = sphi 0, %s163
      %s165 = sphi 0, %s163
      %s166 = sphi 0, %s165
      %s180 = sphi 0, %s166
      %s184 = sphi 0, %s184
      %s186 = sphi 0, %s184
      %s187 = sphi 0, %s186
      %s201 = sphi 0, %s187
    $region4: #{bilstm_forward.7} parent=1 // loop_header_branch
      %17 = sbr.rel (%p15) target = $region8
    $region5: #{bilstm_forward.7} parent=1 // loop_body
      %s19 = ssub.s32 %s14, 1
      %s20 = ssub.s32 %s14, 2
      %s21 = sadd.s32 %s14, 1
      %s23 = sadd.s32 %s22, 1
      %p26 = scmp.eq.s32.totalorder %s14, 1
      %p27 = scmp.ne.s32.totalorder %s22, %s24
      %p28 = scmp.eq.s32.totalorder %s14, 0
      %p29 = por %p27, %p28
      %p30 = scmp.ne.s32.totalorder %s22, %s24
      %p31 = scmp.eq.s32.totalorder %s19, 1
      %p32 = por %p30, %p31
      %p33 = scmp.ne.s32.totalorder %s24, %s25
      %p34 = scmp.eq.s32.totalorder %s19, 0
      %p35 = por %p33, %p34
      %p36 = scmp.ne.s32.totalorder %s24, %s25
      %p37 = scmp.eq.s32.totalorder %s20, 1
      %p38 = por %p36, %p37
      %p40 = scmp.ne.s32.totalorder %s25, %s39
      %p41 = scmp.eq.s32.totalorder %s20, 0
      %p42 = por %p40, %p41
      %s43 = ssub.s32 %s14, %s21
      %p44 = scmp.eq.s32.totalorder %s43, 0
      %s46 = sadd.s32 %s45, 1
      %s47 = scalar_select %p44, %s45, %s46
      %p50 = pneg %p44
      %p51 = scmp.eq.s32.totalorder %s14, 1
      %p52 = por %p50, %p51
      %p53 = scmp.ne.s32.totalorder %s45, %s48
      %p54 = scmp.eq.s32.totalorder %s14, 0
      %p55 = por %p53, %p54
      %p56 = scmp.ne.s32.totalorder %s45, %s48
      %p57 = scmp.eq.s32.totalorder %s19, 1
      %p58 = por %p56, %p57
      %p59 = scmp.ne.s32.totalorder %s48, %s49
      %p60 = scmp.eq.s32.totalorder %s19, 0
      %p61 = por %p59, %p60
      %p62 = scmp.ne.s32.totalorder %s48, %s49
      %p63 = scmp.eq.s32.totalorder %s20, 1
      %p64 = por %p62, %p63
      %p66 = scmp.ne.s32.totalorder %s49, %s65
      %p67 = scmp.eq.s32.totalorder %s20, 0
      %p68 = por %p66, %p67
      %s69 = ssub.s32 %s14, %s21
      %p70 = scmp.eq.s32.totalorder %s69, 0
      %s72 = sadd.s32 %s71, 1
      %s73 = scalar_select %p70, %s71, %s72
      %p76 = pneg %p70
      %p77 = scmp.eq.s32.totalorder %s14, 1
      %p78 = por %p76, %p77
      %p79 = scmp.ne.s32.totalorder %s71, %s74
      %p80 = scmp.eq.s32.totalorder %s14, 0
      %p81 = por %p79, %p80
      %p82 = scmp.ne.s32.totalorder %s71, %s74
      %p83 = scmp.eq.s32.totalorder %s19, 1
      %p84 = por %p82, %p83
      %p85 = scmp.ne.s32.totalorder %s74, %s75
      %p86 = scmp.eq.s32.totalorder %s19, 0
      %p87 = por %p85, %p86
      %p88 = scmp.ne.s32.totalorder %s74, %s75
      %p89 = scmp.eq.s32.totalorder %s20, 1
      %p90 = por %p88, %p89
      %p92 = scmp.ne.s32.totalorder %s75, %s91
      %p93 = scmp.eq.s32.totalorder %s20, 0
      %p94 = por %p92, %p93
      %s95 = ssub.s32 %s14, %s21
      %p96 = scmp.eq.s32.totalorder %s95, 0
      %s98 = sadd.s32 %s97, 1
      %s99 = scalar_select %p96, %s97, %s98
      %p102 = pneg %p96
      %p103 = scmp.eq.s32.totalorder %s14, 1
      %p104 = por %p102, %p103
      %p105 = scmp.ne.s32.totalorder %s97, %s100
      %p106 = scmp.eq.s32.totalorder %s14, 0
      %p107 = por %p105, %p106
      %p108 = scmp.ne.s32.totalorder %s97, %s100
      %p109 = scmp.eq.s32.totalorder %s19, 1
      %p110 = por %p108, %p109
      %p111 = scmp.ne.s32.totalorder %s100, %s101
      %p112 = scmp.eq.s32.totalorder %s19, 0
      %p113 = por %p111, %p112
      %p114 = scmp.ne.s32.totalorder %s100, %s101
      %p115 = scmp.eq.s32.totalorder %s20, 1
      %p116 = por %p114, %p115
      %p118 = scmp.ne.s32.totalorder %s101, %s117
      %p119 = scmp.eq.s32.totalorder %s20, 0
      %p120 = por %p118, %p119
      %s122 = sadd.s32 %s121, 1
      %p125 = scmp.eq.s32.totalorder %s14, 1
      %p126 = scmp.ne.s32.totalorder %s121, %s123
      %p127 = scmp.eq.s32.totalorder %s14, 0
      %p128 = por %p126, %p127
      %p129 = scmp.ne.s32.totalorder %s121, %s123
      %p130 = scmp.eq.s32.totalorder %s19, 1
      %p131 = por %p129, %p130
      %p132 = scmp.ne.s32.totalorder %s123, %s124
      %p133 = scmp.eq.s32.totalorder %s19, 0
      %p134 = por %p132, %p133
      %p135 = scmp.ne.s32.totalorder %s123, %s124
      %p136 = scmp.eq.s32.totalorder %s20, 1
      %p137 = por %p135, %p136
      %p139 = scmp.ne.s32.totalorder %s124, %s138
      %p140 = scmp.eq.s32.totalorder %s20, 0
      %p141 = por %p139, %p140
      %s143 = sadd.s32 %s142, 1
      %p146 = scmp.eq.s32.totalorder %s14, 1
      %p147 = scmp.ne.s32.totalorder %s142, %s144
      %p148 = scmp.eq.s32.totalorder %s14, 0
      %p149 = por %p147, %p148
      %p150 = scmp.ne.s32.totalorder %s142, %s144
      %p151 = scmp.eq.s32.totalorder %s19, 1
      %p152 = por %p150, %p151
      %p153 = scmp.ne.s32.totalorder %s144, %s145
      %p154 = scmp.eq.s32.totalorder %s19, 0
      %p155 = por %p153, %p154
      %p156 = scmp.ne.s32.totalorder %s144, %s145
      %p157 = scmp.eq.s32.totalorder %s20, 1
      %p158 = por %p156, %p157
      %p160 = scmp.ne.s32.totalorder %s145, %s159
      %p161 = scmp.eq.s32.totalorder %s20, 0
      %p162 = por %p160, %p161
      %s164 = sadd.s32 %s163, 1
      %p167 = scmp.eq.s32.totalorder %s14, 1
      %p168 = scmp.ne.s32.totalorder %s163, %s165
      %p169 = scmp.eq.s32.totalorder %s14, 0
      %p170 = por %p168, %p169
      %p171 = scmp.ne.s32.totalorder %s163, %s165
      %p172 = scmp.eq.s32.totalorder %s19, 1
      %p173 = por %p171, %p172
      %p174 = scmp.ne.s32.totalorder %s165, %s166
      %p175 = scmp.eq.s32.totalorder %s19, 0
      %p176 = por %p174, %p175
      %p177 = scmp.ne.s32.totalorder %s165, %s166
      %p178 = scmp.eq.s32.totalorder %s20, 1
      %p179 = por %p177, %p178
      %p181 = scmp.ne.s32.totalorder %s166, %s180
      %p182 = scmp.eq.s32.totalorder %s20, 0
      %p183 = por %p181, %p182
      %s185 = sadd.s32 %s184, 1
      %p188 = scmp.eq.s32.totalorder %s14, 1
      %p189 = scmp.ne.s32.totalorder %s184, %s186
      %p190 = scmp.eq.s32.totalorder %s14, 0
      %p191 = por %p189, %p190
      %p192 = scmp.ne.s32.totalorder %s184, %s186
      %p193 = scmp.eq.s32.totalorder %s19, 1
      %p194 = por %p192, %p193
      %p195 = scmp.ne.s32.totalorder %s186, %s187
      %p196 = scmp.eq.s32.totalorder %s19, 0
      %p197 = por %p195, %p196
      %p198 = scmp.ne.s32.totalorder %s186, %s187
      %p199 = scmp.eq.s32.totalorder %s20, 1
      %p200 = por %p198, %p199
      %p202 = scmp.ne.s32.totalorder %s187, %s201
      %p203 = scmp.eq.s32.totalorder %s20, 0
      %p204 = por %p202, %p203
      %p205 = scmp.le.s32.totalorder 1, %s14
      %p206 = scmp.lt.s32.totalorder %s14, 3
      %p207 = pnand %p205, %p206
      %p208 = pneg %p207
      // Predicated region
      $region9: #{bilstm_forward.7} parent=5 // pred_check
        _
      $region10: #{bilstm_forward.7} parent=5 // pred_check_branch
        %210 = sbr.rel (%p207) target = $region12
      $region11: #{bilstm_forward.7} parent=5 // pred_region
        %s211 = ssub.s32 %s14, 1
        // Predicated region
        $region13: #{bilstm_forward.7} parent=11 // pred_check
          %p212 = pneg %p35
        $region14: #{bilstm_forward.7} parent=11 // pred_check_branch
          %214 = sbr.rel (%p212) target = $region16
        $region15: #{bilstm_forward.7} parent=11 // pred_region
          _
        $region16: #{bilstm_forward.7} parent=11 // pred_fallthru
          _
        // Predicated region
        $region17: #{bilstm_forward.7} parent=11 // pred_check
          %p215 = pneg %p134
        $region18: #{bilstm_forward.7} parent=11 // pred_check_branch
          %217 = sbr.rel (%p215) target = $region20
        $region19: #{bilstm_forward.7} parent=11 // pred_region
          _
        $region20: #{bilstm_forward.7} parent=11 // pred_fallthru
          _
        // Predicated region
        $region21: #{bilstm_forward.7} parent=11 // pred_check
          %p218 = pneg %p155
        $region22: #{bilstm_forward.7} parent=11 // pred_check_branch
          %220 = sbr.rel (%p218) target = $region24
        $region23: #{bilstm_forward.7} parent=11 // pred_region
          _
        $region24: #{bilstm_forward.7} parent=11 // pred_fallthru
          _
        // Predicated region
        $region25: #{bilstm_forward.7} parent=11 // pred_check
          %p221 = pneg %p176
        $region26: #{bilstm_forward.7} parent=11 // pred_check_branch
          %223 = sbr.rel (%p221) target = $region28
        $region27: #{bilstm_forward.7} parent=11 // pred_region
          _
        $region28: #{bilstm_forward.7} parent=11 // pred_fallthru
          _
      $region12: #{bilstm_forward.7} parent=5 // pred_fallthru
        _
      %p224 = scmp.lt.s32.totalorder %s14, 2
      // Predicated region
      $region29: #{bilstm_forward.7} parent=5 // pred_check
        %p225 = pneg %p224
      $region30: #{bilstm_forward.7} parent=5 // pred_check_branch
        %227 = sbr.rel (%p225) target = $region32
      $region31: #{bilstm_forward.7} parent=5 // pred_region
        // Predicated region
        $region33: #{bilstm_forward.7} parent=31 // pred_check
          %p228 = pneg %p55
        $region34: #{bilstm_forward.7} parent=31 // pred_check_branch
          %230 = sbr.rel (%p228) target = $region36
        $region35: #{bilstm_forward.7} parent=31 // pred_region
          %s231 = smul.u32 4, %s14
          %p232 = scmp.lt.s32.totalorder %s231, 7
          %s233 = scalar_select %p232, %s231, 7
          %s234 = smul.addr %s233, 2
          %s235 = scalar_lea.vmem %s1, %s234
          %s236 = smul.u32 4, %s14
        $region36: #{bilstm_forward.7} parent=31 // pred_fallthru
          _
        // Predicated region
        $region37: #{bilstm_forward.7} parent=31 // pred_check
          %p237 = pneg %p81
        $region38: #{bilstm_forward.7} parent=31 // pred_check_branch
          %239 = sbr.rel (%p237) target = $region40
        $region39: #{bilstm_forward.7} parent=31 // pred_region
          %s240 = smul.u32 4, %s14
          %p241 = scmp.lt.s32.totalorder %s240, 7
          %s242 = scalar_select %p241, %s240, 7
          %s243 = smul.addr %s242, 2
          %s244 = scalar_lea.vmem %s2, %s243
          %s245 = smul.u32 4, %s14
        $region40: #{bilstm_forward.7} parent=31 // pred_fallthru
          _
        // Predicated region
        $region41: #{bilstm_forward.7} parent=31 // pred_check
          %p246 = pneg %p107
        $region42: #{bilstm_forward.7} parent=31 // pred_check_branch
          %248 = sbr.rel (%p246) target = $region44
        $region43: #{bilstm_forward.7} parent=31 // pred_region
          %s249 = smul.u32 4, %s14
          %p250 = scmp.lt.s32.totalorder %s249, 7
          %s251 = scalar_select %p250, %s249, 7
          %s252 = smul.addr %s251, 2
          %s253 = scalar_lea.vmem %s3, %s252
          %s254 = smul.u32 4, %s14
        $region44: #{bilstm_forward.7} parent=31 // pred_fallthru
          _
      $region32: #{bilstm_forward.7} parent=5 // pred_fallthru
        _
      %p255 = scmp.le.s32.totalorder 1, %s14
      %p256 = scmp.lt.s32.totalorder %s14, 3
      %p257 = pnand %p255, %p256
      %p258 = pneg %p257
      // Predicated region
      $region45: #{bilstm_forward.7} parent=5 // pred_check
        _
      $region46: #{bilstm_forward.7} parent=5 // pred_check_branch
        %260 = sbr.rel (%p257) target = $region48
      $region47: #{bilstm_forward.7} parent=5 // pred_region
        %s261 = ssub.s32 %s14, 1
        %p262 = pneg %p35
        %p263 = pneg %p32
        %s264 = smul.u32 4, %s19
        %p265 = scmp.lt.s32.totalorder %s264, 7
        %s266 = scalar_select %p265, %s264, 7
        %s267 = smul.addr %s266, 2
        %s268 = scalar_lea.vmem %s1, %s267
        %p269 = pneg %p61
        %p270 = pneg %p58
        %s271 = smul.u32 4, %s19
        %p272 = scmp.lt.s32.totalorder %s271, 7
        %s273 = scalar_select %p272, %s271, 7
        %s274 = smul.addr %s273, 2
        %s275 = scalar_lea.vmem %s2, %s274
        %p276 = pneg %p87
        %p277 = pneg %p84
        %s278 = smul.u32 4, %s19
        %p279 = scmp.lt.s32.totalorder %s278, 7
        %s280 = scalar_select %p279, %s278, 7
        %s281 = smul.addr %s280, 2
        %s282 = scalar_lea.vmem %s3, %s281
        %p283 = pneg %p113
        %p284 = pneg %p110
        %p285 = pneg %p134
        %p286 = pneg %p131
        %p287 = pneg %p155
        %p288 = pneg %p152
        %p289 = pneg %p176
        %p290 = pneg %p173
        %p291 = pneg %p197
        %p292 = pneg %p194
        %s293 = smul.u32 4, %s19
        %p294 = scmp.lt.s32.totalorder %s293, 7
        %s295 = scalar_select %p294, %s293, 7
        %s296 = smul.addr %s295, 2
        %s297 = scalar_lea.vmem %s1, %s296
        %s298 = smul.u32 4, %s19
        %s299 = smul.u32 4, %s19
        %p300 = scmp.lt.s32.totalorder %s299, 7
        %s301 = scalar_select %p300, %s299, 7
        %s302 = smul.addr %s301, 2
        %s303 = scalar_lea.vmem %s2, %s302
        %s304 = smul.u32 4, %s19
        %s305 = smul.u32 4, %s19
        %p306 = scmp.lt.s32.totalorder %s305, 7
        %s307 = scalar_select %p306, %s305, 7
        %s308 = smul.addr %s307, 2
        %s309 = scalar_lea.vmem %s3, %s308
        %s310 = smul.u32 4, %s19
        %p311 = scmp.eq.s32.totalorder %s19, 0
        // Predicated region
        $region49: #{bilstm_forward.7} parent=47 // pred_check
          %p312 = pneg %p311
        $region50: #{bilstm_forward.7} parent=47 // pred_check_branch
          %314 = sbr.rel (%p312) target = $region52
        $region51: #{bilstm_forward.7} parent=47 // pred_region
          %v315 = vld [vmem:[%s0] sm:$0x3]
          %vm316 = vcmask 58368
          %v317 = vsel %vm316, %v315, -inf
          %318 = vmax.xlane.f32.xlu0 %v317
          %v319 = vpop.xlane.xlu0 %318
          %vm320 = vcmask 1041408
          %v321 = vsel %vm320, %v319, -inf
          %v322 = vrot.slane %v321, 4
          %v323 = vmax.f32 %v321, %v322
          %v324 = vrot.slane %v323, 2
          %v325 = vmax.f32 %v323, %v324
          %v326 = vrot.slane %v325, 1
          %v327 = vmax.f32 %v325, %v326
          %vm328 = vcmask 0
          %329 = vst.msk [vmem:[#allocation2] sm:$0x1] %vm328, %v327
          %v330 = vsub.f32 %v315, %v327
          %v331 = vmul.f32 %v330, 1.442695
          %v332 = vpow.pop %v331
          %v333 = vsel %vm316, %v332, 0.0
          %334 = vadd.xlane.f32.xlu0 %v333
          %v335 = vpop.xlane.xlu0 %334
          %v336 = vrcp.pop %v335
          %vm337 = vcmask 1024
          %338 = vst.msk [vmem:[#allocation3] sm:$0x3] %vm337, %v336
          %vm339 = vcmask 254976
          %340 = vst.msk [vmem:[#allocation4] sm:$0x3] %vm339, 0.0
          %341 = vst.msk [vmem:[#allocation5] sm:$0x3] %vm339, 0.0
        $region52: #{bilstm_forward.7} parent=47 // pred_fallthru
          _
        %v342 = vld [vmem:[%s297] sm:$0x3]
        %v343 = vld [vmem:[%s297 + $0x2] sm:$0x3]
        %v344 = vld [vmem:[%s297 + $0x4] sm:$0x3]
        %v345 = vld [vmem:[%s297 + $0x6] sm:$0x3]
        %v346 = vld [vmem:[#allocation2] sm:$0x1]
        %v348 = vlaneseq
        %v349 = vshrl.u32 %v348, 7
        %v350 = vsub.s32 0, %v349
        %v351 = vrot.slane %v346, %v350
        %v353 = vsub.f32 %v342, %v351
        %v354 = vsub.f32 %v343, %v351
        %v355 = vsub.f32 %v344, %v351
        %v356 = vsub.f32 %v345, %v351
        %v357 = vmul.f32 %v353, 1.442695
        %v358 = vpow.pop %v357
        %v359 = vmul.f32 %v354, 1.442695
        %v360 = vpow.pop %v359
        %v361 = vmul.f32 %v355, 1.442695
        %v362 = vpow.pop %v361
        %v363 = vmul.f32 %v356, 1.442695
        %v364 = vpow.pop %v363
        %v365 = vld [vmem:[#allocation4] sm:$0x3]
        %v366 = vld [vmem:[%s303] sm:$0x3]
        %v367 = vld [vmem:[%s303 + $0x2] sm:$0x3]
        %v368 = vld [vmem:[%s303 + $0x4] sm:$0x3]
        %v369 = vld [vmem:[%s303 + $0x6] sm:$0x3]
        %371 = vset.pattern.permute.xlu0 0
        %372 = vperm.xlu0 %371, %v358
        %v373 = vpop.permute.xlu0 %372
        %376 = vset.pattern.permute.xlu0 0
        %377 = vperm.xlu0 %376, %v360
        %v378 = vpop.permute.xlu0 %377
        %381 = vset.pattern.permute.xlu0 0
        %382 = vperm.xlu0 %381, %v362
        %v383 = vpop.permute.xlu0 %382
        %386 = vset.pattern.permute.xlu0 0
        %387 = vperm.xlu0 %386, %v364
        %v388 = vpop.permute.xlu0 %387
        %v390 = vmul.f32 %v373, %v366
        %v391 = vmul.f32 %v378, %v367
        %v392 = vmul.f32 %v383, %v368
        %v393 = vmul.f32 %v388, %v369
        %vm394 = vcmask 254976
        %v395 = vsel %vm394, %v390, 0.0
        %v396 = vsel %vm394, %v391, 0.0
        %v397 = vadd.f32 %v395, %v396
        %v398 = vsel %vm394, %v392, 0.0
        %v399 = vadd.f32 %v397, %v398
        %v400 = vsel %vm394, %v393, 0.0
        %v401 = vadd.f32 %v399, %v400
        %v402 = vadd.f32 %v365, %v401
        %403 = vst.msk [vmem:[#allocation4] sm:$0x3] %vm394, %v402
        %v404 = vld [vmem:[#allocation5] sm:$0x3]
        %v405 = vld [vmem:[%s309] sm:$0x3]
        %v406 = vld [vmem:[%s309 + $0x2] sm:$0x3]
        %v407 = vld [vmem:[%s309 + $0x4] sm:$0x3]
        %v408 = vld [vmem:[%s309 + $0x6] sm:$0x3]
        %v409 = vmul.f32 %v373, %v405
        %v410 = vmul.f32 %v378, %v406
        %v411 = vmul.f32 %v383, %v407
        %v412 = vmul.f32 %v388, %v408
        %v413 = vsel %vm394, %v409, 0.0
        %v414 = vsel %vm394, %v410, 0.0
        %v415 = vadd.f32 %v413, %v414
        %v416 = vsel %vm394, %v411, 0.0
        %v417 = vadd.f32 %v415, %v416
        %v418 = vsel %vm394, %v412, 0.0
        %v419 = vadd.f32 %v417, %v418
        %v420 = vadd.f32 %v404, %v419
        %421 = vst.msk [vmem:[#allocation5] sm:$0x3] %vm394, %v420
        %p422 = scmp.eq.s32.totalorder %s19, 1
        // Predicated region
        $region53: #{bilstm_forward.7} parent=47 // pred_check
          %p423 = pneg %p422
        $region54: #{bilstm_forward.7} parent=47 // pred_check_branch
          %425 = sbr.rel (%p423) target = $region56
        $region55: #{bilstm_forward.7} parent=47 // pred_region
          %v426 = vld [vmem:[#allocation4] sm:$0x3]
          %v427 = vld [vmem:[#allocation3] sm:$0x3]
          %429 = vset.pattern.permute.xlu0 0
          %430 = vperm.xlu0 %429, %v427
          %v431 = vpop.permute.xlu0 %430
          %v433 = vmul.f32 %v426, %v431
          %v434 = vld [vmem:[#allocation5] sm:$0x3]
          %v435 = vmul.f32 %v434, %v431
          %v436 = vld [vmem:[%s4] sm:$0xff]
          %v437 = vld [vmem:[%s4 + $0x8] sm:$0xff]
          %v438 = vld [vmem:[%s4 + $0x10] sm:$0xff]
          %v439 = vld [vmem:[%s4 + $0x18] sm:$0xff]
          %v440 = vld [vmem:[%s5] sm:$0xff]
          %v441 = vld [vmem:[%s5 + $0x8] sm:$0xff]
          %v442 = vld [vmem:[%s5 + $0x10] sm:$0xff]
          %v443 = vld [vmem:[%s5 + $0x18] sm:$0xff]
          %vm444 = vcmask 261120
          %v446 = vsel %vm444, %v435, 0
          %448 = vmatprep.subr.mxu0 0.0
          %449 = vmatpush1.msra.mxu0 %v440
          %450 = vmatprep.subr.mxu0 0.0
          %451 = vmatpush1.msra.mxu0 %v441
          %452 = vmatprep.subr.mxu0 0.0
          %453 = vmatpush1.msra.mxu0 %v442
          %454 = vmatprep.subr.mxu0 0.0
          %455 = vmatpush1.msra.mxu0 %v443
          %456 = vmatprep.subr.mxu0 0.0
          %457 = vmatpush1.msra.mxu0 0.0
          %458 = vmatprep.subr.mxu0 0.0
          %459 = vmatpush1.msra.mxu0 0.0
          %460 = vmatprep.subr.mxu0 0.0
          %461 = vmatpush1.msra.mxu0 0.0
          %462 = vmatprep.subr.mxu0 0.0
          %463 = vmatpush1.msra.mxu0 0.0
          %464 = vmatprep.subr.mxu0 0.0
          %465 = vmatpush1.msra.mxu0 0.0
          %466 = vmatprep.subr.mxu0 0.0
          %467 = vmatpush1.msra.mxu0 0.0
          %468 = vmatprep.subr.mxu0 0.0
          %469 = vmatpush1.msra.mxu0 0.0
          %470 = vmatprep.subr.mxu0 0.0
          %471 = vmatpush1.msra.mxu0 0.0
          %472 = vmatprep.subr.mxu0 0.0
          %473 = vmatpush1.msra.mxu0 0.0
          %474 = vmatprep.subr.mxu0 0.0
          %475 = vmatpush1.msra.mxu0 0.0
          %476 = vmatprep.subr.mxu0 0.0
          %477 = vmatpush1.msra.mxu0 0.0
          %478 = vmatprep.subr.mxu0 0.0
          %479 = vmatpush1.msra.mxu0 0.0
          %480 = vmatprep.subr.mxu0 0.0
          %481 = vmatpush1.msra.mxu0 0.0
          %482 = vmatprep.subr.mxu0 0.0
          %483 = vmatpush1.msra.mxu0 0.0
          %484 = vmatprep.subr.mxu0 0.0
          %485 = vmatpush1.msra.mxu0 0.0
          %486 = vmatprep.subr.mxu0 0.0
          %487 = vmatpush1.msra.mxu0 0.0
          %488 = vmatprep.subr.mxu0 0.0
          %489 = vmatpush1.msra.mxu0 0.0
          %490 = vmatprep.subr.mxu0 0.0
          %491 = vmatpush1.msra.mxu0 0.0
          %492 = vmatprep.subr.mxu0 0.0
          %493 = vmatpush1.msra.mxu0 0.0
          %494 = vmatprep.subr.mxu0 0.0
          %495 = vmatpush1.msra.mxu0 0.0
          %496 = vmatprep.subr.mxu0 0.0
          %497 = vmatpush1.msra.mxu0 0.0
          %498 = vmatprep.subr.mxu0 0.0
          %499 = vmatpush1.msra.mxu0 0.0
          %500 = vmatprep.subr.mxu0 0.0
          %501 = vmatpush1.msra.mxu0 0.0
          %502 = vmatprep.subr.mxu0 0.0
          %503 = vmatpush1.msra.mxu0 0.0
          %504 = vmatprep.subr.mxu0 0.0
          %505 = vmatpush1.msra.mxu0 0.0
          %506 = vmatprep.subr.mxu0 0.0
          %507 = vmatpush1.msra.mxu0 0.0
          %508 = vmatprep.subr.mxu0 0.0
          %509 = vmatpush1.msra.mxu0 0.0
          %510 = vmatprep.subr.mxu0 0.0
          %511 = vmatpush1.msra.mxu0 0.0
          %512 = vmatprep.mubr.f32.mxu0 0.0
          %513 = vmatmul.mubr.f32.gmra.mrb[0].mxu0 %v446
          %v514 = vpop.f32.mrb[0].mxu0
          %v515 = vadd.f32 0.0, %v514
          %v516 = vpop.f32.mrb[0].mxu0
          %517 = vdwg.mxu0
          %v519 = vsel %vm444, %v433, 0
          %521 = vmatprep.subr.mxu0 0.0
          %522 = vmatpush1.msra.mxu0 %v436
          %523 = vmatprep.subr.mxu0 0.0
          %524 = vmatpush1.msra.mxu0 %v437
          %525 = vmatprep.subr.mxu0 0.0
          %526 = vmatpush1.msra.mxu0 %v438
          %527 = vmatprep.subr.mxu0 0.0
          %528 = vmatpush1.msra.mxu0 %v439
          %529 = vmatprep.subr.mxu0 0.0
          %530 = vmatpush1.msra.mxu0 0.0
          %531 = vmatprep.subr.mxu0 0.0
          %532 = vmatpush1.msra.mxu0 0.0
          %533 = vmatprep.subr.mxu0 0.0
          %534 = vmatpush1.msra.mxu0 0.0
          %535 = vmatprep.subr.mxu0 0.0
          %536 = vmatpush1.msra.mxu0 0.0
          %537 = vmatprep.subr.mxu0 0.0
          %538 = vmatpush1.msra.mxu0 0.0
          %539 = vmatprep.subr.mxu0 0.0
          %540 = vmatpush1.msra.mxu0 0.0
          %541 = vmatprep.subr.mxu0 0.0
          %542 = vmatpush1.msra.mxu0 0.0
          %543 = vmatprep.subr.mxu0 0.0
          %544 = vmatpush1.msra.mxu0 0.0
          %545 = vmatprep.subr.mxu0 0.0
          %546 = vmatpush1.msra.mxu0 0.0
          %547 = vmatprep.subr.mxu0 0.0
          %548 = vmatpush1.msra.mxu0 0.0
          %549 = vmatprep.subr.mxu0 0.0
          %550 = vmatpush1.msra.mxu0 0.0
          %551 = vmatprep.subr.mxu0 0.0
          %552 = vmatpush1.msra.mxu0 0.0
          %553 = vmatprep.subr.mxu0 0.0
          %554 = vmatpush1.msra.mxu0 0.0
          %555 = vmatprep.subr.mxu0 0.0
          %556 = vmatpush1.msra.mxu0 0.0
          %557 = vmatprep.subr.mxu0 0.0
          %558 = vmatpush1.msra.mxu0 0.0
          %559 = vmatprep.subr.mxu0 0.0
          %560 = vmatpush1.msra.mxu0 0.0
          %561 = vmatprep.subr.mxu0 0.0
          %562 = vmatpush1.msra.mxu0 0.0
          %563 = vmatprep.subr.mxu0 0.0
          %564 = vmatpush1.msra.mxu0 0.0
          %565 = vmatprep.subr.mxu0 0.0
          %566 = vmatpush1.msra.mxu0 0.0
          %567 = vmatprep.subr.mxu0 0.0
          %568 = vmatpush1.msra.mxu0 0.0
          %569 = vmatprep.subr.mxu0 0.0
          %570 = vmatpush1.msra.mxu0 0.0
          %571 = vmatprep.subr.mxu0 0.0
          %572 = vmatpush1.msra.mxu0 0.0
          %573 = vmatprep.subr.mxu0 0.0
          %574 = vmatpush1.msra.mxu0 0.0
          %575 = vmatprep.subr.mxu0 0.0
          %576 = vmatpush1.msra.mxu0 0.0
          %577 = vmatprep.subr.mxu0 0.0
          %578 = vmatpush1.msra.mxu0 0.0
          %579 = vmatprep.subr.mxu0 0.0
          %580 = vmatpush1.msra.mxu0 0.0
          %581 = vmatprep.subr.mxu0 0.0
          %582 = vmatpush1.msra.mxu0 0.0
          %583 = vmatprep.subr.mxu0 0.0
          %584 = vmatpush1.msra.mxu0 0.0
          %585 = vmatprep.mubr.f32.mxu0 0.0
          %586 = vmatmul.mubr.f32.gmra.mrb[0].mxu0 %v519
          %v587 = vpop.f32.mrb[0].mxu0
          %v588 = vadd.f32 %v515, %v587
          %v589 = vpop.f32.mrb[0].mxu0
          %590 = vdwg.mxu0
          %v591 = vld [vmem:[%s6] sm:$0x1]
          %v593 = vlaneseq
          %v594 = vshrl.u32 %v593, 7
          %v595 = vsub.s32 0, %v594
          %v596 = vrot.slane %v591, %v595
          %v598 = vadd.f32 %v588, %v596
          %vm599 = vcmask 25600
          %600 = vst.msk [vmem:[#allocation6] sm:$0x3] %vm599, %v598
        $region56: #{bilstm_forward.7} parent=47 // pred_fallthru
          _
        // Predicated region
        $region57: #{bilstm_forward.7} parent=47 // pred_check
          %p601 = pneg %p194
        $region58: #{bilstm_forward.7} parent=47 // pred_check_branch
          %603 = sbr.rel (%p601) target = $region60
        $region59: #{bilstm_forward.7} parent=47 // pred_region
          %s605 = ssub.s32 32, 32
          %606 = vsyncadd [#allocation7], %s605
          %s608 = sshll.u32 [#allocation6], 4
          %s609 = int_to_ptr.vmem [resolvable:$true] %s608
          %611 = dma.vmem_to_hbm [thread:$0]  %s609, 32, %s7, [#allocation7]
        $region60: #{bilstm_forward.7} parent=47 // pred_fallthru
          _
        // Predicated region
        $region61: #{bilstm_forward.7} parent=47 // pred_check
          %p612 = pneg %p194
        $region62: #{bilstm_forward.7} parent=47 // pred_check_branch
          %614 = sbr.rel (%p612) target = $region64
        $region63: #{bilstm_forward.7} parent=47 // pred_region
          %615 = dma.done [#allocation7], 32
        $region64: #{bilstm_forward.7} parent=47 // pred_fallthru
          _
      $region48: #{bilstm_forward.7} parent=5 // pred_fallthru
        _
      %p616 = scmp.le.s32.totalorder 2, %s14
      // Predicated region
      $region65: #{bilstm_forward.7} parent=5 // pred_check
        %p617 = pneg %p616
      $region66: #{bilstm_forward.7} parent=5 // pred_check_branch
        %619 = sbr.rel (%p617) target = $region68
      $region67: #{bilstm_forward.7} parent=5 // pred_region
        %s620 = ssub.s32 %s14, 2
      $region68: #{bilstm_forward.7} parent=5 // pred_fallthru
        _
    $region6: #{bilstm_forward.7} parent=1 // loop_footer
      %s18 = sadd.s32 1, %s14
    $region7: #{bilstm_forward.7} parent=1 // loop_footer_branch
      %13 = sbr.rel target = $region3
    $region8: #{bilstm_forward.7} parent=1 // loop_exit
      _
    %621 = vsyncpa [#allocation7], 1
    %s622 = scalar_lea.sflag [#allocation7], 1
    %623 = vsyncpa %s622, 1

// kernel: bilstm_forward.5
$region0: #{bilstm_forward.5}
  #allocation0 [shape = 'u32[]', space=smem, size = 0x4, offset = 0x4, fixed_abs, tag = 'smem constant byte address 0x4 - core index']
  #allocation1 [shape = 'u32[144,128]{1,0:T(1,128)}', space=vmem, size = 0x12000, scoped, tag = 'internal scratch']
  #allocation2 [shape = 'f32[2,32]{1,0:T(2,128)}', space=vmem, size = 0x400, scoped, tag = 'scratch operand']
  #allocation3 [shape = 'f32[2,32]{1,0:T(2,128)}', space=vmem, size = 0x400, scoped, tag = 'scratch operand']
  #allocation4 [shape = 'f32[2,32]{1,0:T(2,128)}', space=vmem, size = 0x400, scoped, tag = 'scratch operand']
  #allocation5 [shape = 'f32[2,32]{1,0:T(2,128)}', space=vmem, size = 0x400, scoped, tag = 'scratch operand']
  %s0 = inlined_call_operand.vmem [shape: f32[8,2,128], index: 0, kind: input, shape index: {}]
  %s1 = inlined_call_operand.vmem [shape: f32[8,2,128], index: 1, kind: input, shape index: {}]
  %s2 = inlined_call_operand.vmem [shape: f32[32,128], index: 2, kind: input, shape index: {}]
  %s3 = inlined_call_operand.vmem [shape: f32[32,128], index: 3, kind: input, shape index: {}]
  %s4 = inlined_call_operand.vmem [shape: f32[8,2,32], index: 4, kind: output, shape index: {0}]
  %s5 = inlined_call_operand.vmem [shape: f32[8,2,32], index: 5, kind: output, shape index: {1}]
  %6 = xla_tuple %s4, %s5
  %s7 = sld [smem:[#allocation0]]
  $region61: #{bilstm_forward.5} parent=0
    _
  %s9 = ssub.s32 1, %s7
  %s10 = scalar_select 0, %s9, %s7
  loop: start=0, step=1, limit=4
  $region2: #{bilstm_forward.5} parent=0 // loop_pre_header
    _
  $region3: #{bilstm_forward.5} parent=0 // loop_header
    %s12 = sphi 0, %s16
    %p13 = scmp.ge.s32.totalorder %s12, 4
    %s22 = sphi 0, %s24
    %s25 = sphi 0, %s22
    %s26 = sphi 0, %s25
    %s42 = sphi 0, %s26
    %s50 = sphi 0, %s52
    %s53 = sphi 0, %s50
    %s54 = sphi 0, %s53
    %s70 = sphi 0, %s54
    %s74 = sphi 0, %s74
    %s76 = sphi 0, %s74
    %s77 = sphi 0, %s76
    %s91 = sphi 0, %s77
    %s95 = sphi 0, %s95
    %s97 = sphi 0, %s95
    %s98 = sphi 0, %s97
    %s112 = sphi 0, %s98
    %s118 = sphi 0, %s120
    %s121 = sphi 0, %s118
    %s122 = sphi 0, %s121
    %s138 = sphi 0, %s122
    %s146 = sphi 0, %s148
    %s149 = sphi 0, %s146
    %s150 = sphi 0, %s149
    %s166 = sphi 0, %s150
  $region4: #{bilstm_forward.5} parent=0 // loop_header_branch
    %15 = sbr.rel (%p13) target = $region8
  $region5: #{bilstm_forward.5} parent=0 // loop_body
    %s17 = ssub.s32 %s12, 1
    %s18 = ssub.s32 %s12, 2
    %s19 = sadd.s32 %s12, 1
    %s20 = ssub.s32 %s12, %s19
    %p21 = scmp.eq.s32.totalorder %s20, 0
    %s23 = sadd.s32 %s22, 1
    %s24 = scalar_select %p21, %s22, %s23
    %p27 = pneg %p21
    %p28 = scmp.eq.s32.totalorder %s12, 1
    %p29 = por %p27, %p28
    %p30 = scmp.ne.s32.totalorder %s22, %s25
    %p31 = scmp.eq.s32.totalorder %s12, 0
    %p32 = por %p30, %p31
    %p33 = scmp.ne.s32.totalorder %s22, %s25
    %p34 = scmp.eq.s32.totalorder %s17, 1
    %p35 = por %p33, %p34
    %p36 = scmp.ne.s32.totalorder %s25, %s26
    %p37 = scmp.eq.s32.totalorder %s17, 0
    %p38 = por %p36, %p37
    %p39 = scmp.ne.s32.totalorder %s25, %s26
    %p40 = scmp.eq.s32.totalorder %s18, 1
    %p41 = por %p39, %p40
    %p43 = scmp.ne.s32.totalorder %s26, %s42
    %p44 = scmp.eq.s32.totalorder %s18, 0
    %p45 = por %p43, %p44
    %s46 = ssub.s32 1, %s12
    %s47 = ssub.s32 1, %s19
    %s48 = ssub.s32 %s46, %s47
    %p49 = scmp.eq.s32.totalorder %s48, 0
    %s51 = sadd.s32 %s50, 1
    %s52 = scalar_select %p49, %s50, %s51
    %p55 = pneg %p49
    %p56 = scmp.eq.s32.totalorder %s12, 1
    %p57 = por %p55, %p56
    %p58 = scmp.ne.s32.totalorder %s50, %s53
    %p59 = scmp.eq.s32.totalorder %s12, 0
    %p60 = por %p58, %p59
    %p61 = scmp.ne.s32.totalorder %s50, %s53
    %p62 = scmp.eq.s32.totalorder %s17, 1
    %p63 = por %p61, %p62
    %p64 = scmp.ne.s32.totalorder %s53, %s54
    %p65 = scmp.eq.s32.totalorder %s17, 0
    %p66 = por %p64, %p65
    %p67 = scmp.ne.s32.totalorder %s53, %s54
    %p68 = scmp.eq.s32.totalorder %s18, 1
    %p69 = por %p67, %p68
    %p71 = scmp.ne.s32.totalorder %s54, %s70
    %p72 = scmp.eq.s32.totalorder %s18, 0
    %p73 = por %p71, %p72
    %s75 = sadd.s32 %s74, 1
    %p78 = scmp.eq.s32.totalorder %s12, 1
    %p79 = scmp.ne.s32.totalorder %s74, %s76
    %p80 = scmp.eq.s32.totalorder %s12, 0
    %p81 = por %p79, %p80
    %p82 = scmp.ne.s32.totalorder %s74, %s76
    %p83 = scmp.eq.s32.totalorder %s17, 1
    %p84 = por %p82, %p83
    %p85 = scmp.ne.s32.totalorder %s76, %s77
    %p86 = scmp.eq.s32.totalorder %s17, 0
    %p87 = por %p85, %p86
    %p88 = scmp.ne.s32.totalorder %s76, %s77
    %p89 = scmp.eq.s32.totalorder %s18, 1
    %p90 = por %p88, %p89
    %p92 = scmp.ne.s32.totalorder %s77, %s91
    %p93 = scmp.eq.s32.totalorder %s18, 0
    %p94 = por %p92, %p93
    %s96 = sadd.s32 %s95, 1
    %p99 = scmp.eq.s32.totalorder %s12, 1
    %p100 = scmp.ne.s32.totalorder %s95, %s97
    %p101 = scmp.eq.s32.totalorder %s12, 0
    %p102 = por %p100, %p101
    %p103 = scmp.ne.s32.totalorder %s95, %s97
    %p104 = scmp.eq.s32.totalorder %s17, 1
    %p105 = por %p103, %p104
    %p106 = scmp.ne.s32.totalorder %s97, %s98
    %p107 = scmp.eq.s32.totalorder %s17, 0
    %p108 = por %p106, %p107
    %p109 = scmp.ne.s32.totalorder %s97, %s98
    %p110 = scmp.eq.s32.totalorder %s18, 1
    %p111 = por %p109, %p110
    %p113 = scmp.ne.s32.totalorder %s98, %s112
    %p114 = scmp.eq.s32.totalorder %s18, 0
    %p115 = por %p113, %p114
    %s116 = ssub.s32 %s12, %s19
    %p117 = scmp.eq.s32.totalorder %s116, 0
    %s119 = sadd.s32 %s118, 1
    %s120 = scalar_select %p117, %s118, %s119
    %p123 = pneg %p117
    %p124 = scmp.eq.s32.totalorder %s12, 1
    %p125 = por %p123, %p124
    %p126 = scmp.ne.s32.totalorder %s118, %s121
    %p127 = scmp.eq.s32.totalorder %s12, 0
    %p128 = por %p126, %p127
    %p129 = scmp.ne.s32.totalorder %s118, %s121
    %p130 = scmp.eq.s32.totalorder %s17, 1
    %p131 = por %p129, %p130
    %p132 = scmp.ne.s32.totalorder %s121, %s122
    %p133 = scmp.eq.s32.totalorder %s17, 0
    %p134 = por %p132, %p133
    %p135 = scmp.ne.s32.totalorder %s121, %s122
    %p136 = scmp.eq.s32.totalorder %s18, 1
    %p137 = por %p135, %p136
    %p139 = scmp.ne.s32.totalorder %s122, %s138
    %p140 = scmp.eq.s32.totalorder %s18, 0
    %p141 = por %p139, %p140
    %s142 = ssub.s32 1, %s12
    %s143 = ssub.s32 1, %s19
    %s144 = ssub.s32 %s142, %s143
    %p145 = scmp.eq.s32.totalorder %s144, 0
    %s147 = sadd.s32 %s146, 1
    %s148 = scalar_select %p145, %s146, %s147
    %p151 = pneg %p145
    %p152 = scmp.eq.s32.totalorder %s12, 1
    %p153 = por %p151, %p152
    %p154 = scmp.ne.s32.totalorder %s146, %s149
    %p155 = scmp.eq.s32.totalorder %s12, 0
    %p156 = por %p154, %p155
    %p157 = scmp.ne.s32.totalorder %s146, %s149
    %p158 = scmp.eq.s32.totalorder %s17, 1
    %p159 = por %p157, %p158
    %p160 = scmp.ne.s32.totalorder %s149, %s150
    %p161 = scmp.eq.s32.totalorder %s17, 0
    %p162 = por %p160, %p161
    %p163 = scmp.ne.s32.totalorder %s149, %s150
    %p164 = scmp.eq.s32.totalorder %s18, 1
    %p165 = por %p163, %p164
    %p167 = scmp.ne.s32.totalorder %s150, %s166
    %p168 = scmp.eq.s32.totalorder %s18, 0
    %p169 = por %p167, %p168
    %p170 = scmp.le.s32.totalorder 1, %s12
    %p171 = scmp.lt.s32.totalorder %s12, 3
    %p172 = pnand %p170, %p171
    %p173 = pneg %p172
    // Predicated region
    $region9: #{bilstm_forward.5} parent=5 // pred_check
      _
    $region10: #{bilstm_forward.5} parent=5 // pred_check_branch
      %175 = sbr.rel (%p172) target = $region12
    $region11: #{bilstm_forward.5} parent=5 // pred_region
      %s176 = ssub.s32 %s12, 1
      // Predicated region
      $region13: #{bilstm_forward.5} parent=11 // pred_check
        %p177 = pneg %p87
      $region14: #{bilstm_forward.5} parent=11 // pred_check_branch
        %179 = sbr.rel (%p177) target = $region16
      $region15: #{bilstm_forward.5} parent=11 // pred_region
        _
      $region16: #{bilstm_forward.5} parent=11 // pred_fallthru
        _
      // Predicated region
      $region17: #{bilstm_forward.5} parent=11 // pred_check
        %p180 = pneg %p108
      $region18: #{bilstm_forward.5} parent=11 // pred_check_branch
        %182 = sbr.rel (%p180) target = $region20
      $region19: #{bilstm_forward.5} parent=11 // pred_region
        _
      $region20: #{bilstm_forward.5} parent=11 // pred_fallthru
        _
    $region12: #{bilstm_forward.5} parent=5 // pred_fallthru
      _
    %p183 = scmp.lt.s32.totalorder %s12, 2
    // Predicated region
    $region21: #{bilstm_forward.5} parent=5 // pred_check
      %p184 = pneg %p183
    $region22: #{bilstm_forward.5} parent=5 // pred_check_branch
      %186 = sbr.rel (%p184) target = $region24
    $region23: #{bilstm_forward.5} parent=5 // pred_region
      // Predicated region
      $region25: #{bilstm_forward.5} parent=23 // pred_check
        %p187 = pneg %p32
      $region26: #{bilstm_forward.5} parent=23 // pred_check_branch
        %189 = sbr.rel (%p187) target = $region28
      $region27: #{bilstm_forward.5} parent=23 // pred_region
        %s190 = smul.u32 4, %s12
        %p191 = scmp.lt.s32.totalorder %s190, 7
        %s192 = scalar_select %p191, %s190, 7
        %s193 = smul.addr %s192, 2
        %s194 = scalar_lea.vmem %s0, %s193
        %s195 = smul.u32 4, %s12
      $region28: #{bilstm_forward.5} parent=23 // pred_fallthru
        _
      // Predicated region
      $region29: #{bilstm_forward.5} parent=23 // pred_check
        %p196 = pneg %p60
      $region30: #{bilstm_forward.5} parent=23 // pred_check_branch
        %198 = sbr.rel (%p196) target = $region32
      $region31: #{bilstm_forward.5} parent=23 // pred_region
        %s199 = ssub.s32 1, %s12
        %s200 = smul.u32 4, %s199
        %p201 = scmp.lt.s32.totalorder %s200, 7
        %s202 = scalar_select %p201, %s200, 7
        %s203 = smul.addr %s202, 2
        %s204 = scalar_lea.vmem %s1, %s203
        %s205 = ssub.s32 1, %s12
        %s206 = smul.u32 4, %s205
      $region32: #{bilstm_forward.5} parent=23 // pred_fallthru
        _
    $region24: #{bilstm_forward.5} parent=5 // pred_fallthru
      _
    %p207 = scmp.le.s32.totalorder 1, %s12
    %p208 = scmp.lt.s32.totalorder %s12, 3
    %p209 = pnand %p207, %p208
    %p210 = pneg %p209
    // Predicated region
    $region33: #{bilstm_forward.5} parent=5 // pred_check
      _
    $region34: #{bilstm_forward.5} parent=5 // pred_check_branch
      %212 = sbr.rel (%p209) target = $region36
    $region35: #{bilstm_forward.5} parent=5 // pred_region
      %s213 = ssub.s32 %s12, 1
      %s214 = smul.u32 4, %s17
      %p215 = scmp.lt.s32.totalorder %s214, 7
      %s216 = scalar_select %p215, %s214, 7
      %s217 = smul.addr %s216, 2
      %s218 = scalar_lea.vmem %s0, %s217
      %p219 = pneg %p38
      %p220 = pneg %p35
      %s221 = ssub.s32 1, %s17
      %s222 = smul.u32 4, %s221
      %p223 = scmp.lt.s32.totalorder %s222, 7
      %s224 = scalar_select %p223, %s222, 7
      %s225 = smul.addr %s224, 2
      %s226 = scalar_lea.vmem %s1, %s225
      %p227 = pneg %p66
      %p228 = pneg %p63
      %p229 = pneg %p87
      %p230 = pneg %p84
      %p231 = pneg %p108
      %p232 = pneg %p105
      %p233 = pneg %p134
      %p234 = pneg %p131
      %s235 = smul.u32 4, %s17
      %p236 = scmp.lt.s32.totalorder %s235, 7
      %s237 = scalar_select %p236, %s235, 7
      %s238 = smul.addr %s237, 2
      %s239 = scalar_lea.vmem %s4, %s238
      %p240 = pneg %p162
      %p241 = pneg %p159
      %s242 = ssub.s32 1, %s17
      %s243 = smul.u32 4, %s242
      %p244 = scmp.lt.s32.totalorder %s243, 7
      %s245 = scalar_select %p244, %s243, 7
      %s246 = smul.addr %s245, 2
      %s247 = scalar_lea.vmem %s5, %s246
      %s248 = smul.u32 4, %s17
      %p249 = scmp.lt.s32.totalorder %s248, 7
      %s250 = scalar_select %p249, %s248, 7
      %s251 = smul.addr %s250, 2
      %s252 = scalar_lea.vmem %s0, %s251
      %s253 = smul.u32 4, %s17
      %s254 = ssub.s32 1, %s17
      %s255 = smul.u32 4, %s254
      %p256 = scmp.lt.s32.totalorder %s255, 7
      %s257 = scalar_select %p256, %s255, 7
      %s258 = smul.addr %s257, 2
      %s259 = scalar_lea.vmem %s1, %s258
      %s260 = ssub.s32 1, %s17
      %s261 = smul.u32 4, %s260
      %s262 = smul.u32 4, %s17
      %p263 = scmp.lt.s32.totalorder %s262, 7
      %s264 = scalar_select %p263, %s262, 7
      %s265 = smul.addr %s264, 2
      %s266 = scalar_lea.vmem %s4, %s265
      %s267 = smul.u32 4, %s17
      %s268 = ssub.s32 1, %s17
      %s269 = smul.u32 4, %s268
      %p270 = scmp.lt.s32.totalorder %s269, 7
      %s271 = scalar_select %p270, %s269, 7
      %s272 = smul.addr %s271, 2
      %s273 = scalar_lea.vmem %s5, %s272
      %s274 = ssub.s32 1, %s17
      %s275 = smul.u32 4, %s274
      %p276 = scmp.eq.s32.totalorder %s17, 0
      // Predicated region
      $region37: #{bilstm_forward.5} parent=35 // pred_check
        %p277 = pneg %p276
      $region38: #{bilstm_forward.5} parent=35 // pred_check_branch
        %279 = sbr.rel (%p277) target = $region40
      $region39: #{bilstm_forward.5} parent=35 // pred_region
        %vm280 = vcmask 254976
        %281 = vst.msk [vmem:[#allocation2] sm:$0x3] %vm280, 0.0
        %282 = vst.msk [vmem:[#allocation3] sm:$0x3] %vm280, 0.0
        %283 = vst.msk [vmem:[#allocation4] sm:$0x3] %vm280, 0.0
        %284 = vst.msk [vmem:[#allocation5] sm:$0x3] %vm280, 0.0
      $region40: #{bilstm_forward.5} parent=35 // pred_fallthru
        _
      %v285 = vld [vmem:[%s2] sm:$0xff]
      %v286 = vld [vmem:[%s2 + $0x8] sm:$0xff]
      %v287 = vld [vmem:[%s2 + $0x10] sm:$0xff]
      %v288 = vld [vmem:[%s2 + $0x18] sm:$0xff]
      %v289 = vld [vmem:[%s3] sm:$0xff]
      %v290 = vld [vmem:[%s3 + $0x8] sm:$0xff]
      %v291 = vld [vmem:[%s3 + $0x10] sm:$0xff]
      %v292 = vld [vmem:[%s3 + $0x18] sm:$0xff]
      %v293 = vld [vmem:[#allocation2] sm:$0x3]
      %vm294 = vcmask 261120
      %v296 = vsel %vm294, %v293, 0
      %298 = vmatprep.subr.mxu0 0.0
      %299 = vmatpush1.msra.mxu0 %v285
      %300 = vmatprep.subr.mxu0 0.0
      %301 = vmatpush1.msra.mxu0 %v286
      %302 = vmatprep.subr.mxu0 0.0
      %303 = vmatpush1.msra.mxu0 %v287
      %304 = vmatprep.subr.mxu0 0.0
      %305 = vmatpush1.msra.mxu0 %v288
      %306 = vmatprep.subr.mxu0 0.0
      %307 = vmatpush1.msra.mxu0 0.0
      %308 = vmatprep.subr.mxu0 0.0
      %309 = vmatpush1.msra.mxu0 0.0
      %310 = vmatprep.subr.mxu0 0.0
      %311 = vmatpush1.msra.mxu0 0.0
      %312 = vmatprep.subr.mxu0 0.0
      %313 = vmatpush1.msra.mxu0 0.0
      %314 = vmatprep.subr.mxu0 0.0
      %315 = vmatpush1.msra.mxu0 0.0
      %316 = vmatprep.subr.mxu0 0.0
      %317 = vmatpush1.msra.mxu0 0.0
      %318 = vmatprep.subr.mxu0 0.0
      %319 = vmatpush1.msra.mxu0 0.0
      %320 = vmatprep.subr.mxu0 0.0
      %321 = vmatpush1.msra.mxu0 0.0
      %322 = vmatprep.subr.mxu0 0.0
      %323 = vmatpush1.msra.mxu0 0.0
      %324 = vmatprep.subr.mxu0 0.0
      %325 = vmatpush1.msra.mxu0 0.0
      %326 = vmatprep.subr.mxu0 0.0
      %327 = vmatpush1.msra.mxu0 0.0
      %328 = vmatprep.subr.mxu0 0.0
      %329 = vmatpush1.msra.mxu0 0.0
      %330 = vmatprep.subr.mxu0 0.0
      %331 = vmatpush1.msra.mxu0 0.0
      %332 = vmatprep.subr.mxu0 0.0
      %333 = vmatpush1.msra.mxu0 0.0
      %334 = vmatprep.subr.mxu0 0.0
      %335 = vmatpush1.msra.mxu0 0.0
      %336 = vmatprep.subr.mxu0 0.0
      %337 = vmatpush1.msra.mxu0 0.0
      %338 = vmatprep.subr.mxu0 0.0
      %339 = vmatpush1.msra.mxu0 0.0
      %340 = vmatprep.subr.mxu0 0.0
      %341 = vmatpush1.msra.mxu0 0.0
      %342 = vmatprep.subr.mxu0 0.0
      %343 = vmatpush1.msra.mxu0 0.0
      %344 = vmatprep.subr.mxu0 0.0
      %345 = vmatpush1.msra.mxu0 0.0
      %346 = vmatprep.subr.mxu0 0.0
      %347 = vmatpush1.msra.mxu0 0.0
      %348 = vmatprep.subr.mxu0 0.0
      %349 = vmatpush1.msra.mxu0 0.0
      %350 = vmatprep.subr.mxu0 0.0
      %351 = vmatpush1.msra.mxu0 0.0
      %352 = vmatprep.subr.mxu0 0.0
      %353 = vmatpush1.msra.mxu0 0.0
      %354 = vmatprep.subr.mxu0 0.0
      %355 = vmatpush1.msra.mxu0 0.0
      %356 = vmatprep.subr.mxu0 0.0
      %357 = vmatpush1.msra.mxu0 0.0
      %358 = vmatprep.subr.mxu0 0.0
      %359 = vmatpush1.msra.mxu0 0.0
      %360 = vmatprep.subr.mxu0 0.0
      %361 = vmatpush1.msra.mxu0 0.0
      %362 = vmatprep.mubr.f32.mxu0 0.0
      %363 = vmatmul.mubr.f32.gmra.mrb[0].mxu0 %v296
      %v364 = vpop.f32.mrb[0].mxu0
      %v365 = vadd.f32 0.0, %v364
      %v366 = vpop.f32.mrb[0].mxu0
      %367 = vdwg.mxu0
      %v368 = vld [vmem:[#allocation3] sm:$0x3]
      %v370 = vsel %vm294, %v368, 0
      %372 = vmatprep.subr.mxu0 0.0
      %373 = vmatpush1.msra.mxu0 %v289
      %374 = vmatprep.subr.mxu0 0.0
      %375 = vmatpush1.msra.mxu0 %v290
      %376 = vmatprep.subr.mxu0 0.0
      %377 = vmatpush1.msra.mxu0 %v291
      %378 = vmatprep.subr.mxu0 0.0
      %379 = vmatpush1.msra.mxu0 %v292
      %380 = vmatprep.subr.mxu0 0.0
      %381 = vmatpush1.msra.mxu0 0.0
      %382 = vmatprep.subr.mxu0 0.0
      %383 = vmatpush1.msra.mxu0 0.0
      %384 = vmatprep.subr.mxu0 0.0
      %385 = vmatpush1.msra.mxu0 0.0
      %386 = vmatprep.subr.mxu0 0.0
      %387 = vmatpush1.msra.mxu0 0.0
      %388 = vmatprep.subr.mxu0 0.0
      %389 = vmatpush1.msra.mxu0 0.0
      %390 = vmatprep.subr.mxu0 0.0
      %391 = vmatpush1.msra.mxu0 0.0
      %392 = vmatprep.subr.mxu0 0.0
      %393 = vmatpush1.msra.mxu0 0.0
      %394 = vmatprep.subr.mxu0 0.0
      %395 = vmatpush1.msra.mxu0 0.0
      %396 = vmatprep.subr.mxu0 0.0
      %397 = vmatpush1.msra.mxu0 0.0
      %398 = vmatprep.subr.mxu0 0.0
      %399 = vmatpush1.msra.mxu0 0.0
      %400 = vmatprep.subr.mxu0 0.0
      %401 = vmatpush1.msra.mxu0 0.0
      %402 = vmatprep.subr.mxu0 0.0
      %403 = vmatpush1.msra.mxu0 0.0
      %404 = vmatprep.subr.mxu0 0.0
      %405 = vmatpush1.msra.mxu0 0.0
      %406 = vmatprep.subr.mxu0 0.0
      %407 = vmatpush1.msra.mxu0 0.0
      %408 = vmatprep.subr.mxu0 0.0
      %409 = vmatpush1.msra.mxu0 0.0
      %410 = vmatprep.subr.mxu0 0.0
      %411 = vmatpush1.msra.mxu0 0.0
      %412 = vmatprep.subr.mxu0 0.0
      %413 = vmatpush1.msra.mxu0 0.0
      %414 = vmatprep.subr.mxu0 0.0
      %415 = vmatpush1.msra.mxu0 0.0
      %416 = vmatprep.subr.mxu0 0.0
      %417 = vmatpush1.msra.mxu0 0.0
      %418 = vmatprep.subr.mxu0 0.0
      %419 = vmatpush1.msra.mxu0 0.0
      %420 = vmatprep.subr.mxu0 0.0
      %421 = vmatpush1.msra.mxu0 0.0
      %422 = vmatprep.subr.mxu0 0.0
      %423 = vmatpush1.msra.mxu0 0.0
      %424 = vmatprep.subr.mxu0 0.0
      %425 = vmatpush1.msra.mxu0 0.0
      %426 = vmatprep.subr.mxu0 0.0
      %427 = vmatpush1.msra.mxu0 0.0
      %428 = vmatprep.subr.mxu0 0.0
      %429 = vmatpush1.msra.mxu0 0.0
      %430 = vmatprep.subr.mxu0 0.0
      %431 = vmatpush1.msra.mxu0 0.0
      %432 = vmatprep.subr.mxu0 0.0
      %433 = vmatpush1.msra.mxu0 0.0
      %434 = vmatprep.subr.mxu0 0.0
      %435 = vmatpush1.msra.mxu0 0.0
      %436 = vmatprep.mubr.f32.mxu0 0.0
      %437 = vmatmul.mubr.f32.gmra.mrb[0].mxu0 %v370
      %v438 = vpop.f32.mrb[0].mxu0
      %v439 = vadd.f32 0.0, %v438
      %v440 = vpop.f32.mrb[0].mxu0
      %441 = vdwg.mxu0
      %v442 = vld [vmem:[%s252] sm:$0x3]
      %v443 = vadd.f32 %v442, %v365
      %s444 = scalar_lea.vmem %s259, 6
      %v445 = vld [vmem:[%s444] sm:$0x3]
      %v446 = vadd.f32 %v445, %v439
      %v447 = vxor.u32 %v443, 2147483648
      %v448 = vmul.f32 %v447, 1.442695
      %v449 = vpow.pop %v448
      %v450 = vadd.f32 %v449, 1.0
      %v451 = vrcp.pop %v450
      %v452 = vmul.f32 1.0, %v451
      %v453 = vxor.u32 %v446, 2147483648
      %v454 = vmul.f32 %v453, 1.442695
      %v455 = vpow.pop %v454
      %v456 = vadd.f32 %v455, 1.0
      %v457 = vrcp.pop %v456
      %v458 = vmul.f32 1.0, %v457
      %v459 = vtanh.pop %v443
      %v460 = vtanh.pop %v446
      %v461 = vld [vmem:[#allocation4] sm:$0x3]
      %463 = vrot.lane.b32.xlu0 %v461, 32
      %v464 = vpop.permute.xlu0 %463
      %v466 = vmul.f32 %v452, %v464
      %468 = vrot.lane.b32.xlu0 %v459, 32
      %v469 = vpop.permute.xlu0 %468
      %v471 = vmul.f32 %v452, %v469
      %473 = vrot.lane.b32.xlu0 %v471, 32
      %v474 = vpop.permute.xlu0 %473
      %v476 = vadd.f32 %v466, %v474
      %v477 = vld [vmem:[#allocation5] sm:$0x3]
      %479 = vrot.lane.b32.xlu0 %v477, 32
      %v480 = vpop.permute.xlu0 %479
      %v482 = vmul.f32 %v458, %v480
      %484 = vrot.lane.b32.xlu0 %v460, 32
      %v485 = vpop.permute.xlu0 %484
      %v487 = vmul.f32 %v458, %v485
      %489 = vrot.lane.b32.xlu0 %v487, 32
      %v490 = vpop.permute.xlu0 %489
      %v492 = vadd.f32 %v482, %v490
      %v493 = vtanh.pop %v476
      %495 = vrot.lane.b32.xlu0 %v493, 32
      %v496 = vpop.permute.xlu0 %495
      %v498 = vmul.f32 %v452, %v496
      %v499 = vtanh.pop %v492
      %501 = vrot.lane.b32.xlu0 %v499, 32
      %v502 = vpop.permute.xlu0 %501
      %v504 = vmul.f32 %v458, %v502
      %506 = vrot.lane.b32.xlu0 %v476, 96
      %v507 = vpop.permute.xlu0 %506
      %vm509 = vcmask 254976
      %510 = vst.msk [vmem:[#allocation4] sm:$0x3] %vm509, %v507
      %512 = vrot.lane.b32.xlu0 %v492, 96
      %v513 = vpop.permute.xlu0 %512
      %515 = vst.msk [vmem:[#allocation5] sm:$0x3] %vm509, %v513
      %517 = vrot.lane.b32.xlu0 %v498, 64
      %v518 = vpop.permute.xlu0 %517
      %520 = vst.msk [vmem:[#allocation2] sm:$0x3] %vm509, %v518
      %522 = vrot.lane.b32.xlu0 %v504, 64
      %v523 = vpop.permute.xlu0 %522
      %525 = vst.msk [vmem:[#allocation3] sm:$0x3] %vm509, %v523
      %526 = vst.msk [vmem:[%s266] sm:$0x3] %vm509, %v518
      %s527 = scalar_lea.vmem %s273, 6
      %528 = vst.msk [vmem:[%s527] sm:$0x3] %vm509, %v523
      %v529 = vld [vmem:[#allocation2] sm:$0x3]
      %v531 = vsel %vm294, %v529, 0
      %533 = vmatprep.subr.mxu0 0.0
      %534 = vmatpush1.msra.mxu0 %v285
      %535 = vmatprep.subr.mxu0 0.0
      %536 = vmatpush1.msra.mxu0 %v286
      %537 = vmatprep.subr.mxu0 0.0
      %538 = vmatpush1.msra.mxu0 %v287
      %539 = vmatprep.subr.mxu0 0.0
      %540 = vmatpush1.msra.mxu0 %v288
      %541 = vmatprep.subr.mxu0 0.0
      %542 = vmatpush1.msra.mxu0 0.0
      %543 = vmatprep.subr.mxu0 0.0
      %544 = vmatpush1.msra.mxu0 0.0
      %545 = vmatprep.subr.mxu0 0.0
      %546 = vmatpush1.msra.mxu0 0.0
      %547 = vmatprep.subr.mxu0 0.0
      %548 = vmatpush1.msra.mxu0 0.0
      %549 = vmatprep.subr.mxu0 0.0
      %550 = vmatpush1.msra.mxu0 0.0
      %551 = vmatprep.subr.mxu0 0.0
      %552 = vmatpush1.msra.mxu0 0.0
      %553 = vmatprep.subr.mxu0 0.0
      %554 = vmatpush1.msra.mxu0 0.0
      %555 = vmatprep.subr.mxu0 0.0
      %556 = vmatpush1.msra.mxu0 0.0
      %557 = vmatprep.subr.mxu0 0.0
      %558 = vmatpush1.msra.mxu0 0.0
      %559 = vmatprep.subr.mxu0 0.0
      %560 = vmatpush1.msra.mxu0 0.0
      %561 = vmatprep.subr.mxu0 0.0
      %562 = vmatpush1.msra.mxu0 0.0
      %563 = vmatprep.subr.mxu0 0.0
      %564 = vmatpush1.msra.mxu0 0.0
      %565 = vmatprep.subr.mxu0 0.0
      %566 = vmatpush1.msra.mxu0 0.0
      %567 = vmatprep.subr.mxu0 0.0
      %568 = vmatpush1.msra.mxu0 0.0
      %569 = vmatprep.subr.mxu0 0.0
      %570 = vmatpush1.msra.mxu0 0.0
      %571 = vmatprep.subr.mxu0 0.0
      %572 = vmatpush1.msra.mxu0 0.0
      %573 = vmatprep.subr.mxu0 0.0
      %574 = vmatpush1.msra.mxu0 0.0
      %575 = vmatprep.subr.mxu0 0.0
      %576 = vmatpush1.msra.mxu0 0.0
      %577 = vmatprep.subr.mxu0 0.0
      %578 = vmatpush1.msra.mxu0 0.0
      %579 = vmatprep.subr.mxu0 0.0
      %580 = vmatpush1.msra.mxu0 0.0
      %581 = vmatprep.subr.mxu0 0.0
      %582 = vmatpush1.msra.mxu0 0.0
      %583 = vmatprep.subr.mxu0 0.0
      %584 = vmatpush1.msra.mxu0 0.0
      %585 = vmatprep.subr.mxu0 0.0
      %586 = vmatpush1.msra.mxu0 0.0
      %587 = vmatprep.subr.mxu0 0.0
      %588 = vmatpush1.msra.mxu0 0.0
      %589 = vmatprep.subr.mxu0 0.0
      %590 = vmatpush1.msra.mxu0 0.0
      %591 = vmatprep.subr.mxu0 0.0
      %592 = vmatpush1.msra.mxu0 0.0
      %593 = vmatprep.subr.mxu0 0.0
      %594 = vmatpush1.msra.mxu0 0.0
      %595 = vmatprep.subr.mxu0 0.0
      %596 = vmatpush1.msra.mxu0 0.0
      %597 = vmatprep.mubr.f32.mxu0 0.0
      %598 = vmatmul.mubr.f32.gmra.mrb[0].mxu0 %v531
      %v599 = vpop.f32.mrb[0].mxu0
      %v600 = vadd.f32 0.0, %v599
      %v601 = vpop.f32.mrb[0].mxu0
      %602 = vdwg.mxu0
      %v603 = vld [vmem:[#allocation3] sm:$0x3]
      %v605 = vsel %vm294, %v603, 0
      %607 = vmatprep.subr.mxu0 0.0
      %608 = vmatpush1.msra.mxu0 %v289
      %609 = vmatprep.subr.mxu0 0.0
      %610 = vmatpush1.msra.mxu0 %v290
      %611 = vmatprep.subr.mxu0 0.0
      %612 = vmatpush1.msra.mxu0 %v291
      %613 = vmatprep.subr.mxu0 0.0
      %614 = vmatpush1.msra.mxu0 %v292
      %615 = vmatprep.subr.mxu0 0.0
      %616 = vmatpush1.msra.mxu0 0.0
      %617 = vmatprep.subr.mxu0 0.0
      %618 = vmatpush1.msra.mxu0 0.0
      %619 = vmatprep.subr.mxu0 0.0
      %620 = vmatpush1.msra.mxu0 0.0
      %621 = vmatprep.subr.mxu0 0.0
      %622 = vmatpush1.msra.mxu0 0.0
      %623 = vmatprep.subr.mxu0 0.0
      %624 = vmatpush1.msra.mxu0 0.0
      %625 = vmatprep.subr.mxu0 0.0
      %626 = vmatpush1.msra.mxu0 0.0
      %627 = vmatprep.subr.mxu0 0.0
      %628 = vmatpush1.msra.mxu0 0.0
      %629 = vmatprep.subr.mxu0 0.0
      %630 = vmatpush1.msra.mxu0 0.0
      %631 = vmatprep.subr.mxu0 0.0
      %632 = vmatpush1.msra.mxu0 0.0
      %633 = vmatprep.subr.mxu0 0.0
      %634 = vmatpush1.msra.mxu0 0.0
      %635 = vmatprep.subr.mxu0 0.0
      %636 = vmatpush1.msra.mxu0 0.0
      %637 = vmatprep.subr.mxu0 0.0
      %638 = vmatpush1.msra.mxu0 0.0
      %639 = vmatprep.subr.mxu0 0.0
      %640 = vmatpush1.msra.mxu0 0.0
      %641 = vmatprep.subr.mxu0 0.0
      %642 = vmatpush1.msra.mxu0 0.0
      %643 = vmatprep.subr.mxu0 0.0
      %644 = vmatpush1.msra.mxu0 0.0
      %645 = vmatprep.subr.mxu0 0.0
      %646 = vmatpush1.msra.mxu0 0.0
      %647 = vmatprep.subr.mxu0 0.0
      %648 = vmatpush1.msra.mxu0 0.0
      %649 = vmatprep.subr.mxu0 0.0
      %650 = vmatpush1.msra.mxu0 0.0
      %651 = vmatprep.subr.mxu0 0.0
      %652 = vmatpush1.msra.mxu0 0.0
      %653 = vmatprep.subr.mxu0 0.0
      %654 = vmatpush1.msra.mxu0 0.0
      %655 = vmatprep.subr.mxu0 0.0
      %656 = vmatpush1.msra.mxu0 0.0
      %657 = vmatprep.subr.mxu0 0.0
      %658 = vmatpush1.msra.mxu0 0.0
      %659 = vmatprep.subr.mxu0 0.0
      %660 = vmatpush1.msra.mxu0 0.0
      %661 = vmatprep.subr.mxu0 0.0
      %662 = vmatpush1.msra.mxu0 0.0
      %663 = vmatprep.subr.mxu0 0.0
      %664 = vmatpush1.msra.mxu0 0.0
      %665 = vmatprep.subr.mxu0 0.0
      %666 = vmatpush1.msra.mxu0 0.0
      %667 = vmatprep.subr.mxu0 0.0
      %668 = vmatpush1.msra.mxu0 0.0
      %669 = vmatprep.subr.mxu0 0.0
      %670 = vmatpush1.msra.mxu0 0.0
      %671 = vmatprep.mubr.f32.mxu0 0.0
      %672 = vmatmul.mubr.f32.gmra.mrb[0].mxu0 %v605
      %v673 = vpop.f32.mrb[0].mxu0
      %v674 = vadd.f32 0.0, %v673
      %v675 = vpop.f32.mrb[0].mxu0
      %676 = vdwg.mxu0
      %s677 = scalar_lea.vmem %s252, 2
      %v678 = vld [vmem:[%s677] sm:$0x3]
      %v679 = vadd.f32 %v678, %v600
      %s680 = scalar_lea.vmem %s259, 4
      %v681 = vld [vmem:[%s680] sm:$0x3]
      %v682 = vadd.f32 %v681, %v674
      %v683 = vxor.u32 %v679, 2147483648
      %v684 = vmul.f32 %v683, 1.442695
      %v685 = vpow.pop %v684
      %v686 = vadd.f32 %v685, 1.0
      %v687 = vrcp.pop %v686
      %v688 = vmul.f32 1.0, %v687
      %v689 = vxor.u32 %v682, 2147483648
      %v690 = vmul.f32 %v689, 1.442695
      %v691 = vpow.pop %v690
      %v692 = vadd.f32 %v691, 1.0
      %v693 = vrcp.pop %v692
      %v694 = vmul.f32 1.0, %v693
      %v695 = vtanh.pop %v679
      %v696 = vtanh.pop %v682
      %v697 = vld [vmem:[#allocation4] sm:$0x3]
      %699 = vrot.lane.b32.xlu0 %v697, 32
      %v700 = vpop.permute.xlu0 %699
      %v702 = vmul.f32 %v688, %v700
      %704 = vrot.lane.b32.xlu0 %v695, 32
      %v705 = vpop.permute.xlu0 %704
      %v707 = vmul.f32 %v688, %v705
      %709 = vrot.lane.b32.xlu0 %v707, 32
      %v710 = vpop.permute.xlu0 %709
      %v712 = vadd.f32 %v702, %v710
      %v713 = vld [vmem:[#allocation5] sm:$0x3]
      %715 = vrot.lane.b32.xlu0 %v713, 32
      %v716 = vpop.permute.xlu0 %715
      %v718 = vmul.f32 %v694, %v716
      %720 = vrot.lane.b32.xlu0 %v696, 32
      %v721 = vpop.permute.xlu0 %720
      %v723 = vmul.f32 %v694, %v721
      %725 = vrot.lane.b32.xlu0 %v723, 32
      %v726 = vpop.permute.xlu0 %725
      %v728 = vadd.f32 %v718, %v726
      %v729 = vtanh.pop %v712
      %731 = vrot.lane.b32.xlu0 %v729, 32
      %v732 = vpop.permute.xlu0 %731
      %v734 = vmul.f32 %v688, %v732
      %v735 = vtanh.pop %v728
      %737 = vrot.lane.b32.xlu0 %v735, 32
      %v738 = vpop.permute.xlu0 %737
      %v740 = vmul.f32 %v694, %v738
      %742 = vrot.lane.b32.xlu0 %v712, 96
      %v743 = vpop.permute.xlu0 %742
      %745 = vst.msk [vmem:[#allocation4] sm:$0x3] %vm509, %v743
      %747 = vrot.lane.b32.xlu0 %v728, 96
      %v748 = vpop.permute.xlu0 %747
      %750 = vst.msk [vmem:[#allocation5] sm:$0x3] %vm509, %v748
      %752 = vrot.lane.b32.xlu0 %v734, 64
      %v753 = vpop.permute.xlu0 %752
      %755 = vst.msk [vmem:[#allocation2] sm:$0x3] %vm509, %v753
      %757 = vrot.lane.b32.xlu0 %v740, 64
      %v758 = vpop.permute.xlu0 %757
      %760 = vst.msk [vmem:[#allocation3] sm:$0x3] %vm509, %v758
      %s761 = scalar_lea.vmem %s266, 2
      %762 = vst.msk [vmem:[%s761] sm:$0x3] %vm509, %v753
      %s763 = scalar_lea.vmem %s273, 4
      %764 = vst.msk [vmem:[%s763] sm:$0x3] %vm509, %v758
      %v765 = vld [vmem:[#allocation2] sm:$0x3]
      %v767 = vsel %vm294, %v765, 0
      %769 = vmatprep.subr.mxu0 0.0
      %770 = vmatpush1.msra.mxu0 %v285
      %771 = vmatprep.subr.mxu0 0.0
      %772 = vmatpush1.msra.mxu0 %v286
      %773 = vmatprep.subr.mxu0 0.0
      %774 = vmatpush1.msra.mxu0 %v287
      %775 = vmatprep.subr.mxu0 0.0
      %776 = vmatpush1.msra.mxu0 %v288
      %777 = vmatprep.subr.mxu0 0.0
      %778 = vmatpush1.msra.mxu0 0.0
      %779 = vmatprep.subr.mxu0 0.0
      %780 = vmatpush1.msra.mxu0 0.0
      %781 = vmatprep.subr.mxu0 0.0
      %782 = vmatpush1.msra.mxu0 0.0
      %783 = vmatprep.subr.mxu0 0.0
      %784 = vmatpush1.msra.mxu0 0.0
      %785 = vmatprep.subr.mxu0 0.0
      %786 = vmatpush1.msra.mxu0 0.0
      %787 = vmatprep.subr.mxu0 0.0
      %788 = vmatpush1.msra.mxu0 0.0
      %789 = vmatprep.subr.mxu0 0.0
      %790 = vmatpush1.msra.mxu0 0.0
      %791 = vmatprep.subr.mxu0 0.0
      %792 = vmatpush1.msra.mxu0 0.0
      %793 = vmatprep.subr.mxu0 0.0
      %794 = vmatpush1.msra.mxu0 0.0
      %795 = vmatprep.subr.mxu0 0.0
      %796 = vmatpush1.msra.mxu0 0.0
      %797 = vmatprep.subr.mxu0 0.0
      %798 = vmatpush1.msra.mxu0 0.0
      %799 = vmatprep.subr.mxu0 0.0
      %800 = vmatpush1.msra.mxu0 0.0
      %801 = vmatprep.subr.mxu0 0.0
      %802 = vmatpush1.msra.mxu0 0.0
      %803 = vmatprep.subr.mxu0 0.0
      %804 = vmatpush1.msra.mxu0 0.0
      %805 = vmatprep.subr.mxu0 0.0
      %806 = vmatpush1.msra.mxu0 0.0
      %807 = vmatprep.subr.mxu0 0.0
      %808 = vmatpush1.msra.mxu0 0.0
      %809 = vmatprep.subr.mxu0 0.0
      %810 = vmatpush1.msra.mxu0 0.0
      %811 = vmatprep.subr.mxu0 0.0
      %812 = vmatpush1.msra.mxu0 0.0
      %813 = vmatprep.subr.mxu0 0.0
      %814 = vmatpush1.msra.mxu0 0.0
      %815 = vmatprep.subr.mxu0 0.0
      %816 = vmatpush1.msra.mxu0 0.0
      %817 = vmatprep.subr.mxu0 0.0
      %818 = vmatpush1.msra.mxu0 0.0
      %819 = vmatprep.subr.mxu0 0.0
      %820 = vmatpush1.msra.mxu0 0.0
      %821 = vmatprep.subr.mxu0 0.0
      %822 = vmatpush1.msra.mxu0 0.0
      %823 = vmatprep.subr.mxu0 0.0
      %824 = vmatpush1.msra.mxu0 0.0
      %825 = vmatprep.subr.mxu0 0.0
      %826 = vmatpush1.msra.mxu0 0.0
      %827 = vmatprep.subr.mxu0 0.0
      %828 = vmatpush1.msra.mxu0 0.0
      %829 = vmatprep.subr.mxu0 0.0
      %830 = vmatpush1.msra.mxu0 0.0
      %831 = vmatprep.subr.mxu0 0.0
      %832 = vmatpush1.msra.mxu0 0.0
      %833 = vmatprep.mubr.f32.mxu0 0.0
      %834 = vmatmul.mubr.f32.gmra.mrb[0].mxu0 %v767
      %v835 = vpop.f32.mrb[0].mxu0
      %v836 = vadd.f32 0.0, %v835
      %v837 = vpop.f32.mrb[0].mxu0
      %838 = vdwg.mxu0
      %v839 = vld [vmem:[#allocation3] sm:$0x3]
      %v841 = vsel %vm294, %v839, 0
      %843 = vmatprep.subr.mxu0 0.0
      %844 = vmatpush1.msra.mxu0 %v289
      %845 = vmatprep.subr.mxu0 0.0
      %846 = vmatpush1.msra.mxu0 %v290
      %847 = vmatprep.subr.mxu0 0.0
      %848 = vmatpush1.msra.mxu0 %v291
      %849 = vmatprep.subr.mxu0 0.0
      %850 = vmatpush1.msra.mxu0 %v292
      %851 = vmatprep.subr.mxu0 0.0
      %852 = vmatpush1.msra.mxu0 0.0
      %853 = vmatprep.subr.mxu0 0.0
      %854 = vmatpush1.msra.mxu0 0.0
      %855 = vmatprep.subr.mxu0 0.0
      %856 = vmatpush1.msra.mxu0 0.0
      %857 = vmatprep.subr.mxu0 0.0
      %858 = vmatpush1.msra.mxu0 0.0
      %859 = vmatprep.subr.mxu0 0.0
      %860 = vmatpush1.msra.mxu0 0.0
      %861 = vmatprep.subr.mxu0 0.0
      %862 = vmatpush1.msra.mxu0 0.0
      %863 = vmatprep.subr.mxu0 0.0
      %864 = vmatpush1.msra.mxu0 0.0
      %865 = vmatprep.subr.mxu0 0.0
      %866 = vmatpush1.msra.mxu0 0.0
      %867 = vmatprep.subr.mxu0 0.0
      %868 = vmatpush1.msra.mxu0 0.0
      %869 = vmatprep.subr.mxu0 0.0
      %870 = vmatpush1.msra.mxu0 0.0
      %871 = vmatprep.subr.mxu0 0.0
      %872 = vmatpush1.msra.mxu0 0.0
      %873 = vmatprep.subr.mxu0 0.0
      %874 = vmatpush1.msra.mxu0 0.0
      %875 = vmatprep.subr.mxu0 0.0
      %876 = vmatpush1.msra.mxu0 0.0
      %877 = vmatprep.subr.mxu0 0.0
      %878 = vmatpush1.msra.mxu0 0.0
      %879 = vmatprep.subr.mxu0 0.0
      %880 = vmatpush1.msra.mxu0 0.0
      %881 = vmatprep.subr.mxu0 0.0
      %882 = vmatpush1.msra.mxu0 0.0
      %883 = vmatprep.subr.mxu0 0.0
      %884 = vmatpush1.msra.mxu0 0.0
      %885 = vmatprep.subr.mxu0 0.0
      %886 = vmatpush1.msra.mxu0 0.0
      %887 = vmatprep.subr.mxu0 0.0
      %888 = vmatpush1.msra.mxu0 0.0
      %889 = vmatprep.subr.mxu0 0.0
      %890 = vmatpush1.msra.mxu0 0.0
      %891 = vmatprep.subr.mxu0 0.0
      %892 = vmatpush1.msra.mxu0 0.0
      %893 = vmatprep.subr.mxu0 0.0
      %894 = vmatpush1.msra.mxu0 0.0
      %895 = vmatprep.subr.mxu0 0.0
      %896 = vmatpush1.msra.mxu0 0.0
      %897 = vmatprep.subr.mxu0 0.0
      %898 = vmatpush1.msra.mxu0 0.0
      %899 = vmatprep.subr.mxu0 0.0
      %900 = vmatpush1.msra.mxu0 0.0
      %901 = vmatprep.subr.mxu0 0.0
      %902 = vmatpush1.msra.mxu0 0.0
      %903 = vmatprep.subr.mxu0 0.0
      %904 = vmatpush1.msra.mxu0 0.0
      %905 = vmatprep.subr.mxu0 0.0
      %906 = vmatpush1.msra.mxu0 0.0
      %907 = vmatprep.mubr.f32.mxu0 0.0
      %908 = vmatmul.mubr.f32.gmra.mrb[0].mxu0 %v841
      %v909 = vpop.f32.mrb[0].mxu0
      %v910 = vadd.f32 0.0, %v909
      %v911 = vpop.f32.mrb[0].mxu0
      %912 = vdwg.mxu0
      %s913 = scalar_lea.vmem %s252, 4
      %v914 = vld [vmem:[%s913] sm:$0x3]
      %v915 = vadd.f32 %v914, %v836
      %s916 = scalar_lea.vmem %s259, 2
      %v917 = vld [vmem:[%s916] sm:$0x3]
      %v918 = vadd.f32 %v917, %v910
      %v919 = vxor.u32 %v915, 2147483648
      %v920 = vmul.f32 %v919, 1.442695
      %v921 = vpow.pop %v920
      %v922 = vadd.f32 %v921, 1.0
      %v923 = vrcp.pop %v922
      %v924 = vmul.f32 1.0, %v923
      %v925 = vxor.u32 %v918, 2147483648
      %v926 = vmul.f32 %v925, 1.442695
      %v927 = vpow.pop %v926
      %v928 = vadd.f32 %v927, 1.0
      %v929 = vrcp.pop %v928
      %v930 = vmul.f32 1.0, %v929
      %v931 = vtanh.pop %v915
      %v932 = vtanh.pop %v918
      %v933 = vld [vmem:[#allocation4] sm:$0x3]
      %935 = vrot.lane.b32.xlu0 %v933, 32
      %v936 = vpop.permute.xlu0 %935
      %v938 = vmul.f32 %v924, %v936
      %940 = vrot.lane.b32.xlu0 %v931, 32
      %v941 = vpop.permute.xlu0 %940
      %v943 = vmul.f32 %v924, %v941
      %945 = vrot.lane.b32.xlu0 %v943, 32
      %v946 = vpop.permute.xlu0 %945
      %v948 = vadd.f32 %v938, %v946
      %v949 = vld [vmem:[#allocation5] sm:$0x3]
      %951 = vrot.lane.b32.xlu0 %v949, 32
      %v952 = vpop.permute.xlu0 %951
      %v954 = vmul.f32 %v930, %v952
      %956 = vrot.lane.b32.xlu0 %v932, 32
      %v957 = vpop.permute.xlu0 %956
      %v959 = vmul.f32 %v930, %v957
      %961 = vrot.lane.b32.xlu0 %v959, 32
      %v962 = vpop.permute.xlu0 %961
      %v964 = vadd.f32 %v954, %v962
      %v965 = vtanh.pop %v948
      %967 = vrot.lane.b32.xlu0 %v965, 32
      %v968 = vpop.permute.xlu0 %967
      %v970 = vmul.f32 %v924, %v968
      %v971 = vtanh.pop %v964
      %973 = vrot.lane.b32.xlu0 %v971, 32
      %v974 = vpop.permute.xlu0 %973
      %v976 = vmul.f32 %v930, %v974
      %978 = vrot.lane.b32.xlu0 %v948, 96
      %v979 = vpop.permute.xlu0 %978
      %981 = vst.msk [vmem:[#allocation4] sm:$0x3] %vm509, %v979
      %983 = vrot.lane.b32.xlu0 %v964, 96
      %v984 = vpop.permute.xlu0 %983
      %986 = vst.msk [vmem:[#allocation5] sm:$0x3] %vm509, %v984
      %988 = vrot.lane.b32.xlu0 %v970, 64
      %v989 = vpop.permute.xlu0 %988
      %991 = vst.msk [vmem:[#allocation2] sm:$0x3] %vm509, %v989
      %993 = vrot.lane.b32.xlu0 %v976, 64
      %v994 = vpop.permute.xlu0 %993
      %996 = vst.msk [vmem:[#allocation3] sm:$0x3] %vm509, %v994
      %s997 = scalar_lea.vmem %s266, 4
      %998 = vst.msk [vmem:[%s997] sm:$0x3] %vm509, %v989
      %s999 = scalar_lea.vmem %s273, 2
      %1000 = vst.msk [vmem:[%s999] sm:$0x3] %vm509, %v994
      %v1001 = vld [vmem:[#allocation2] sm:$0x3]
      %v1003 = vsel %vm294, %v1001, 0
      %1005 = vmatprep.subr.mxu0 0.0
      %1006 = vmatpush1.msra.mxu0 %v285
      %1007 = vmatprep.subr.mxu0 0.0
      %1008 = vmatpush1.msra.mxu0 %v286
      %1009 = vmatprep.subr.mxu0 0.0
      %1010 = vmatpush1.msra.mxu0 %v287
      %1011 = vmatprep.subr.mxu0 0.0
      %1012 = vmatpush1.msra.mxu0 %v288
      %1013 = vmatprep.subr.mxu0 0.0
      %1014 = vmatpush1.msra.mxu0 0.0
      %1015 = vmatprep.subr.mxu0 0.0
      %1016 = vmatpush1.msra.mxu0 0.0
      %1017 = vmatprep.subr.mxu0 0.0
      %1018 = vmatpush1.msra.mxu0 0.0
      %1019 = vmatprep.subr.mxu0 0.0
      %1020 = vmatpush1.msra.mxu0 0.0
      %1021 = vmatprep.subr.mxu0 0.0
      %1022 = vmatpush1.msra.mxu0 0.0
      %1023 = vmatprep.subr.mxu0 0.0
      %1024 = vmatpush1.msra.mxu0 0.0
      %1025 = vmatprep.subr.mxu0 0.0
      %1026 = vmatpush1.msra.mxu0 0.0
      %1027 = vmatprep.subr.mxu0 0.0
      %1028 = vmatpush1.msra.mxu0 0.0
      %1029 = vmatprep.subr.mxu0 0.0
      %1030 = vmatpush1.msra.mxu0 0.0
      %1031 = vmatprep.subr.mxu0 0.0
      %1032 = vmatpush1.msra.mxu0 0.0
      %1033 = vmatprep.subr.mxu0 0.0
      %1034 = vmatpush1.msra.mxu0 0.0
      %1035 = vmatprep.subr.mxu0 0.0
      %1036 = vmatpush1.msra.mxu0 0.0
      %1037 = vmatprep.subr.mxu0 0.0
      %1038 = vmatpush1.msra.mxu0 0.0
      %1039 = vmatprep.subr.mxu0 0.0
      %1040 = vmatpush1.msra.mxu0 0.0
      %1041 = vmatprep.subr.mxu0 0.0
      %1042 = vmatpush1.msra.mxu0 0.0
      %1043 = vmatprep.subr.mxu0 0.0
      %1044 = vmatpush1.msra.mxu0 0.0
      %1045 = vmatprep.subr.mxu0 0.0
      %1046 = vmatpush1.msra.mxu0 0.0
      %1047 = vmatprep.subr.mxu0 0.0
      %1048 = vmatpush1.msra.mxu0 0.0
      %1049 = vmatprep.subr.mxu0 0.0
      %1050 = vmatpush1.msra.mxu0 0.0
      %1051 = vmatprep.subr.mxu0 0.0
      %1052 = vmatpush1.msra.mxu0 0.0
      %1053 = vmatprep.subr.mxu0 0.0
      %1054 = vmatpush1.msra.mxu0 0.0
      %1055 = vmatprep.subr.mxu0 0.0
      %1056 = vmatpush1.msra.mxu0 0.0
      %1057 = vmatprep.subr.mxu0 0.0
      %1058 = vmatpush1.msra.mxu0 0.0
      %1059 = vmatprep.subr.mxu0 0.0
      %1060 = vmatpush1.msra.mxu0 0.0
      %1061 = vmatprep.subr.mxu0 0.0
      %1062 = vmatpush1.msra.mxu0 0.0
      %1063 = vmatprep.subr.mxu0 0.0
      %1064 = vmatpush1.msra.mxu0 0.0
      %1065 = vmatprep.subr.mxu0 0.0
      %1066 = vmatpush1.msra.mxu0 0.0
      %1067 = vmatprep.subr.mxu0 0.0
      %1068 = vmatpush1.msra.mxu0 0.0
      %1069 = vmatprep.mubr.f32.mxu0 0.0
      %1070 = vmatmul.mubr.f32.gmra.mrb[0].mxu0 %v1003
      %v1071 = vpop.f32.mrb[0].mxu0
      %v1072 = vadd.f32 0.0, %v1071
      %v1073 = vpop.f32.mrb[0].mxu0
      %1074 = vdwg.mxu0
      %v1075 = vld [vmem:[#allocation3] sm:$0x3]
      %v1077 = vsel %vm294, %v1075, 0
      %1079 = vmatprep.subr.mxu0 0.0
      %1080 = vmatpush1.msra.mxu0 %v289
      %1081 = vmatprep.subr.mxu0 0.0
      %1082 = vmatpush1.msra.mxu0 %v290
      %1083 = vmatprep.subr.mxu0 0.0
      %1084 = vmatpush1.msra.mxu0 %v291
      %1085 = vmatprep.subr.mxu0 0.0
      %1086 = vmatpush1.msra.mxu0 %v292
      %1087 = vmatprep.subr.mxu0 0.0
      %1088 = vmatpush1.msra.mxu0 0.0
      %1089 = vmatprep.subr.mxu0 0.0
      %1090 = vmatpush1.msra.mxu0 0.0
      %1091 = vmatprep.subr.mxu0 0.0
      %1092 = vmatpush1.msra.mxu0 0.0
      %1093 = vmatprep.subr.mxu0 0.0
      %1094 = vmatpush1.msra.mxu0 0.0
      %1095 = vmatprep.subr.mxu0 0.0
      %1096 = vmatpush1.msra.mxu0 0.0
      %1097 = vmatprep.subr.mxu0 0.0
      %1098 = vmatpush1.msra.mxu0 0.0
      %1099 = vmatprep.subr.mxu0 0.0
      %1100 = vmatpush1.msra.mxu0 0.0
      %1101 = vmatprep.subr.mxu0 0.0
      %1102 = vmatpush1.msra.mxu0 0.0
      %1103 = vmatprep.subr.mxu0 0.0
      %1104 = vmatpush1.msra.mxu0 0.0
      %1105 = vmatprep.subr.mxu0 0.0
      %1106 = vmatpush1.msra.mxu0 0.0
      %1107 = vmatprep.subr.mxu0 0.0
      %1108 = vmatpush1.msra.mxu0 0.0
      %1109 = vmatprep.subr.mxu0 0.0
      %1110 = vmatpush1.msra.mxu0 0.0
      %1111 = vmatprep.subr.mxu0 0.0
      %1112 = vmatpush1.msra.mxu0 0.0
      %1113 = vmatprep.subr.mxu0 0.0
      %1114 = vmatpush1.msra.mxu0 0.0
      %1115 = vmatprep.subr.mxu0 0.0
      %1116 = vmatpush1.msra.mxu0 0.0
      %1117 = vmatprep.subr.mxu0 0.0
      %1118 = vmatpush1.msra.mxu0 0.0
      %1119 = vmatprep.subr.mxu0 0.0
      %1120 = vmatpush1.msra.mxu0 0.0
      %1121 = vmatprep.subr.mxu0 0.0
      %1122 = vmatpush1.msra.mxu0 0.0
      %1123 = vmatprep.subr.mxu0 0.0
      %1124 = vmatpush1.msra.mxu0 0.0
      %1125 = vmatprep.subr.mxu0 0.0
      %1126 = vmatpush1.msra.mxu0 0.0
      %1127 = vmatprep.subr.mxu0 0.0
      %1128 = vmatpush1.msra.mxu0 0.0
      %1129 = vmatprep.subr.mxu0 0.0
      %1130 = vmatpush1.msra.mxu0 0.0
      %1131 = vmatprep.subr.mxu0 0.0
      %1132 = vmatpush1.msra.mxu0 0.0
      %1133 = vmatprep.subr.mxu0 0.0
      %1134 = vmatpush1.msra.mxu0 0.0
      %1135 = vmatprep.subr.mxu0 0.0
      %1136 = vmatpush1.msra.mxu0 0.0
      %1137 = vmatprep.subr.mxu0 0.0
      %1138 = vmatpush1.msra.mxu0 0.0
      %1139 = vmatprep.subr.mxu0 0.0
      %1140 = vmatpush1.msra.mxu0 0.0
      %1141 = vmatprep.subr.mxu0 0.0
      %1142 = vmatpush1.msra.mxu0 0.0
      %1143 = vmatprep.mubr.f32.mxu0 0.0
      %1144 = vmatmul.mubr.f32.gmra.mrb[0].mxu0 %v1077
      %v1145 = vpop.f32.mrb[0].mxu0
      %v1146 = vadd.f32 0.0, %v1145
      %v1147 = vpop.f32.mrb[0].mxu0
      %1148 = vdwg.mxu0
      %s1149 = scalar_lea.vmem %s252, 6
      %v1150 = vld [vmem:[%s1149] sm:$0x3]
      %v1151 = vadd.f32 %v1150, %v1072
      %v1152 = vld [vmem:[%s259] sm:$0x3]
      %v1153 = vadd.f32 %v1152, %v1146
      %v1154 = vxor.u32 %v1151, 2147483648
      %v1155 = vmul.f32 %v1154, 1.442695
      %v1156 = vpow.pop %v1155
      %v1157 = vadd.f32 %v1156, 1.0
      %v1158 = vrcp.pop %v1157
      %v1159 = vmul.f32 1.0, %v1158
      %v1160 = vxor.u32 %v1153, 2147483648
      %v1161 = vmul.f32 %v1160, 1.442695
      %v1162 = vpow.pop %v1161
      %v1163 = vadd.f32 %v1162, 1.0
      %v1164 = vrcp.pop %v1163
      %v1165 = vmul.f32 1.0, %v1164
      %v1166 = vtanh.pop %v1151
      %v1167 = vtanh.pop %v1153
      %v1168 = vld [vmem:[#allocation4] sm:$0x3]
      %1170 = vrot.lane.b32.xlu0 %v1168, 32
      %v1171 = vpop.permute.xlu0 %1170
      %v1173 = vmul.f32 %v1159, %v1171
      %1175 = vrot.lane.b32.xlu0 %v1166, 32
      %v1176 = vpop.permute.xlu0 %1175
      %v1178 = vmul.f32 %v1159, %v1176
      %1180 = vrot.lane.b32.xlu0 %v1178, 32
      %v1181 = vpop.permute.xlu0 %1180
      %v1183 = vadd.f32 %v1173, %v1181
      %v1184 = vld [vmem:[#allocation5] sm:$0x3]
      %1186 = vrot.lane.b32.xlu0 %v1184, 32
      %v1187 = vpop.permute.xlu0 %1186
      %v1189 = vmul.f32 %v1165, %v1187
      %1191 = vrot.lane.b32.xlu0 %v1167, 32
      %v1192 = vpop.permute.xlu0 %1191
      %v1194 = vmul.f32 %v1165, %v1192
      %1196 = vrot.lane.b32.xlu0 %v1194, 32
      %v1197 = vpop.permute.xlu0 %1196
      %v1199 = vadd.f32 %v1189, %v1197
      %v1200 = vtanh.pop %v1183
      %1202 = vrot.lane.b32.xlu0 %v1200, 32
      %v1203 = vpop.permute.xlu0 %1202
      %v1205 = vmul.f32 %v1159, %v1203
      %v1206 = vtanh.pop %v1199
      %1208 = vrot.lane.b32.xlu0 %v1206, 32
      %v1209 = vpop.permute.xlu0 %1208
      %v1211 = vmul.f32 %v1165, %v1209
      %1213 = vrot.lane.b32.xlu0 %v1183, 96
      %v1214 = vpop.permute.xlu0 %1213
      %1216 = vst.msk [vmem:[#allocation4] sm:$0x3] %vm509, %v1214
      %1218 = vrot.lane.b32.xlu0 %v1199, 96
      %v1219 = vpop.permute.xlu0 %1218
      %1221 = vst.msk [vmem:[#allocation5] sm:$0x3] %vm509, %v1219
      %1223 = vrot.lane.b32.xlu0 %v1205, 64
      %v1224 = vpop.permute.xlu0 %1223
      %1226 = vst.msk [vmem:[#allocation2] sm:$0x3] %vm509, %v1224
      %1228 = vrot.lane.b32.xlu0 %v1211, 64
      %v1229 = vpop.permute.xlu0 %1228
      %1231 = vst.msk [vmem:[#allocation3] sm:$0x3] %vm509, %v1229
      %s1232 = scalar_lea.vmem %s266, 6
      %1233 = vst.msk [vmem:[%s1232] sm:$0x3] %vm509, %v1224
      %1234 = vst.msk [vmem:[%s273] sm:$0x3] %vm509, %v1229
      %s1235 = smul.u32 4, %s17
      %p1236 = scmp.lt.s32.totalorder %s1235, 7
      %s1237 = scalar_select %p1236, %s1235, 7
      %s1238 = smul.addr %s1237, 2
      %s1239 = scalar_lea.vmem %s4, %s1238
      %s1240 = ssub.s32 1, %s17
      %s1241 = smul.u32 4, %s1240
      %p1242 = scmp.lt.s32.totalorder %s1241, 7
      %s1243 = scalar_select %p1242, %s1241, 7
      %s1244 = smul.addr %s1243, 2
      %s1245 = scalar_lea.vmem %s5, %s1244
      // Predicated region
      $region41: #{bilstm_forward.5} parent=35 // pred_check
        %p1246 = pneg %p131
      $region42: #{bilstm_forward.5} parent=35 // pred_check_branch
        %1248 = sbr.rel (%p1246) target = $region44
      $region43: #{bilstm_forward.5} parent=35 // pred_region
        %s1249 = smul.u32 4, %s17
      $region44: #{bilstm_forward.5} parent=35 // pred_fallthru
        _
      // Predicated region
      $region45: #{bilstm_forward.5} parent=35 // pred_check
        %p1250 = pneg %p159
      $region46: #{bilstm_forward.5} parent=35 // pred_check_branch
        %1252 = sbr.rel (%p1250) target = $region48
      $region47: #{bilstm_forward.5} parent=35 // pred_region
        %s1253 = ssub.s32 1, %s17
        %s1254 = smul.u32 4, %s1253
      $region48: #{bilstm_forward.5} parent=35 // pred_fallthru
        _
    $region36: #{bilstm_forward.5} parent=5 // pred_fallthru
      _
    %p1255 = scmp.le.s32.totalorder 2, %s12
    // Predicated region
    $region49: #{bilstm_forward.5} parent=5 // pred_check
      %p1256 = pneg %p1255
    $region50: #{bilstm_forward.5} parent=5 // pred_check_branch
      %1258 = sbr.rel (%p1256) target = $region52
    $region51: #{bilstm_forward.5} parent=5 // pred_region
      %s1259 = ssub.s32 %s12, 2
      // Predicated region
      $region53: #{bilstm_forward.5} parent=51 // pred_check
        %p1260 = pneg %p137
      $region54: #{bilstm_forward.5} parent=51 // pred_check_branch
        %1262 = sbr.rel (%p1260) target = $region56
      $region55: #{bilstm_forward.5} parent=51 // pred_region
        %s1263 = smul.u32 4, %s18
        %p1264 = scmp.lt.s32.totalorder %s1263, 7
        %s1265 = scalar_select %p1264, %s1263, 7
        %s1266 = smul.addr %s1265, 2
        %s1267 = scalar_lea.vmem %s4, %s1266
      $region56: #{bilstm_forward.5} parent=51 // pred_fallthru
        _
      // Predicated region
      $region57: #{bilstm_forward.5} parent=51 // pred_check
        %p1268 = pneg %p165
      $region58: #{bilstm_forward.5} parent=51 // pred_check_branch
        %1270 = sbr.rel (%p1268) target = $region60
      $region59: #{bilstm_forward.5} parent=51 // pred_region
        %s1271 = ssub.s32 1, %s18
        %s1272 = smul.u32 4, %s1271
        %p1273 = scmp.lt.s32.totalorder %s1272, 7
        %s1274 = scalar_select %p1273, %s1272, 7
        %s1275 = smul.addr %s1274, 2
        %s1276 = scalar_lea.vmem %s5, %s1275
      $region60: #{bilstm_forward.5} parent=51 // pred_fallthru
        _
    $region52: #{bilstm_forward.5} parent=5 // pred_fallthru
      _
  $region6: #{bilstm_forward.5} parent=0 // loop_footer
    %s16 = sadd.s32 1, %s12
  $region7: #{bilstm_forward.5} parent=0 // loop_footer_branch
    %11 = sbr.rel target = $region3
  $region8: #{bilstm_forward.5} parent=0 // loop_exit
    _

</llo_original>
